<compile_context>
chip_gen: v5e
topology: v5e:2x2
jax: 0.10.0
libtpu: 0.0.40
codegen_flags: <defaults>
</compile_context>

<pallas_src>
import functools
import math

import jax
import jax.numpy as jnp
from jax.experimental import pallas as pl
from jax.experimental.pallas import tpu as pltpu


_VMEM_LIMIT = 64 * 1024 * 1024   # fits v7x physical VMEM, plenty for v5e/v6e


def _round_up(x, m):
    return ((x + m - 1) // m) * m


# ----------------------------------------------------------------------------
# Kernel 1: element embedding Linear fused with the fractional-weight concat
# (tiled over N with a real grid -> standard double-buffered pipeline)
# ----------------------------------------------------------------------------
def _embed_concat_kernel(x_ref, wts_ref, w_ref, b_ref, o_ref):
    y = jnp.dot(x_ref[...], w_ref[...], preferred_element_type=jnp.float32)
    y = y + b_ref[...]
    lane = jax.lax.broadcasted_iota(jnp.int32, y.shape, 1)
    # last feature column <- elem_weights (the torch.cat([emb, w], dim=1))
    o_ref[...] = jnp.where(lane == y.shape[1] - 1, wts_ref[...], y)


def pallas_embed_concat(w_bf16, b_f32, elem_fea_bf16, elem_weights, *,
                        block_n=512):
    n, emb = elem_fea_bf16.shape
    feat = w_bf16.shape[1]
    assert n % block_n == 0 and block_n % 16 == 0
    grid_spec = pltpu.PrefetchScalarGridSpec(
        num_scalar_prefetch=0,
        grid=(n // block_n,),
        in_specs=[pl.BlockSpec((block_n, emb), lambda i: (i, 0)),
                  pl.BlockSpec((block_n, 1), lambda i: (i, 0)),
                  pl.BlockSpec((emb, feat), lambda i: (0, 0)),
                  pl.BlockSpec((1, feat), lambda i: (0, 0))],
        out_specs=pl.BlockSpec((block_n, feat), lambda i: (i, 0)),
    )
    return pl.pallas_call(
        _embed_concat_kernel,
        out_shape=jax.ShapeDtypeStruct((n, feat), jnp.float32),
        grid_spec=grid_spec,
        compiler_params=pltpu.CompilerParams(
            dimension_semantics=("parallel",),
            vmem_limit_bytes=_VMEM_LIMIT),
    )(elem_fea_bf16, elem_weights, w_bf16, b_f32)


# ----------------------------------------------------------------------------
# Kernel 2: fused multi-head weighted attention pooling (one call per layer)
# ----------------------------------------------------------------------------
def _fused_heads_kernel(idx_ref, wts_ref, x_ref, w1_ref, b_hid_ref,
                        w_gf_ref, b_gf_ref, w_mf_ref, b_mf_ref, pow_ref,
                        *rest, has_res):
    if has_res:
        res_ref, out_ref, m_sc, acc_sc = rest
    else:
        res_ref = None
        out_ref, m_sc, acc_sc = rest

    num_heads, gate_w = w_gf_ref.shape          # (H, Gg)
    msg_w = w_mf_ref.shape[1]                   # Gm
    feat_p1 = w_mf_ref.shape[2]                 # F + 1 (extra denominator col)
    feat = feat_p1 - 1
    tile_m = idx_ref.shape[0]
    seg = out_ref.shape[0]

    t = pl.program_id(0)

    @pl.when(t == 0)
    def _init():
        m_sc[...] = jnp.full_like(m_sc, -1e30)   # finite: no exp(-inf+inf) NaN
        acc_sc[...] = jnp.zeros_like(acc_sc)

    # ONE wide K=din MXU matmul for ALL heads' gate+msg hidden layers
    # (message layers: din = 2F = 128, a single full-depth contraction).
    hid = jnp.dot(x_ref[...], w1_ref[...], preferred_element_type=jnp.float32)
    hid = hid + b_hid_ref[...]
    hid = jnp.where(hid >= 0.0, hid, 0.01 * hid)          # LeakyReLU(0.01)

    # Segment one-hot built in-kernel (never stored in HBM). Padding rows
    # carry idx == -1 and therefore belong to no segment.
    idx = idx_ref[...]                                     # (tile_m, 1) int32
    valid = idx >= 0
    seg_ids = jax.lax.broadcasted_iota(jnp.int32, (tile_m, seg), 1)
    oh = seg_ids == idx                                    # (tile_m, seg) bool
    oh_bf = jnp.where(oh, 1.0, 0.0).astype(jnp.bfloat16)

    log_w = jnp.log(jnp.maximum(wts_ref[...], 1e-30))      # (tile_m, 1), w > 0

    for h in range(num_heads):
        base = h * (gate_w + msg_w)
        hid_g = hid[:, base:base + gate_w]
        hid_m = hid[:, base + gate_w:base + gate_w + msg_w]

        # gate head output layer (256 -> 1): VPU multiply + lane reduction
        # (no width-1 MXU matmul).
        gate = jnp.sum(hid_g * w_gf_ref[h:h + 1, :], axis=-1, keepdims=True)
        gate = gate + b_gf_ref[h:h + 1, :]                 # (tile_m, 1)

        # message head output layer (256 -> F+1): MXU, bf16 -> f32. The extra
        # column is a constant 1.0 that carries the softmax denominator
        # through the same scatter matmul below.
        msg = jnp.dot(hid_m.astype(jnp.bfloat16), w_mf_ref[h],
                      preferred_element_type=jnp.float32)
        msg = msg + b_mf_ref[h:h + 1, :]                   # (tile_m, F+1)

        # ---- online (flash-style) per-segment softmax across M tiles ----
        m_old = m_sc[h:h + 1, :]                                       # (1, S)
        tile_max = jnp.max(jnp.where(oh, gate, -1e30), axis=0,
                           keepdims=True)
        m_new = jnp.maximum(m_old, tile_max)
        alpha = jnp.exp(m_old - m_new)                     # finite, in (0, 1]

        # gather each row's segment max; rows with idx == -1 get 0 (masked).
        row_max = jnp.sum(jnp.where(oh, m_new, 0.0), axis=1, keepdims=True)
        # weights ** pow * exp(gate - max)  (single fused exp)
        p = jnp.exp(pow_ref[h:h + 1, :] * log_w + gate - row_max)
        p = jnp.where(valid, p, 0.0)                       # (tile_m, 1)

        # Scatter-add of p*[msg, 1] into segments: contract over the M axis.
        # Last row of contrib is the per-segment denominator update.
        contrib = jax.lax.dot_general(
            (p * msg).astype(jnp.bfloat16), oh_bf,
            (((0,), (0,)), ((), ())),
            preferred_element_type=jnp.float32)            # (F+1, S)
        acc_sc[h] = acc_sc[h] * alpha + contrib
        m_sc[h:h + 1, :] = m_new

    @pl.when(t == pl.num_programs(0) - 1)
    def _finalize():
        total = jnp.zeros((feat, seg), jnp.float32)
        for h in range(num_heads):
            a = acc_sc[h]                                  # (F+1, S)
            inv = pl.reciprocal(a[feat:feat + 1, :] + 1e-10, approx=True)
            total = total + a[:feat, :] * inv
        # (F, S) -> (S, F): identity matmul (once per call; exact for 0/1).
        eye = (jax.lax.broadcasted_iota(jnp.int32, (feat, feat), 0) ==
               jax.lax.broadcasted_iota(jnp.int32, (feat, feat), 1)
               ).astype(jnp.float32)
        out = jax.lax.dot_general(total, eye, (((0,), (0,)), ((), ())),
                                  preferred_element_type=jnp.float32)
        out = out * (1.0 / num_heads)                      # mean over heads
        if has_res:
            out = out + res_ref[...]                       # residual fused in
        out_ref[...] = out


def fused_multihead_attention_pool(head_p, idx, weights, x, *, num_segments,
                                   residual=None, block_m=512):
    """All attention heads of one (message / crystal) layer in ONE pallas_call,
    tiled over the M axis with an online segment softmax."""
    m, din = x.shape
    assert m % block_m == 0 and block_m % 16 == 0
    feat = head_p["w_mf"].shape[2] - 1
    num_heads = head_p["w_gf"].shape[0]
    has_res = residual is not None

    def row_spec(width):
        return pl.BlockSpec((block_m, width), lambda i: (i, 0))

    def const_spec(shape):
        nd = len(shape)
        return pl.BlockSpec(shape, lambda i, nd=nd: (0,) * nd)

    operands = [idx.astype(jnp.int32).reshape(m, 1),
                weights.astype(jnp.float32).reshape(m, 1),
                x.astype(jnp.bfloat16)]
    in_specs = [row_spec(1), row_spec(1), row_spec(din)]
    for name in ("w1", "b_hid", "w_gf", "b_gf", "w_mf", "b_mf", "pow"):
        operands.append(head_p[name])
        in_specs.append(const_spec(head_p[name].shape))
    if has_res:
        operands.append(residual)
        in_specs.append(const_spec(residual.shape))

    kernel = functools.partial(_fused_heads_kernel, has_res=has_res)
    grid_spec = pltpu.PrefetchScalarGridSpec(
        num_scalar_prefetch=0,
        grid=(m // block_m,),
        in_specs=in_specs,
        out_specs=pl.BlockSpec((num_segments, feat), lambda i: (0, 0)),
        scratch_shapes=[
            pltpu.VMEM((num_heads, num_segments), jnp.float32),        # max
            pltpu.VMEM((num_heads, feat + 1, num_segments), jnp.float32),
        ],
    )
    return pl.pallas_call(
        kernel,
        out_shape=jax.ShapeDtypeStruct((num_segments, feat), jnp.float32),
        grid_spec=grid_spec,
        compiler_params=pltpu.CompilerParams(
            dimension_semantics=("arbitrary",),   # M axis carries accumulators
            vmem_limit_bytes=_VMEM_LIMIT),
    )(*operands)


# ----------------------------------------------------------------------------
# Forward pass (gathers kept as XLA glue, all dense math inside the kernels)
# ----------------------------------------------------------------------------
def descriptor_network(packed, elem_weights, elem_fea, self_fea_idx,
                       nbr_fea_idx, cry_elem_idx, num_crystals, *,
                       block_m=512):
    n = elem_fea.shape[0]
    m = self_fea_idx.shape[0]
    n_pad = _round_up(n, block_m)
    m_pad = _round_up(m, block_m)

    # node-level padding done ONCE (padded rows never feed real segments)
    elem_fea_p = jnp.pad(elem_fea, ((0, n_pad - n), (0, 0)))
    wts_p = jnp.pad(elem_weights, ((0, n_pad - n), (0, 0)),
                    constant_values=1.0)                       # keep w > 0
    cry_idx_p = jnp.pad(cry_elem_idx.astype(jnp.int32), (0, n_pad - n),
                        constant_values=-1)

    # edge-level padding done ONCE: gather index 0, pooling mask index -1
    self_g = jnp.pad(self_fea_idx.astype(jnp.int32), (0, m_pad - m))
    nbr_g = jnp.pad(nbr_fea_idx.astype(jnp.int32), (0, m_pad - m))
    self_mask = jnp.pad(self_fea_idx.astype(jnp.int32), (0, m_pad - m),
                        constant_values=-1)

    # embedding Linear + concat of the fractional weights (tiled kernel)
    x = pallas_embed_concat(packed["embed_w"], packed["embed_b"],
                            elem_fea_p.astype(jnp.bfloat16), wts_p,
                            block_n=block_m)                   # (n_pad, F) f32

    nbr_w = jnp.take(wts_p, nbr_g, axis=0)                     # (m_pad, 1)

    # message-passing graph layers: one fused pallas_call per layer
    for layer in packed["graphs"]:
        xb = x.astype(jnp.bfloat16)
        # single (M, 2F) bf16 stream -> single K=128 hidden contraction
        fea = jnp.concatenate([jnp.take(xb, self_g, axis=0),
                               jnp.take(xb, nbr_g, axis=0)], axis=1)
        x = fused_multihead_attention_pool(
            layer, self_mask, nbr_w, fea,
            num_segments=n_pad, residual=x, block_m=block_m)

    # crystal-level attention pooling heads (one fused pallas_call)
    return fused_multihead_attention_pool(
        packed["cry_pool"], cry_idx_p, wts_p, x.astype(jnp.bfloat16),
        num_segments=num_crystals, residual=None, block_m=block_m)


# ----------------------------------------------------------------------------
# Parameter init (PyTorch-like uniform bounds) and packing for the kernels
# ----------------------------------------------------------------------------
def _init_linear(key, fan_in, fan_out):
    kw, kb = jax.random.split(key)
    bound = 1.0 / math.sqrt(fan_in)
    w = jax.random.uniform(kw, (fan_in, fan_out), jnp.float32, -bound, bound)
    b = jax.random.uniform(kb, (fan_out,), jnp.float32, -bound, bound)
    return w, b


def _init_simple_net(key, dims):
    keys = jax.random.split(key, len(dims) - 1)
    return [_init_linear(k, i, o) for k, i, o in zip(keys, dims[:-1], dims[1:])]


def _init_attention_head(key, in_dim, gate_dims, msg_dims, out_dim):
    kg, km, kp = jax.random.split(key, 3)
    return {
        "gate": _init_simple_net(kg, [in_dim, *gate_dims, 1]),
        "msg": _init_simple_net(km, [in_dim, *msg_dims, out_dim]),
        "pow": jax.random.normal(kp, (1,), jnp.float32),
    }


def init_descriptor_network(key, elem_emb_len, elem_fea_len=64, n_graph=3,
                            elem_heads=3, elem_gate=(256,), elem_msg=(256,),
                            cry_heads=3, cry_gate=(256,), cry_msg=(256,)):
    k_emb, k_graph, k_cry = jax.random.split(key, 3)
    params = {"embedding": _init_linear(k_emb, elem_emb_len, elem_fea_len - 1)}
    params["graphs"] = [
        [_init_attention_head(hk, 2 * elem_fea_len, elem_gate, elem_msg,
                              elem_fea_len)
         for hk in jax.random.split(gk, elem_heads)]
        for gk in jax.random.split(k_graph, n_graph)
    ]
    params["cry_pool"] = [
        _init_attention_head(hk, elem_fea_len, cry_gate, cry_msg, elem_fea_len)
        for hk in jax.random.split(k_cry, cry_heads)
    ]
    return params


def _pack_attention_heads(heads):
    """Concatenate all heads' hidden-layer weights into one wide matrix and
    stack the small output layers + pow scalars; weights pre-cast to bf16.
    The message output layer gets one extra constant-one column so the
    softmax denominator rides through the same scatter matmul."""
    w_hid_cols, b_hid_cols = [], []
    w_gf_rows, b_gf, w_mf, b_mf, pows = [], [], [], [], []
    for hd in heads:
        # TODO(synk): fused kernel only supports SimpleNets with exactly one
        # hidden layer (the module defaults [256]).
        assert len(hd["gate"]) == 2 and len(hd["msg"]) == 2
        (gw0, gb0), (gw1, gb1) = hd["gate"]
        (mw0, mb0), (mw1, mb1) = hd["msg"]
        w_hid_cols += [gw0, mw0]
        b_hid_cols += [gb0, mb0]
        w_gf_rows.append(gw1[:, 0])
        b_gf.append(gb1[0])
        w_mf.append(jnp.pad(mw1, ((0, 0), (0, 1))))          # extra zero col
        b_mf.append(jnp.concatenate([mb1, jnp.ones((1,), mb1.dtype)]))
        pows.append(hd["pow"][0])
    return {
        "w1": jnp.concatenate(w_hid_cols, axis=1).astype(jnp.bfloat16),
        "b_hid": jnp.concatenate(b_hid_cols)[None, :].astype(jnp.float32),
        "w_gf": jnp.stack(w_gf_rows).astype(jnp.float32),
        "b_gf": jnp.stack(b_gf).astype(jnp.float32)[:, None],
        "w_mf": jnp.stack(w_mf).astype(jnp.bfloat16),
        "b_mf": jnp.stack(b_mf).astype(jnp.float32),
        "pow": jnp.stack(pows).astype(jnp.float32)[:, None],
    }


def pack_descriptor_params(params):
    emb_w, emb_b = params["embedding"]
    w_pad = jnp.pad(emb_w, ((0, 0), (0, 1)))   # pad output width to F (last
    b_pad = jnp.pad(emb_b, (0, 1))[None, :]    # column is replaced by weights)
    return {
        "embed_w": w_pad.astype(jnp.bfloat16),
        "embed_b": b_pad.astype(jnp.float32),
        "graphs": [_pack_attention_heads(layer) for layer in params["graphs"]],
        "cry_pool": _pack_attention_heads(params["cry_pool"]),
    }


# ----------------------------------------------------------------------------
# Pure-JAX reference (f32) for a correctness check
# ----------------------------------------------------------------------------
def _ref_simple_net(ps, x):
    *hidden, last = ps
    for w, b in hidden:
        x = x @ w + b
        x = jnp.where(x >= 0.0, x, 0.01 * x)
    w, b = last
    return x @ w + b


def _ref_pool(head, x, index, weights, nseg):
    gate = _ref_simple_net(head["gate"], x)
    smax = jax.ops.segment_max(gate, index, num_segments=nseg)
    gate = gate - smax[index]
    gate = (weights ** head["pow"]) * jnp.exp(gate)
    ssum = jax.ops.segment_sum(gate, index, num_segments=nseg)
    gate = gate / (ssum[index] + 1e-10)
    msg = _ref_simple_net(head["msg"], x)
    return jax.ops.segment_sum(gate * msg, index, num_segments=nseg)


def reference_forward(params, elem_weights, elem_fea, self_idx, nbr_idx,
                      cry_idx, num_crystals):
    w, b = params["embedding"]
    x = jnp.concatenate([elem_fea @ w + b, elem_weights], axis=1)
    for layer in params["graphs"]:
        fea = jnp.concatenate([x[self_idx], x[nbr_idx]], axis=1)
        nbr_w = elem_weights[nbr_idx]
        heads = [_ref_pool(h, fea, self_idx, nbr_w, x.shape[0]) for h in layer]
        x = jnp.mean(jnp.stack(heads), axis=0) + x
    heads = [_ref_pool(h, x, cry_idx, elem_weights, num_crystals)
             for h in params["cry_pool"]]
    return jnp.mean(jnp.stack(heads), axis=0)


# ----------------------------------------------------------------------------
# Example run
# ----------------------------------------------------------------------------
if __name__ == "__main__":
    key = jax.random.PRNGKey(0)
    k_params, k_fea, k_w = jax.random.split(key, 3)

    ELEM_EMB_LEN = 32     # input element-embedding length (small, synthetic)
    ELEM_FEA_LEN = 64     # module default elem_fea_len

    # 3 crystals with 3, 2, 3 elements -> N = 8 nodes, fully connected
    # (incl. self-loops) within each crystal -> M = 9 + 4 + 9 = 22 edges.
    crystal_sizes = [3, 2, 3]
    num_crystals = len(crystal_sizes)
    n_nodes = sum(crystal_sizes)

    cry_idx_list, self_idx_list, nbr_idx_list = [], [], []
    offset = 0
    for c, size in enumerate(crystal_sizes):
        cry_idx_list += [c] * size
        for i in range(size):
            for j in range(size):
                self_idx_list.append(offset + i)
                nbr_idx_list.append(offset + j)
        offset += size

    cry_elem_idx = jnp.array(cry_idx_list, dtype=jnp.int32)    # (N,)
    self_fea_idx = jnp.array(self_idx_list, dtype=jnp.int32)   # (M,)
    nbr_fea_idx = jnp.array(nbr_idx_list, dtype=jnp.int32)     # (M,)

    elem_fea = jax.random.normal(k_fea, (n_nodes, ELEM_EMB_LEN), jnp.float32)
    raw_w = jax.random.uniform(k_w, (n_nodes, 1), jnp.float32, 0.1, 1.0)
    seg_tot = jnp.zeros((num_crystals,), jnp.float32).at[cry_elem_idx].add(
        raw_w[:, 0])
    elem_weights = raw_w / seg_tot[cry_elem_idx][:, None]      # (N, 1), > 0

    params = init_descriptor_network(k_params, ELEM_EMB_LEN, ELEM_FEA_LEN)
    packed = pack_descriptor_params(params)

    # block_m=16 keeps the tiny example multi-tile so the online segment
    # softmax across the M grid axis is exercised; use 512 (v5e/v6e) or
    # 128-256 (v7x) at real sizes.
    fwd = jax.jit(functools.partial(descriptor_network,
                                    num_crystals=num_crystals, block_m=16))
    out = fwd(packed, elem_weights, elem_fea, self_fea_idx, nbr_fea_idx,
              cry_elem_idx)
    out = jax.block_until_ready(out)

    assert out.shape == (num_crystals, ELEM_FEA_LEN), out.shape
    assert bool(jnp.all(jnp.isfinite(out)))

    ref = reference_forward(params, elem_weights, elem_fea, self_fea_idx,
                            nbr_fea_idx, cry_elem_idx, num_crystals)
    err = float(jnp.max(jnp.abs(out - ref)))
    assert err < 7.5e-2, f"kernel/reference mismatch: max|diff|={err}"
    print("KERNEL_OK")
</pallas_src>

<mosaic_0001>
module attributes {stable_mosaic.version = 11 : i64} {
  func.func @_embed_concat_kernel(%arg0: i32, %arg1: memref<16x32xbf16, #tpu.memory_space<vmem>>, %arg2: memref<16x1xf32, #tpu.memory_space<vmem>>, %arg3: memref<32x64xbf16, #tpu.memory_space<vmem>>, %arg4: memref<1x64xf32, #tpu.memory_space<vmem>>, %arg5: memref<16x64xf32, #tpu.memory_space<vmem>>) attributes {dimension_semantics = [#tpu.dimension_semantics<parallel>], iteration_bounds = array<i64: 1>, scalar_prefetch = 0 : i64, scratch_operands = 0 : i64, tpu.core_type = #tpu.core_type<tc>, window_params = [{transform_indices = @transform_0, window_bounds = array<i64: 16, 32>}, {transform_indices = @transform_1, window_bounds = array<i64: 16, 1>}, {pipeline_mode = #tpu.pipeline_mode<synchronous>, transform_indices = @transform_2, window_bounds = array<i64: 32, 64>}, {pipeline_mode = #tpu.pipeline_mode<synchronous>, transform_indices = @transform_3, window_bounds = array<i64: 1, 64>}, {transform_indices = @transform_4, window_bounds = array<i64: 16, 64>}]} {
    %c0 = arith.constant 0 : index
    %c0_0 = arith.constant 0 : index
    %0 = vector.load %arg1[%c0, %c0_0] : memref<16x32xbf16, #tpu.memory_space<vmem>>, vector<16x32xbf16>
    %c0_1 = arith.constant 0 : index
    %c0_2 = arith.constant 0 : index
    %1 = vector.load %arg3[%c0_1, %c0_2] : memref<32x64xbf16, #tpu.memory_space<vmem>>, vector<32x64xbf16>
    %cst = arith.constant dense<0.000000e+00> : vector<16x64xf32>
    %2 = tpu.matmul %0, %1, %cst {dimension_numbers = #tpu.dot_dimension_numbers<[1], [0], [0], [1], [0, 0, 1, 1], [], []>} : vector<16x32xbf16>, vector<32x64xbf16>, vector<16x64xf32> -> vector<16x64xf32>
    %c0_3 = arith.constant 0 : index
    %c0_4 = arith.constant 0 : index
    %3 = vector.load %arg4[%c0_3, %c0_4] : memref<1x64xf32, #tpu.memory_space<vmem>>, vector<1x64xf32>
    %4 = vector.broadcast %3 : vector<1x64xf32> to vector<16x64xf32>
    %5 = arith.addf %2, %4 : vector<16x64xf32>
    %6 = tpu.iota {dimensions = array<i32: 1>} : vector<16x64xi32>
    %c63_i32 = arith.constant 63 : i32
    %7 = vector.broadcast %c63_i32 : i32 to vector<16x64xi32>
    %8 = arith.cmpi eq, %6, %7 : vector<16x64xi32>
    %c0_5 = arith.constant 0 : index
    %c0_6 = arith.constant 0 : index
    %9 = vector.load %arg2[%c0_5, %c0_6] : memref<16x1xf32, #tpu.memory_space<vmem>>, vector<16x1xf32>
    %10 = vector.shape_cast %9 : vector<16x1xf32> to vector<16x1xf32>
    %11 = vector.broadcast %10 : vector<16x1xf32> to vector<16x64xf32>
    %12 = arith.select %8, %11, %5 : vector<16x64xi1>, vector<16x64xf32>
    %c0_7 = arith.constant 0 : index
    %c0_8 = arith.constant 0 : index
    %13 = vector.load %arg5[%c0_7, %c0_8] : memref<16x64xf32, #tpu.memory_space<vmem>>, vector<16x64xf32>
    tpu.vector_store %arg5[%c0_7, %c0_8], %12 {strides = array<i32>} : memref<16x64xf32, #tpu.memory_space<vmem>>, vector<16x64xf32>,
    return
  }
  func.func @transform_0(%arg0: i32) -> (i32, i32) {
    %c0_i32 = arith.constant 0 : i32
    %c0_i32_0 = arith.constant 0 : i32
    return %arg0, %c0_i32 : i32, i32
  }
  func.func @transform_1(%arg0: i32) -> (i32, i32) {
    %c0_i32 = arith.constant 0 : i32
    %c0_i32_0 = arith.constant 0 : i32
    return %arg0, %c0_i32 : i32, i32
  }
  func.func @transform_2(%arg0: i32) -> (i32, i32) {
    %c0_i32 = arith.constant 0 : i32
    %c0_i32_0 = arith.constant 0 : i32
    %c0_i32_1 = arith.constant 0 : i32
    return %c0_i32, %c0_i32_0 : i32, i32
  }
  func.func @transform_3(%arg0: i32) -> (i32, i32) {
    %c0_i32 = arith.constant 0 : i32
    %c0_i32_0 = arith.constant 0 : i32
    %c0_i32_1 = arith.constant 0 : i32
    return %c0_i32, %c0_i32_0 : i32, i32
  }
  func.func @transform_4(%arg0: i32) -> (i32, i32) {
    %c0_i32 = arith.constant 0 : i32
    %c0_i32_0 = arith.constant 0 : i32
    return %arg0, %c0_i32 : i32, i32
  }
}

module attributes {stable_mosaic.version = 11 : i64} {
  func.func @_fused_heads_kernel(%arg0: i32, %arg1: memref<16x1xi32, #tpu.memory_space<vmem>>, %arg2: memref<16x1xf32, #tpu.memory_space<vmem>>, %arg3: memref<16x128xbf16, #tpu.memory_space<vmem>>, %arg4: memref<128x1536xbf16, #tpu.memory_space<vmem>>, %arg5: memref<1x1536xf32, #tpu.memory_space<vmem>>, %arg6: memref<3x256xf32, #tpu.memory_space<vmem>>, %arg7: memref<3x1xf32, #tpu.memory_space<vmem>>, %arg8: memref<3x256x65xbf16, #tpu.memory_space<vmem>>, %arg9: memref<3x65xf32, #tpu.memory_space<vmem>>, %arg10: memref<3x1xf32, #tpu.memory_space<vmem>>, %arg11: memref<16x64xf32, #tpu.memory_space<vmem>>, %arg12: memref<16x64xf32, #tpu.memory_space<vmem>>, %arg13: memref<3x16xf32, #tpu.memory_space<vmem>>, %arg14: memref<3x65x16xf32, #tpu.memory_space<vmem>>) attributes {dimension_semantics = [#tpu.dimension_semantics<arbitrary>], iteration_bounds = array<i64: 2>, scalar_prefetch = 0 : i64, scratch_operands = 2 : i64, tpu.core_type = #tpu.core_type<tc>, window_params = [{transform_indices = @transform_0, window_bounds = array<i64: 16, 1>}, {transform_indices = @transform_1, window_bounds = array<i64: 16, 1>}, {transform_indices = @transform_2, window_bounds = array<i64: 16, 128>}, {pipeline_mode = #tpu.pipeline_mode<synchronous>, transform_indices = @transform_3, window_bounds = array<i64: 128, 1536>}, {pipeline_mode = #tpu.pipeline_mode<synchronous>, transform_indices = @transform_4, window_bounds = array<i64: 1, 1536>}, {pipeline_mode = #tpu.pipeline_mode<synchronous>, transform_indices = @transform_5, window_bounds = array<i64: 3, 256>}, {pipeline_mode = #tpu.pipeline_mode<synchronous>, transform_indices = @transform_6, window_bounds = array<i64: 3, 1>}, {pipeline_mode = #tpu.pipeline_mode<synchronous>, transform_indices = @transform_7, window_bounds = array<i64: 3, 256, 65>}, {pipeline_mode = #tpu.pipeline_mode<synchronous>, transform_indices = @transform_8, window_bounds = array<i64: 3, 65>}, {pipeline_mode = #tpu.pipeline_mode<synchronous>, transform_indices = @transform_9, window_bounds = array<i64: 3, 1>}, {pipeline_mode = #tpu.pipeline_mode<synchronous>, transform_indices = @transform_10, window_bounds = array<i64: 16, 64>}, {pipeline_mode = #tpu.pipeline_mode<synchronous>, transform_indices = @transform_11, window_bounds = array<i64: 16, 64>}]} {
    %c0_i32 = arith.constant 0 : i32
    %0 = arith.cmpi eq, %arg0, %c0_i32 : i32
    %1 = arith.extui %0 : i1 to i32
    %c0_i32_0 = arith.constant 0 : i32
    %2 = arith.cmpi ne, %1, %c0_i32_0 : i32
    scf.if %2 {
      %cst_102 = arith.constant -1.000000e+30 : f32
      %193 = vector.broadcast %cst_102 : f32 to vector<3x16xf32>
      %c0_103 = arith.constant 0 : index
      %c0_104 = arith.constant 0 : index
      %194 = vector.load %arg13[%c0_103, %c0_104] : memref<3x16xf32, #tpu.memory_space<vmem>>, vector<3x16xf32>
      tpu.vector_store %arg13[%c0_103, %c0_104], %193 {strides = array<i32>} : memref<3x16xf32, #tpu.memory_space<vmem>>, vector<3x16xf32>,
      %cst_105 = arith.constant 0.000000e+00 : f32
      %195 = vector.broadcast %cst_105 : f32 to vector<3x65x16xf32>
      %c0_106 = arith.constant 0 : index
      %c0_107 = arith.constant 0 : index
      %c0_108 = arith.constant 0 : index
      %196 = vector.load %arg14[%c0_106, %c0_107, %c0_108] : memref<3x65x16xf32, #tpu.memory_space<vmem>>, vector<3x65x16xf32>
      tpu.vector_store %arg14[%c0_106, %c0_107, %c0_108], %195 {strides = array<i32>} : memref<3x65x16xf32, #tpu.memory_space<vmem>>, vector<3x65x16xf32>,
    } else {
    }
    %c0 = arith.constant 0 : index
    %c0_1 = arith.constant 0 : index
    %3 = vector.load %arg3[%c0, %c0_1] : memref<16x128xbf16, #tpu.memory_space<vmem>>, vector<16x128xbf16>
    %c0_2 = arith.constant 0 : index
    %c0_3 = arith.constant 0 : index
    %4 = vector.load %arg4[%c0_2, %c0_3] : memref<128x1536xbf16, #tpu.memory_space<vmem>>, vector<128x1536xbf16>
    %cst = arith.constant dense<0.000000e+00> : vector<16x1536xf32>
    %5 = tpu.matmul %3, %4, %cst {dimension_numbers = #tpu.dot_dimension_numbers<[1], [0], [0], [1], [0, 0, 1, 1], [], []>} : vector<16x128xbf16>, vector<128x1536xbf16>, vector<16x1536xf32> -> vector<16x1536xf32>
    %c0_4 = arith.constant 0 : index
    %c0_5 = arith.constant 0 : index
    %6 = vector.load %arg5[%c0_4, %c0_5] : memref<1x1536xf32, #tpu.memory_space<vmem>>, vector<1x1536xf32>
    %7 = vector.broadcast %6 : vector<1x1536xf32> to vector<16x1536xf32>
    %8 = arith.addf %5, %7 : vector<16x1536xf32>
    %cst_6 = arith.constant 0.000000e+00 : f32
    %9 = vector.broadcast %cst_6 : f32 to vector<16x1536xf32>
    %10 = arith.cmpf oge, %8, %9 : vector<16x1536xf32>
    %cst_7 = arith.constant 0.00999999977 : f32
    %11 = vector.broadcast %cst_7 : f32 to vector<16x1536xf32>
    %12 = arith.mulf %11, %8 : vector<16x1536xf32>
    %13 = arith.select %10, %8, %12 : vector<16x1536xi1>, vector<16x1536xf32>
    %c0_8 = arith.constant 0 : index
    %c0_9 = arith.constant 0 : index
    %14 = vector.load %arg1[%c0_8, %c0_9] : memref<16x1xi32, #tpu.memory_space<vmem>>, vector<16x1xi32>
    %c0_i32_10 = arith.constant 0 : i32
    %15 = vector.broadcast %c0_i32_10 : i32 to vector<16x1xi32>
    %16 = arith.cmpi sge, %14, %15 : vector<16x1xi32>
    %17 = tpu.iota {dimensions = array<i32: 1>} : vector<16x16xi32>
    %18 = vector.broadcast %14 : vector<16x1xi32> to vector<16x16xi32>
    %19 = arith.cmpi eq, %17, %18 : vector<16x16xi32>
    %cst_11 = arith.constant 1.000000e+00 : f32
    %cst_12 = arith.constant 0.000000e+00 : f32
    %20 = vector.broadcast %cst_11 : f32 to vector<16x16xf32>
    %21 = vector.broadcast %cst_12 : f32 to vector<16x16xf32>
    %22 = arith.select %19, %20, %21 : vector<16x16xi1>, vector<16x16xf32>
    %23 = arith.truncf %22 : vector<16x16xf32> to vector<16x16xbf16>
    %c0_13 = arith.constant 0 : index
    %c0_14 = arith.constant 0 : index
    %24 = vector.load %arg2[%c0_13, %c0_14] : memref<16x1xf32, #tpu.memory_space<vmem>>, vector<16x1xf32>
    %cst_15 = arith.constant 1.000000e-30 : f32
    %25 = vector.broadcast %cst_15 : f32 to vector<16x1xf32>
    %26 = arith.maximumf %24, %25 : vector<16x1xf32>
    %27 = math.log %26 : vector<16x1xf32>
    %28 = vector.extract_strided_slice %13 {offsets = [0, 0], sizes = [16, 256], strides = [1, 1]} : vector<16x1536xf32> to vector<16x256xf32>
    %29 = vector.extract_strided_slice %13 {offsets = [0, 256], sizes = [16, 256], strides = [1, 1]} : vector<16x1536xf32> to vector<16x256xf32>
    %c0_16 = arith.constant 0 : index
    %c0_17 = arith.constant 0 : index
    %30 = vector.load %arg6[%c0_16, %c0_17] : memref<3x256xf32, #tpu.memory_space<vmem>>, vector<1x256xf32>
    %31 = vector.broadcast %30 : vector<1x256xf32> to vector<16x256xf32>
    %32 = arith.mulf %28, %31 : vector<16x256xf32>
    %cst_18 = arith.constant dense<0.000000e+00> : vector<16xf32>
    %33 = vector.multi_reduction <add>, %32, %cst_18 [1] : vector<16x256xf32> to vector<16xf32>
    %34 = vector.shape_cast %33 : vector<16xf32> to vector<16x1xf32>
    %c0_19 = arith.constant 0 : index
    %c0_20 = arith.constant 0 : index
    %35 = vector.load %arg7[%c0_19, %c0_20] : memref<3x1xf32, #tpu.memory_space<vmem>>, vector<1x1xf32>
    %36 = vector.broadcast %35 : vector<1x1xf32> to vector<16x1xf32>
    %37 = arith.addf %34, %36 : vector<16x1xf32>
    %38 = arith.truncf %29 : vector<16x256xf32> to vector<16x256xbf16>
    %c0_21 = arith.constant 0 : index
    %c0_22 = arith.constant 0 : index
    %c0_23 = arith.constant 0 : index
    %39 = vector.load %arg8[%c0_21, %c0_22, %c0_23] : memref<3x256x65xbf16, #tpu.memory_space<vmem>>, vector<1x256x65xbf16>
    %40 = vector.shape_cast %39 : vector<1x256x65xbf16> to vector<256x65xbf16>
    %cst_24 = arith.constant dense<0.000000e+00> : vector<16x65xf32>
    %41 = tpu.matmul %38, %40, %cst_24 {dimension_numbers = #tpu.dot_dimension_numbers<[1], [0], [0], [1], [0, 0, 1, 1], [], []>} : vector<16x256xbf16>, vector<256x65xbf16>, vector<16x65xf32> -> vector<16x65xf32>
    %c0_25 = arith.constant 0 : index
    %c0_26 = arith.constant 0 : index
    %42 = vector.load %arg9[%c0_25, %c0_26] : memref<3x65xf32, #tpu.memory_space<vmem>>, vector<1x65xf32>
    %43 = vector.broadcast %42 : vector<1x65xf32> to vector<16x65xf32>
    %44 = arith.addf %41, %43 : vector<16x65xf32>
    %c0_27 = arith.constant 0 : index
    %c0_28 = arith.constant 0 : index
    %45 = vector.load %arg13[%c0_27, %c0_28] : memref<3x16xf32, #tpu.memory_space<vmem>>, vector<1x16xf32>
    %cst_29 = arith.constant -1.000000e+30 : f32
    %46 = vector.shape_cast %37 : vector<16x1xf32> to vector<16x1xf32>
    %47 = vector.broadcast %46 : vector<16x1xf32> to vector<16x16xf32>
    %48 = vector.broadcast %cst_29 : f32 to vector<16x16xf32>
    %49 = arith.select %19, %47, %48 : vector<16x16xi1>, vector<16x16xf32>
    %cst_30 = arith.constant dense<0xFF800000> : vector<16xf32>
    %50 = vector.multi_reduction <maximumf>, %49, %cst_30 [0] : vector<16x16xf32> to vector<16xf32>
    %51 = vector.shape_cast %50 : vector<16xf32> to vector<1x16xf32>
    %52 = arith.maximumf %45, %51 : vector<1x16xf32>
    %53 = arith.subf %45, %52 : vector<1x16xf32>
    %54 = math.exp %53 : vector<1x16xf32>
    %cst_31 = arith.constant 0.000000e+00 : f32
    %55 = vector.shape_cast %52 : vector<1x16xf32> to vector<1x16xf32>
    %56 = vector.broadcast %55 : vector<1x16xf32> to vector<16x16xf32>
    %57 = vector.broadcast %cst_31 : f32 to vector<16x16xf32>
    %58 = arith.select %19, %56, %57 : vector<16x16xi1>, vector<16x16xf32>
    %cst_32 = arith.constant dense<0.000000e+00> : vector<16xf32>
    %59 = vector.multi_reduction <add>, %58, %cst_32 [1] : vector<16x16xf32> to vector<16xf32>
    %60 = vector.shape_cast %59 : vector<16xf32> to vector<16x1xf32>
    %c0_33 = arith.constant 0 : index
    %c0_34 = arith.constant 0 : index
    %61 = vector.load %arg10[%c0_33, %c0_34] : memref<3x1xf32, #tpu.memory_space<vmem>>, vector<1x1xf32>
    %62 = vector.broadcast %61 : vector<1x1xf32> to vector<16x1xf32>
    %63 = arith.mulf %62, %27 : vector<16x1xf32>
    %64 = arith.addf %63, %37 : vector<16x1xf32>
    %65 = arith.subf %64, %60 : vector<16x1xf32>
    %66 = math.exp %65 : vector<16x1xf32>
    %cst_35 = arith.constant 0.000000e+00 : f32
    %67 = vector.broadcast %cst_35 : f32 to vector<16x1xf32>
    %68 = arith.select %16, %66, %67 : vector<16x1xi1>, vector<16x1xf32>
    %69 = vector.broadcast %68 : vector<16x1xf32> to vector<16x65xf32>
    %70 = arith.mulf %69, %44 : vector<16x65xf32>
    %71 = arith.truncf %70 : vector<16x65xf32> to vector<16x65xbf16>
    %cst_36 = arith.constant dense<0.000000e+00> : vector<65x16xf32>
    %72 = tpu.matmul %71, %23, %cst_36 {dimension_numbers = #tpu.dot_dimension_numbers<[0], [0], [1], [1], [0, 1, 1, 1], [], []>} : vector<16x65xbf16>, vector<16x16xbf16>, vector<65x16xf32> -> vector<65x16xf32>
    %c0_37 = arith.constant 0 : index
    %c0_38 = arith.constant 0 : index
    %c0_39 = arith.constant 0 : index
    %73 = vector.load %arg14[%c0_37, %c0_38, %c0_39] : memref<3x65x16xf32, #tpu.memory_space<vmem>>, vector<1x65x16xf32>
    %74 = vector.shape_cast %73 : vector<1x65x16xf32> to vector<65x16xf32>
    %75 = vector.broadcast %54 : vector<1x16xf32> to vector<65x16xf32>
    %76 = arith.mulf %74, %75 : vector<65x16xf32>
    %77 = arith.addf %76, %72 : vector<65x16xf32>
    %c0_40 = arith.constant 0 : index
    %c0_41 = arith.constant 0 : index
    %c0_42 = arith.constant 0 : index
    %78 = vector.load %arg14[%c0_40, %c0_41, %c0_42] : memref<3x65x16xf32, #tpu.memory_space<vmem>>, vector<1x65x16xf32>
    %79 = vector.shape_cast %78 : vector<1x65x16xf32> to vector<65x16xf32>
    %80 = vector.shape_cast %77 : vector<65x16xf32> to vector<1x65x16xf32>
    tpu.vector_store %arg14[%c0_40, %c0_41, %c0_42], %80 {strides = array<i32>} : memref<3x65x16xf32, #tpu.memory_space<vmem>>, vector<1x65x16xf32>,
    %c0_43 = arith.constant 0 : index
    %c0_44 = arith.constant 0 : index
    %81 = vector.load %arg13[%c0_43, %c0_44] : memref<3x16xf32, #tpu.memory_space<vmem>>, vector<1x16xf32>
    tpu.vector_store %arg13[%c0_43, %c0_44], %52 {strides = array<i32>} : memref<3x16xf32, #tpu.memory_space<vmem>>, vector<1x16xf32>,
    %82 = vector.extract_strided_slice %13 {offsets = [0, 512], sizes = [16, 256], strides = [1, 1]} : vector<16x1536xf32> to vector<16x256xf32>
    %83 = vector.extract_strided_slice %13 {offsets = [0, 768], sizes = [16, 256], strides = [1, 1]} : vector<16x1536xf32> to vector<16x256xf32>
    %c1 = arith.constant 1 : index
    %c0_45 = arith.constant 0 : index
    %84 = vector.load %arg6[%c1, %c0_45] : memref<3x256xf32, #tpu.memory_space<vmem>>, vector<1x256xf32>
    %85 = vector.broadcast %84 : vector<1x256xf32> to vector<16x256xf32>
    %86 = arith.mulf %82, %85 : vector<16x256xf32>
    %cst_46 = arith.constant dense<0.000000e+00> : vector<16xf32>
    %87 = vector.multi_reduction <add>, %86, %cst_46 [1] : vector<16x256xf32> to vector<16xf32>
    %88 = vector.shape_cast %87 : vector<16xf32> to vector<16x1xf32>
    %c1_47 = arith.constant 1 : index
    %c0_48 = arith.constant 0 : index
    %89 = vector.load %arg7[%c1_47, %c0_48] : memref<3x1xf32, #tpu.memory_space<vmem>>, vector<1x1xf32>
    %90 = vector.broadcast %89 : vector<1x1xf32> to vector<16x1xf32>
    %91 = arith.addf %88, %90 : vector<16x1xf32>
    %92 = arith.truncf %83 : vector<16x256xf32> to vector<16x256xbf16>
    %c1_49 = arith.constant 1 : index
    %c0_50 = arith.constant 0 : index
    %c0_51 = arith.constant 0 : index
    %93 = vector.load %arg8[%c1_49, %c0_50, %c0_51] : memref<3x256x65xbf16, #tpu.memory_space<vmem>>, vector<1x256x65xbf16>
    %94 = vector.shape_cast %93 : vector<1x256x65xbf16> to vector<256x65xbf16>
    %cst_52 = arith.constant dense<0.000000e+00> : vector<16x65xf32>
    %95 = tpu.matmul %92, %94, %cst_52 {dimension_numbers = #tpu.dot_dimension_numbers<[1], [0], [0], [1], [0, 0, 1, 1], [], []>} : vector<16x256xbf16>, vector<256x65xbf16>, vector<16x65xf32> -> vector<16x65xf32>
    %c1_53 = arith.constant 1 : index
    %c0_54 = arith.constant 0 : index
    %96 = vector.load %arg9[%c1_53, %c0_54] : memref<3x65xf32, #tpu.memory_space<vmem>>, vector<1x65xf32>
    %97 = vector.broadcast %96 : vector<1x65xf32> to vector<16x65xf32>
    %98 = arith.addf %95, %97 : vector<16x65xf32>
    %c1_55 = arith.constant 1 : index
    %c0_56 = arith.constant 0 : index
    %99 = vector.load %arg13[%c1_55, %c0_56] : memref<3x16xf32, #tpu.memory_space<vmem>>, vector<1x16xf32>
    %cst_57 = arith.constant -1.000000e+30 : f32
    %100 = vector.shape_cast %91 : vector<16x1xf32> to vector<16x1xf32>
    %101 = vector.broadcast %100 : vector<16x1xf32> to vector<16x16xf32>
    %102 = vector.broadcast %cst_57 : f32 to vector<16x16xf32>
    %103 = arith.select %19, %101, %102 : vector<16x16xi1>, vector<16x16xf32>
    %cst_58 = arith.constant dense<0xFF800000> : vector<16xf32>
    %104 = vector.multi_reduction <maximumf>, %103, %cst_58 [0] : vector<16x16xf32> to vector<16xf32>
    %105 = vector.shape_cast %104 : vector<16xf32> to vector<1x16xf32>
    %106 = arith.maximumf %99, %105 : vector<1x16xf32>
    %107 = arith.subf %99, %106 : vector<1x16xf32>
    %108 = math.exp %107 : vector<1x16xf32>
    %cst_59 = arith.constant 0.000000e+00 : f32
    %109 = vector.shape_cast %106 : vector<1x16xf32> to vector<1x16xf32>
    %110 = vector.broadcast %109 : vector<1x16xf32> to vector<16x16xf32>
    %111 = vector.broadcast %cst_59 : f32 to vector<16x16xf32>
    %112 = arith.select %19, %110, %111 : vector<16x16xi1>, vector<16x16xf32>
    %cst_60 = arith.constant dense<0.000000e+00> : vector<16xf32>
    %113 = vector.multi_reduction <add>, %112, %cst_60 [1] : vector<16x16xf32> to vector<16xf32>
    %114 = vector.shape_cast %113 : vector<16xf32> to vector<16x1xf32>
    %c1_61 = arith.constant 1 : index
    %c0_62 = arith.constant 0 : index
    %115 = vector.load %arg10[%c1_61, %c0_62] : memref<3x1xf32, #tpu.memory_space<vmem>>, vector<1x1xf32>
    %116 = vector.broadcast %115 : vector<1x1xf32> to vector<16x1xf32>
    %117 = arith.mulf %116, %27 : vector<16x1xf32>
    %118 = arith.addf %117, %91 : vector<16x1xf32>
    %119 = arith.subf %118, %114 : vector<16x1xf32>
    %120 = math.exp %119 : vector<16x1xf32>
    %cst_63 = arith.constant 0.000000e+00 : f32
    %121 = vector.broadcast %cst_63 : f32 to vector<16x1xf32>
    %122 = arith.select %16, %120, %121 : vector<16x1xi1>, vector<16x1xf32>
    %123 = vector.broadcast %122 : vector<16x1xf32> to vector<16x65xf32>
    %124 = arith.mulf %123, %98 : vector<16x65xf32>
    %125 = arith.truncf %124 : vector<16x65xf32> to vector<16x65xbf16>
    %cst_64 = arith.constant dense<0.000000e+00> : vector<65x16xf32>
    %126 = tpu.matmul %125, %23, %cst_64 {dimension_numbers = #tpu.dot_dimension_numbers<[0], [0], [1], [1], [0, 1, 1, 1], [], []>} : vector<16x65xbf16>, vector<16x16xbf16>, vector<65x16xf32> -> vector<65x16xf32>
    %c1_65 = arith.constant 1 : index
    %c0_66 = arith.constant 0 : index
    %c0_67 = arith.constant 0 : index
    %127 = vector.load %arg14[%c1_65, %c0_66, %c0_67] : memref<3x65x16xf32, #tpu.memory_space<vmem>>, vector<1x65x16xf32>
    %128 = vector.shape_cast %127 : vector<1x65x16xf32> to vector<65x16xf32>
    %129 = vector.broadcast %108 : vector<1x16xf32> to vector<65x16xf32>
    %130 = arith.mulf %128, %129 : vector<65x16xf32>
    %131 = arith.addf %130, %126 : vector<65x16xf32>
    %c1_68 = arith.constant 1 : index
    %c0_69 = arith.constant 0 : index
    %c0_70 = arith.constant 0 : index
    %132 = vector.load %arg14[%c1_68, %c0_69, %c0_70] : memref<3x65x16xf32, #tpu.memory_space<vmem>>, vector<1x65x16xf32>
    %133 = vector.shape_cast %132 : vector<1x65x16xf32> to vector<65x16xf32>
    %134 = vector.shape_cast %131 : vector<65x16xf32> to vector<1x65x16xf32>
    tpu.vector_store %arg14[%c1_68, %c0_69, %c0_70], %134 {strides = array<i32>} : memref<3x65x16xf32, #tpu.memory_space<vmem>>, vector<1x65x16xf32>,
    %c1_71 = arith.constant 1 : index
    %c0_72 = arith.constant 0 : index
    %135 = vector.load %arg13[%c1_71, %c0_72] : memref<3x16xf32, #tpu.memory_space<vmem>>, vector<1x16xf32>
    tpu.vector_store %arg13[%c1_71, %c0_72], %106 {strides = array<i32>} : memref<3x16xf32, #tpu.memory_space<vmem>>, vector<1x16xf32>,
    %136 = vector.extract_strided_slice %13 {offsets = [0, 1024], sizes = [16, 256], strides = [1, 1]} : vector<16x1536xf32> to vector<16x256xf32>
    %137 = vector.extract_strided_slice %13 {offsets = [0, 1280], sizes = [16, 256], strides = [1, 1]} : vector<16x1536xf32> to vector<16x256xf32>
    %c2 = arith.constant 2 : index
    %c0_73 = arith.constant 0 : index
    %138 = vector.load %arg6[%c2, %c0_73] : memref<3x256xf32, #tpu.memory_space<vmem>>, vector<1x256xf32>
    %139 = vector.broadcast %138 : vector<1x256xf32> to vector<16x256xf32>
    %140 = arith.mulf %136, %139 : vector<16x256xf32>
    %cst_74 = arith.constant dense<0.000000e+00> : vector<16xf32>
    %141 = vector.multi_reduction <add>, %140, %cst_74 [1] : vector<16x256xf32> to vector<16xf32>
    %142 = vector.shape_cast %141 : vector<16xf32> to vector<16x1xf32>
    %c2_75 = arith.constant 2 : index
    %c0_76 = arith.constant 0 : index
    %143 = vector.load %arg7[%c2_75, %c0_76] : memref<3x1xf32, #tpu.memory_space<vmem>>, vector<1x1xf32>
    %144 = vector.broadcast %143 : vector<1x1xf32> to vector<16x1xf32>
    %145 = arith.addf %142, %144 : vector<16x1xf32>
    %146 = arith.truncf %137 : vector<16x256xf32> to vector<16x256xbf16>
    %c2_77 = arith.constant 2 : index
    %c0_78 = arith.constant 0 : index
    %c0_79 = arith.constant 0 : index
    %147 = vector.load %arg8[%c2_77, %c0_78, %c0_79] : memref<3x256x65xbf16, #tpu.memory_space<vmem>>, vector<1x256x65xbf16>
    %148 = vector.shape_cast %147 : vector<1x256x65xbf16> to vector<256x65xbf16>
    %cst_80 = arith.constant dense<0.000000e+00> : vector<16x65xf32>
    %149 = tpu.matmul %146, %148, %cst_80 {dimension_numbers = #tpu.dot_dimension_numbers<[1], [0], [0], [1], [0, 0, 1, 1], [], []>} : vector<16x256xbf16>, vector<256x65xbf16>, vector<16x65xf32> -> vector<16x65xf32>
    %c2_81 = arith.constant 2 : index
    %c0_82 = arith.constant 0 : index
    %150 = vector.load %arg9[%c2_81, %c0_82] : memref<3x65xf32, #tpu.memory_space<vmem>>, vector<1x65xf32>
    %151 = vector.broadcast %150 : vector<1x65xf32> to vector<16x65xf32>
    %152 = arith.addf %149, %151 : vector<16x65xf32>
    %c2_83 = arith.constant 2 : index
    %c0_84 = arith.constant 0 : index
    %153 = vector.load %arg13[%c2_83, %c0_84] : memref<3x16xf32, #tpu.memory_space<vmem>>, vector<1x16xf32>
    %cst_85 = arith.constant -1.000000e+30 : f32
    %154 = vector.shape_cast %145 : vector<16x1xf32> to vector<16x1xf32>
    %155 = vector.broadcast %154 : vector<16x1xf32> to vector<16x16xf32>
    %156 = vector.broadcast %cst_85 : f32 to vector<16x16xf32>
    %157 = arith.select %19, %155, %156 : vector<16x16xi1>, vector<16x16xf32>
    %cst_86 = arith.constant dense<0xFF800000> : vector<16xf32>
    %158 = vector.multi_reduction <maximumf>, %157, %cst_86 [0] : vector<16x16xf32> to vector<16xf32>
    %159 = vector.shape_cast %158 : vector<16xf32> to vector<1x16xf32>
    %160 = arith.maximumf %153, %159 : vector<1x16xf32>
    %161 = arith.subf %153, %160 : vector<1x16xf32>
    %162 = math.exp %161 : vector<1x16xf32>
    %cst_87 = arith.constant 0.000000e+00 : f32
    %163 = vector.shape_cast %160 : vector<1x16xf32> to vector<1x16xf32>
    %164 = vector.broadcast %163 : vector<1x16xf32> to vector<16x16xf32>
    %165 = vector.broadcast %cst_87 : f32 to vector<16x16xf32>
    %166 = arith.select %19, %164, %165 : vector<16x16xi1>, vector<16x16xf32>
    %cst_88 = arith.constant dense<0.000000e+00> : vector<16xf32>
    %167 = vector.multi_reduction <add>, %166, %cst_88 [1] : vector<16x16xf32> to vector<16xf32>
    %168 = vector.shape_cast %167 : vector<16xf32> to vector<16x1xf32>
    %c2_89 = arith.constant 2 : index
    %c0_90 = arith.constant 0 : index
    %169 = vector.load %arg10[%c2_89, %c0_90] : memref<3x1xf32, #tpu.memory_space<vmem>>, vector<1x1xf32>
    %170 = vector.broadcast %169 : vector<1x1xf32> to vector<16x1xf32>
    %171 = arith.mulf %170, %27 : vector<16x1xf32>
    %172 = arith.addf %171, %145 : vector<16x1xf32>
    %173 = arith.subf %172, %168 : vector<16x1xf32>
    %174 = math.exp %173 : vector<16x1xf32>
    %cst_91 = arith.constant 0.000000e+00 : f32
    %175 = vector.broadcast %cst_91 : f32 to vector<16x1xf32>
    %176 = arith.select %16, %174, %175 : vector<16x1xi1>, vector<16x1xf32>
    %177 = vector.broadcast %176 : vector<16x1xf32> to vector<16x65xf32>
    %178 = arith.mulf %177, %152 : vector<16x65xf32>
    %179 = arith.truncf %178 : vector<16x65xf32> to vector<16x65xbf16>
    %cst_92 = arith.constant dense<0.000000e+00> : vector<65x16xf32>
    %180 = tpu.matmul %179, %23, %cst_92 {dimension_numbers = #tpu.dot_dimension_numbers<[0], [0], [1], [1], [0, 1, 1, 1], [], []>} : vector<16x65xbf16>, vector<16x16xbf16>, vector<65x16xf32> -> vector<65x16xf32>
    %c2_93 = arith.constant 2 : index
    %c0_94 = arith.constant 0 : index
    %c0_95 = arith.constant 0 : index
    %181 = vector.load %arg14[%c2_93, %c0_94, %c0_95] : memref<3x65x16xf32, #tpu.memory_space<vmem>>, vector<1x65x16xf32>
    %182 = vector.shape_cast %181 : vector<1x65x16xf32> to vector<65x16xf32>
    %183 = vector.broadcast %162 : vector<1x16xf32> to vector<65x16xf32>
    %184 = arith.mulf %182, %183 : vector<65x16xf32>
    %185 = arith.addf %184, %180 : vector<65x16xf32>
    %c2_96 = arith.constant 2 : index
    %c0_97 = arith.constant 0 : index
    %c0_98 = arith.constant 0 : index
    %186 = vector.load %arg14[%c2_96, %c0_97, %c0_98] : memref<3x65x16xf32, #tpu.memory_space<vmem>>, vector<1x65x16xf32>
    %187 = vector.shape_cast %186 : vector<1x65x16xf32> to vector<65x16xf32>
    %188 = vector.shape_cast %185 : vector<65x16xf32> to vector<1x65x16xf32>
    tpu.vector_store %arg14[%c2_96, %c0_97, %c0_98], %188 {strides = array<i32>} : memref<3x65x16xf32, #tpu.memory_space<vmem>>, vector<1x65x16xf32>,
    %c2_99 = arith.constant 2 : index
    %c0_100 = arith.constant 0 : index
    %189 = vector.load %arg13[%c2_99, %c0_100] : memref<3x16xf32, #tpu.memory_space<vmem>>, vector<1x16xf32>
    tpu.vector_store %arg13[%c2_99, %c0_100], %160 {strides = array<i32>} : memref<3x16xf32, #tpu.memory_space<vmem>>, vector<1x16xf32>,
    %c1_i32 = arith.constant 1 : i32
    %190 = arith.cmpi eq, %arg0, %c1_i32 : i32
    %191 = arith.extui %190 : i1 to i32
    %c0_i32_101 = arith.constant 0 : i32
    %192 = arith.cmpi ne, %191, %c0_i32_101 : i32
    scf.if %192 {
      %cst_102 = arith.constant 0.000000e+00 : f32
      %193 = vector.broadcast %cst_102 : f32 to vector<64x16xf32>
      %c0_103 = arith.constant 0 : index
      %c0_104 = arith.constant 0 : index
      %c0_105 = arith.constant 0 : index
      %194 = vector.load %arg14[%c0_103, %c0_104, %c0_105] : memref<3x65x16xf32, #tpu.memory_space<vmem>>, vector<1x65x16xf32>
      %195 = vector.shape_cast %194 : vector<1x65x16xf32> to vector<65x16xf32>
      %196 = vector.extract_strided_slice %195 {offsets = [64, 0], sizes = [1, 16], strides = [1, 1]} : vector<65x16xf32> to vector<1x16xf32>
      %cst_106 = arith.constant 1.000000e-10 : f32
      %197 = vector.broadcast %cst_106 : f32 to vector<1x16xf32>
      %198 = arith.addf %196, %197 : vector<1x16xf32>
      %199 = tpu.reciprocal %198 {approx = true} : vector<1x16xf32> -> vector<1x16xf32>
      %200 = vector.extract_strided_slice %195 {offsets = [0, 0], sizes = [64, 16], strides = [1, 1]} : vector<65x16xf32> to vector<64x16xf32>
      %201 = vector.broadcast %199 : vector<1x16xf32> to vector<64x16xf32>
      %202 = arith.mulf %200, %201 : vector<64x16xf32>
      %203 = arith.addf %193, %202 : vector<64x16xf32>
      %c1_107 = arith.constant 1 : index
      %c0_108 = arith.constant 0 : index
      %c0_109 = arith.constant 0 : index
      %204 = vector.load %arg14[%c1_107, %c0_108, %c0_109] : memref<3x65x16xf32, #tpu.memory_space<vmem>>, vector<1x65x16xf32>
      %205 = vector.shape_cast %204 : vector<1x65x16xf32> to vector<65x16xf32>
      %206 = vector.extract_strided_slice %205 {offsets = [64, 0], sizes = [1, 16], strides = [1, 1]} : vector<65x16xf32> to vector<1x16xf32>
      %cst_110 = arith.constant 1.000000e-10 : f32
      %207 = vector.broadcast %cst_110 : f32 to vector<1x16xf32>
      %208 = arith.addf %206, %207 : vector<1x16xf32>
      %209 = tpu.reciprocal %208 {approx = true} : vector<1x16xf32> -> vector<1x16xf32>
      %210 = vector.extract_strided_slice %205 {offsets = [0, 0], sizes = [64, 16], strides = [1, 1]} : vector<65x16xf32> to vector<64x16xf32>
      %211 = vector.broadcast %209 : vector<1x16xf32> to vector<64x16xf32>
      %212 = arith.mulf %210, %211 : vector<64x16xf32>
      %213 = arith.addf %203, %212 : vector<64x16xf32>
      %c2_111 = arith.constant 2 : index
      %c0_112 = arith.constant 0 : index
      %c0_113 = arith.constant 0 : index
      %214 = vector.load %arg14[%c2_111, %c0_112, %c0_113] : memref<3x65x16xf32, #tpu.memory_space<vmem>>, vector<1x65x16xf32>
      %215 = vector.shape_cast %214 : vector<1x65x16xf32> to vector<65x16xf32>
      %216 = vector.extract_strided_slice %215 {offsets = [64, 0], sizes = [1, 16], strides = [1, 1]} : vector<65x16xf32> to vector<1x16xf32>
      %cst_114 = arith.constant 1.000000e-10 : f32
      %217 = vector.broadcast %cst_114 : f32 to vector<1x16xf32>
      %218 = arith.addf %216, %217 : vector<1x16xf32>
      %219 = tpu.reciprocal %218 {approx = true} : vector<1x16xf32> -> vector<1x16xf32>
      %220 = vector.extract_strided_slice %215 {offsets = [0, 0], sizes = [64, 16], strides = [1, 1]} : vector<65x16xf32> to vector<64x16xf32>
      %221 = vector.broadcast %219 : vector<1x16xf32> to vector<64x16xf32>
      %222 = arith.mulf %220, %221 : vector<64x16xf32>
      %223 = arith.addf %213, %222 : vector<64x16xf32>
      %224 = tpu.iota {dimensions = array<i32: 0>} : vector<64x64xi32>
      %225 = tpu.iota {dimensions = array<i32: 1>} : vector<64x64xi32>
      %226 = arith.cmpi eq, %224, %225 : vector<64x64xi32>
      %227 = arith.extui %226 : vector<64x64xi1> to vector<64x64xi32>
      %228 = arith.sitofp %227 : vector<64x64xi32> to vector<64x64xf32>
      %cst_115 = arith.constant dense<0.000000e+00> : vector<16x64xf32>
      %229 = tpu.matmul %223, %228, %cst_115 {dimension_numbers = #tpu.dot_dimension_numbers<[0], [0], [1], [1], [0, 1, 1, 1], [], []>} : vector<64x16xf32>, vector<64x64xf32>, vector<16x64xf32> -> vector<16x64xf32>
      %cst_116 = arith.constant 0.333333343 : f32
      %230 = vector.broadcast %cst_116 : f32 to vector<16x64xf32>
      %231 = arith.mulf %229, %230 : vector<16x64xf32>
      %c0_117 = arith.constant 0 : index
      %c0_118 = arith.constant 0 : index
      %232 = vector.load %arg11[%c0_117, %c0_118] : memref<16x64xf32, #tpu.memory_space<vmem>>, vector<16x64xf32>
      %233 = arith.addf %231, %232 : vector<16x64xf32>
      %c0_119 = arith.constant 0 : index
      %c0_120 = arith.constant 0 : index
      %234 = vector.load %arg12[%c0_119, %c0_120] : memref<16x64xf32, #tpu.memory_space<vmem>>, vector<16x64xf32>
      tpu.vector_store %arg12[%c0_119, %c0_120], %233 {strides = array<i32>} : memref<16x64xf32, #tpu.memory_space<vmem>>, vector<16x64xf32>,
    } else {
    }
    return
  }
  func.func @transform_0(%arg0: i32) -> (i32, i32) {
    %c0_i32 = arith.constant 0 : i32
    %c0_i32_0 = arith.constant 0 : i32
    return %arg0, %c0_i32 : i32, i32
  }
  func.func @transform_1(%arg0: i32) -> (i32, i32) {
    %c0_i32 = arith.constant 0 : i32
    %c0_i32_0 = arith.constant 0 : i32
    return %arg0, %c0_i32 : i32, i32
  }
  func.func @transform_2(%arg0: i32) -> (i32, i32) {
    %c0_i32 = arith.constant 0 : i32
    %c0_i32_0 = arith.constant 0 : i32
    return %arg0, %c0_i32 : i32, i32
  }
  func.func @transform_3(%arg0: i32) -> (i32, i32) {
    %c0_i32 = arith.constant 0 : i32
    %c0_i32_0 = arith.constant 0 : i32
    %c0_i32_1 = arith.constant 0 : i32
    return %c0_i32, %c0_i32_0 : i32, i32
  }
  func.func @transform_4(%arg0: i32) -> (i32, i32) {
    %c0_i32 = arith.constant 0 : i32
    %c0_i32_0 = arith.constant 0 : i32
    %c0_i32_1 = arith.constant 0 : i32
    return %c0_i32, %c0_i32_0 : i32, i32
  }
  func.func @transform_5(%arg0: i32) -> (i32, i32) {
    %c0_i32 = arith.constant 0 : i32
    %c0_i32_0 = arith.constant 0 : i32
    %c0_i32_1 = arith.constant 0 : i32
    return %c0_i32, %c0_i32_0 : i32, i32
  }
  func.func @transform_6(%arg0: i32) -> (i32, i32) {
    %c0_i32 = arith.constant 0 : i32
    %c0_i32_0 = arith.constant 0 : i32
    %c0_i32_1 = arith.constant 0 : i32
    return %c0_i32, %c0_i32_0 : i32, i32
  }
  func.func @transform_7(%arg0: i32) -> (i32, i32, i32) {
    %c0_i32 = arith.constant 0 : i32
    %c0_i32_0 = arith.constant 0 : i32
    %c0_i32_1 = arith.constant 0 : i32
    %c0_i32_2 = arith.constant 0 : i32
    return %c0_i32, %c0_i32_0, %c0_i32_1 : i32, i32, i32
  }
  func.func @transform_8(%arg0: i32) -> (i32, i32) {
    %c0_i32 = arith.constant 0 : i32
    %c0_i32_0 = arith.constant 0 : i32
    %c0_i32_1 = arith.constant 0 : i32
    return %c0_i32, %c0_i32_0 : i32, i32
  }
  func.func @transform_9(%arg0: i32) -> (i32, i32) {
    %c0_i32 = arith.constant 0 : i32
    %c0_i32_0 = arith.constant 0 : i32
    %c0_i32_1 = arith.constant 0 : i32
    return %c0_i32, %c0_i32_0 : i32, i32
  }
  func.func @transform_10(%arg0: i32) -> (i32, i32) {
    %c0_i32 = arith.constant 0 : i32
    %c0_i32_0 = arith.constant 0 : i32
    %c0_i32_1 = arith.constant 0 : i32
    return %c0_i32, %c0_i32_0 : i32, i32
  }
  func.func @transform_11(%arg0: i32) -> (i32, i32) {
    %c0_i32 = arith.constant 0 : i32
    %c0_i32_0 = arith.constant 0 : i32
    %c0_i32_1 = arith.constant 0 : i32
    return %c0_i32, %c0_i32_0 : i32, i32
  }
}

module attributes {stable_mosaic.version = 11 : i64} {
  func.func @_fused_heads_kernel(%arg0: i32, %arg1: memref<16x1xi32, #tpu.memory_space<vmem>>, %arg2: memref<16x1xf32, #tpu.memory_space<vmem>>, %arg3: memref<16x64xbf16, #tpu.memory_space<vmem>>, %arg4: memref<64x1536xbf16, #tpu.memory_space<vmem>>, %arg5: memref<1x1536xf32, #tpu.memory_space<vmem>>, %arg6: memref<3x256xf32, #tpu.memory_space<vmem>>, %arg7: memref<3x1xf32, #tpu.memory_space<vmem>>, %arg8: memref<3x256x65xbf16, #tpu.memory_space<vmem>>, %arg9: memref<3x65xf32, #tpu.memory_space<vmem>>, %arg10: memref<3x1xf32, #tpu.memory_space<vmem>>, %arg11: memref<3x64xf32, #tpu.memory_space<vmem>>, %arg12: memref<3x3xf32, #tpu.memory_space<vmem>>, %arg13: memref<3x65x3xf32, #tpu.memory_space<vmem>>) attributes {dimension_semantics = [#tpu.dimension_semantics<arbitrary>], iteration_bounds = array<i64: 1>, scalar_prefetch = 0 : i64, scratch_operands = 2 : i64, tpu.core_type = #tpu.core_type<tc>, window_params = [{transform_indices = @transform_0, window_bounds = array<i64: 16, 1>}, {transform_indices = @transform_1, window_bounds = array<i64: 16, 1>}, {transform_indices = @transform_2, window_bounds = array<i64: 16, 64>}, {pipeline_mode = #tpu.pipeline_mode<synchronous>, transform_indices = @transform_3, window_bounds = array<i64: 64, 1536>}, {pipeline_mode = #tpu.pipeline_mode<synchronous>, transform_indices = @transform_4, window_bounds = array<i64: 1, 1536>}, {pipeline_mode = #tpu.pipeline_mode<synchronous>, transform_indices = @transform_5, window_bounds = array<i64: 3, 256>}, {pipeline_mode = #tpu.pipeline_mode<synchronous>, transform_indices = @transform_6, window_bounds = array<i64: 3, 1>}, {pipeline_mode = #tpu.pipeline_mode<synchronous>, transform_indices = @transform_7, window_bounds = array<i64: 3, 256, 65>}, {pipeline_mode = #tpu.pipeline_mode<synchronous>, transform_indices = @transform_8, window_bounds = array<i64: 3, 65>}, {pipeline_mode = #tpu.pipeline_mode<synchronous>, transform_indices = @transform_9, window_bounds = array<i64: 3, 1>}, {pipeline_mode = #tpu.pipeline_mode<synchronous>, transform_indices = @transform_10, window_bounds = array<i64: 3, 64>}]} {
    %c0_i32 = arith.constant 0 : i32
    %0 = arith.cmpi eq, %arg0, %c0_i32 : i32
    %1 = arith.extui %0 : i1 to i32
    %c0_i32_0 = arith.constant 0 : i32
    %2 = arith.cmpi ne, %1, %c0_i32_0 : i32
    scf.if %2 {
      %cst_103 = arith.constant -1.000000e+30 : f32
      %193 = vector.broadcast %cst_103 : f32 to vector<3x3xf32>
      %c0_104 = arith.constant 0 : index
      %c0_105 = arith.constant 0 : index
      %194 = vector.load %arg12[%c0_104, %c0_105] : memref<3x3xf32, #tpu.memory_space<vmem>>, vector<3x3xf32>
      tpu.vector_store %arg12[%c0_104, %c0_105], %193 {strides = array<i32>} : memref<3x3xf32, #tpu.memory_space<vmem>>, vector<3x3xf32>,
      %cst_106 = arith.constant 0.000000e+00 : f32
      %195 = vector.broadcast %cst_106 : f32 to vector<3x65x3xf32>
      %c0_107 = arith.constant 0 : index
      %c0_108 = arith.constant 0 : index
      %c0_109 = arith.constant 0 : index
      %196 = vector.load %arg13[%c0_107, %c0_108, %c0_109] : memref<3x65x3xf32, #tpu.memory_space<vmem>>, vector<3x65x3xf32>
      tpu.vector_store %arg13[%c0_107, %c0_108, %c0_109], %195 {strides = array<i32>} : memref<3x65x3xf32, #tpu.memory_space<vmem>>, vector<3x65x3xf32>,
    } else {
    }
    %c0 = arith.constant 0 : index
    %c0_1 = arith.constant 0 : index
    %3 = vector.load %arg3[%c0, %c0_1] : memref<16x64xbf16, #tpu.memory_space<vmem>>, vector<16x64xbf16>
    %c0_2 = arith.constant 0 : index
    %c0_3 = arith.constant 0 : index
    %4 = vector.load %arg4[%c0_2, %c0_3] : memref<64x1536xbf16, #tpu.memory_space<vmem>>, vector<64x1536xbf16>
    %cst = arith.constant dense<0.000000e+00> : vector<16x1536xf32>
    %5 = tpu.matmul %3, %4, %cst {dimension_numbers = #tpu.dot_dimension_numbers<[1], [0], [0], [1], [0, 0, 1, 1], [], []>} : vector<16x64xbf16>, vector<64x1536xbf16>, vector<16x1536xf32> -> vector<16x1536xf32>
    %c0_4 = arith.constant 0 : index
    %c0_5 = arith.constant 0 : index
    %6 = vector.load %arg5[%c0_4, %c0_5] : memref<1x1536xf32, #tpu.memory_space<vmem>>, vector<1x1536xf32>
    %7 = vector.broadcast %6 : vector<1x1536xf32> to vector<16x1536xf32>
    %8 = arith.addf %5, %7 : vector<16x1536xf32>
    %cst_6 = arith.constant 0.000000e+00 : f32
    %9 = vector.broadcast %cst_6 : f32 to vector<16x1536xf32>
    %10 = arith.cmpf oge, %8, %9 : vector<16x1536xf32>
    %cst_7 = arith.constant 0.00999999977 : f32
    %11 = vector.broadcast %cst_7 : f32 to vector<16x1536xf32>
    %12 = arith.mulf %11, %8 : vector<16x1536xf32>
    %13 = arith.select %10, %8, %12 : vector<16x1536xi1>, vector<16x1536xf32>
    %c0_8 = arith.constant 0 : index
    %c0_9 = arith.constant 0 : index
    %14 = vector.load %arg1[%c0_8, %c0_9] : memref<16x1xi32, #tpu.memory_space<vmem>>, vector<16x1xi32>
    %c0_i32_10 = arith.constant 0 : i32
    %15 = vector.broadcast %c0_i32_10 : i32 to vector<16x1xi32>
    %16 = arith.cmpi sge, %14, %15 : vector<16x1xi32>
    %17 = tpu.iota {dimensions = array<i32: 1>} : vector<16x3xi32>
    %18 = vector.broadcast %14 : vector<16x1xi32> to vector<16x3xi32>
    %19 = arith.cmpi eq, %17, %18 : vector<16x3xi32>
    %cst_11 = arith.constant 1.000000e+00 : f32
    %cst_12 = arith.constant 0.000000e+00 : f32
    %20 = vector.broadcast %cst_11 : f32 to vector<16x3xf32>
    %21 = vector.broadcast %cst_12 : f32 to vector<16x3xf32>
    %22 = arith.select %19, %20, %21 : vector<16x3xi1>, vector<16x3xf32>
    %23 = arith.truncf %22 : vector<16x3xf32> to vector<16x3xbf16>
    %c0_13 = arith.constant 0 : index
    %c0_14 = arith.constant 0 : index
    %24 = vector.load %arg2[%c0_13, %c0_14] : memref<16x1xf32, #tpu.memory_space<vmem>>, vector<16x1xf32>
    %cst_15 = arith.constant 1.000000e-30 : f32
    %25 = vector.broadcast %cst_15 : f32 to vector<16x1xf32>
    %26 = arith.maximumf %24, %25 : vector<16x1xf32>
    %27 = math.log %26 : vector<16x1xf32>
    %28 = vector.extract_strided_slice %13 {offsets = [0, 0], sizes = [16, 256], strides = [1, 1]} : vector<16x1536xf32> to vector<16x256xf32>
    %29 = vector.extract_strided_slice %13 {offsets = [0, 256], sizes = [16, 256], strides = [1, 1]} : vector<16x1536xf32> to vector<16x256xf32>
    %c0_16 = arith.constant 0 : index
    %c0_17 = arith.constant 0 : index
    %30 = vector.load %arg6[%c0_16, %c0_17] : memref<3x256xf32, #tpu.memory_space<vmem>>, vector<1x256xf32>
    %31 = vector.broadcast %30 : vector<1x256xf32> to vector<16x256xf32>
    %32 = arith.mulf %28, %31 : vector<16x256xf32>
    %cst_18 = arith.constant dense<0.000000e+00> : vector<16xf32>
    %33 = vector.multi_reduction <add>, %32, %cst_18 [1] : vector<16x256xf32> to vector<16xf32>
    %34 = vector.shape_cast %33 : vector<16xf32> to vector<16x1xf32>
    %c0_19 = arith.constant 0 : index
    %c0_20 = arith.constant 0 : index
    %35 = vector.load %arg7[%c0_19, %c0_20] : memref<3x1xf32, #tpu.memory_space<vmem>>, vector<1x1xf32>
    %36 = vector.broadcast %35 : vector<1x1xf32> to vector<16x1xf32>
    %37 = arith.addf %34, %36 : vector<16x1xf32>
    %38 = arith.truncf %29 : vector<16x256xf32> to vector<16x256xbf16>
    %c0_21 = arith.constant 0 : index
    %c0_22 = arith.constant 0 : index
    %c0_23 = arith.constant 0 : index
    %39 = vector.load %arg8[%c0_21, %c0_22, %c0_23] : memref<3x256x65xbf16, #tpu.memory_space<vmem>>, vector<1x256x65xbf16>
    %40 = vector.shape_cast %39 : vector<1x256x65xbf16> to vector<256x65xbf16>
    %cst_24 = arith.constant dense<0.000000e+00> : vector<16x65xf32>
    %41 = tpu.matmul %38, %40, %cst_24 {dimension_numbers = #tpu.dot_dimension_numbers<[1], [0], [0], [1], [0, 0, 1, 1], [], []>} : vector<16x256xbf16>, vector<256x65xbf16>, vector<16x65xf32> -> vector<16x65xf32>
    %c0_25 = arith.constant 0 : index
    %c0_26 = arith.constant 0 : index
    %42 = vector.load %arg9[%c0_25, %c0_26] : memref<3x65xf32, #tpu.memory_space<vmem>>, vector<1x65xf32>
    %43 = vector.broadcast %42 : vector<1x65xf32> to vector<16x65xf32>
    %44 = arith.addf %41, %43 : vector<16x65xf32>
    %c0_27 = arith.constant 0 : index
    %c0_28 = arith.constant 0 : index
    %45 = vector.load %arg12[%c0_27, %c0_28] : memref<3x3xf32, #tpu.memory_space<vmem>>, vector<1x3xf32>
    %cst_29 = arith.constant -1.000000e+30 : f32
    %46 = vector.shape_cast %37 : vector<16x1xf32> to vector<16x1xf32>
    %47 = vector.broadcast %46 : vector<16x1xf32> to vector<16x3xf32>
    %48 = vector.broadcast %cst_29 : f32 to vector<16x3xf32>
    %49 = arith.select %19, %47, %48 : vector<16x3xi1>, vector<16x3xf32>
    %cst_30 = arith.constant dense<0xFF800000> : vector<3xf32>
    %50 = vector.multi_reduction <maximumf>, %49, %cst_30 [0] : vector<16x3xf32> to vector<3xf32>
    %51 = vector.shape_cast %50 : vector<3xf32> to vector<1x3xf32>
    %52 = arith.maximumf %45, %51 : vector<1x3xf32>
    %53 = arith.subf %45, %52 : vector<1x3xf32>
    %54 = math.exp %53 : vector<1x3xf32>
    %cst_31 = arith.constant 0.000000e+00 : f32
    %55 = vector.shape_cast %52 : vector<1x3xf32> to vector<1x3xf32>
    %56 = vector.broadcast %55 : vector<1x3xf32> to vector<16x3xf32>
    %57 = vector.broadcast %cst_31 : f32 to vector<16x3xf32>
    %58 = arith.select %19, %56, %57 : vector<16x3xi1>, vector<16x3xf32>
    %cst_32 = arith.constant dense<0.000000e+00> : vector<16xf32>
    %59 = vector.multi_reduction <add>, %58, %cst_32 [1] : vector<16x3xf32> to vector<16xf32>
    %60 = vector.shape_cast %59 : vector<16xf32> to vector<16x1xf32>
    %c0_33 = arith.constant 0 : index
    %c0_34 = arith.constant 0 : index
    %61 = vector.load %arg10[%c0_33, %c0_34] : memref<3x1xf32, #tpu.memory_space<vmem>>, vector<1x1xf32>
    %62 = vector.broadcast %61 : vector<1x1xf32> to vector<16x1xf32>
    %63 = arith.mulf %62, %27 : vector<16x1xf32>
    %64 = arith.addf %63, %37 : vector<16x1xf32>
    %65 = arith.subf %64, %60 : vector<16x1xf32>
    %66 = math.exp %65 : vector<16x1xf32>
    %cst_35 = arith.constant 0.000000e+00 : f32
    %67 = vector.broadcast %cst_35 : f32 to vector<16x1xf32>
    %68 = arith.select %16, %66, %67 : vector<16x1xi1>, vector<16x1xf32>
    %69 = vector.broadcast %68 : vector<16x1xf32> to vector<16x65xf32>
    %70 = arith.mulf %69, %44 : vector<16x65xf32>
    %71 = arith.truncf %70 : vector<16x65xf32> to vector<16x65xbf16>
    %cst_36 = arith.constant dense<0.000000e+00> : vector<65x3xf32>
    %72 = tpu.matmul %71, %23, %cst_36 {dimension_numbers = #tpu.dot_dimension_numbers<[0], [0], [1], [1], [0, 1, 1, 1], [], []>} : vector<16x65xbf16>, vector<16x3xbf16>, vector<65x3xf32> -> vector<65x3xf32>
    %c0_37 = arith.constant 0 : index
    %c0_38 = arith.constant 0 : index
    %c0_39 = arith.constant 0 : index
    %73 = vector.load %arg13[%c0_37, %c0_38, %c0_39] : memref<3x65x3xf32, #tpu.memory_space<vmem>>, vector<1x65x3xf32>
    %74 = vector.shape_cast %73 : vector<1x65x3xf32> to vector<65x3xf32>
    %75 = vector.broadcast %54 : vector<1x3xf32> to vector<65x3xf32>
    %76 = arith.mulf %74, %75 : vector<65x3xf32>
    %77 = arith.addf %76, %72 : vector<65x3xf32>
    %c0_40 = arith.constant 0 : index
    %c0_41 = arith.constant 0 : index
    %c0_42 = arith.constant 0 : index
    %78 = vector.load %arg13[%c0_40, %c0_41, %c0_42] : memref<3x65x3xf32, #tpu.memory_space<vmem>>, vector<1x65x3xf32>
    %79 = vector.shape_cast %78 : vector<1x65x3xf32> to vector<65x3xf32>
    %80 = vector.shape_cast %77 : vector<65x3xf32> to vector<1x65x3xf32>
    tpu.vector_store %arg13[%c0_40, %c0_41, %c0_42], %80 {strides = array<i32>} : memref<3x65x3xf32, #tpu.memory_space<vmem>>, vector<1x65x3xf32>,
    %c0_43 = arith.constant 0 : index
    %c0_44 = arith.constant 0 : index
    %81 = vector.load %arg12[%c0_43, %c0_44] : memref<3x3xf32, #tpu.memory_space<vmem>>, vector<1x3xf32>
    tpu.vector_store %arg12[%c0_43, %c0_44], %52 {strides = array<i32>} : memref<3x3xf32, #tpu.memory_space<vmem>>, vector<1x3xf32>,
    %82 = vector.extract_strided_slice %13 {offsets = [0, 512], sizes = [16, 256], strides = [1, 1]} : vector<16x1536xf32> to vector<16x256xf32>
    %83 = vector.extract_strided_slice %13 {offsets = [0, 768], sizes = [16, 256], strides = [1, 1]} : vector<16x1536xf32> to vector<16x256xf32>
    %c1 = arith.constant 1 : index
    %c0_45 = arith.constant 0 : index
    %84 = vector.load %arg6[%c1, %c0_45] : memref<3x256xf32, #tpu.memory_space<vmem>>, vector<1x256xf32>
    %85 = vector.broadcast %84 : vector<1x256xf32> to vector<16x256xf32>
    %86 = arith.mulf %82, %85 : vector<16x256xf32>
    %cst_46 = arith.constant dense<0.000000e+00> : vector<16xf32>
    %87 = vector.multi_reduction <add>, %86, %cst_46 [1] : vector<16x256xf32> to vector<16xf32>
    %88 = vector.shape_cast %87 : vector<16xf32> to vector<16x1xf32>
    %c1_47 = arith.constant 1 : index
    %c0_48 = arith.constant 0 : index
    %89 = vector.load %arg7[%c1_47, %c0_48] : memref<3x1xf32, #tpu.memory_space<vmem>>, vector<1x1xf32>
    %90 = vector.broadcast %89 : vector<1x1xf32> to vector<16x1xf32>
    %91 = arith.addf %88, %90 : vector<16x1xf32>
    %92 = arith.truncf %83 : vector<16x256xf32> to vector<16x256xbf16>
    %c1_49 = arith.constant 1 : index
    %c0_50 = arith.constant 0 : index
    %c0_51 = arith.constant 0 : index
    %93 = vector.load %arg8[%c1_49, %c0_50, %c0_51] : memref<3x256x65xbf16, #tpu.memory_space<vmem>>, vector<1x256x65xbf16>
    %94 = vector.shape_cast %93 : vector<1x256x65xbf16> to vector<256x65xbf16>
    %cst_52 = arith.constant dense<0.000000e+00> : vector<16x65xf32>
    %95 = tpu.matmul %92, %94, %cst_52 {dimension_numbers = #tpu.dot_dimension_numbers<[1], [0], [0], [1], [0, 0, 1, 1], [], []>} : vector<16x256xbf16>, vector<256x65xbf16>, vector<16x65xf32> -> vector<16x65xf32>
    %c1_53 = arith.constant 1 : index
    %c0_54 = arith.constant 0 : index
    %96 = vector.load %arg9[%c1_53, %c0_54] : memref<3x65xf32, #tpu.memory_space<vmem>>, vector<1x65xf32>
    %97 = vector.broadcast %96 : vector<1x65xf32> to vector<16x65xf32>
    %98 = arith.addf %95, %97 : vector<16x65xf32>
    %c1_55 = arith.constant 1 : index
    %c0_56 = arith.constant 0 : index
    %99 = vector.load %arg12[%c1_55, %c0_56] : memref<3x3xf32, #tpu.memory_space<vmem>>, vector<1x3xf32>
    %cst_57 = arith.constant -1.000000e+30 : f32
    %100 = vector.shape_cast %91 : vector<16x1xf32> to vector<16x1xf32>
    %101 = vector.broadcast %100 : vector<16x1xf32> to vector<16x3xf32>
    %102 = vector.broadcast %cst_57 : f32 to vector<16x3xf32>
    %103 = arith.select %19, %101, %102 : vector<16x3xi1>, vector<16x3xf32>
    %cst_58 = arith.constant dense<0xFF800000> : vector<3xf32>
    %104 = vector.multi_reduction <maximumf>, %103, %cst_58 [0] : vector<16x3xf32> to vector<3xf32>
    %105 = vector.shape_cast %104 : vector<3xf32> to vector<1x3xf32>
    %106 = arith.maximumf %99, %105 : vector<1x3xf32>
    %107 = arith.subf %99, %106 : vector<1x3xf32>
    %108 = math.exp %107 : vector<1x3xf32>
    %cst_59 = arith.constant 0.000000e+00 : f32
    %109 = vector.shape_cast %106 : vector<1x3xf32> to vector<1x3xf32>
    %110 = vector.broadcast %109 : vector<1x3xf32> to vector<16x3xf32>
    %111 = vector.broadcast %cst_59 : f32 to vector<16x3xf32>
    %112 = arith.select %19, %110, %111 : vector<16x3xi1>, vector<16x3xf32>
    %cst_60 = arith.constant dense<0.000000e+00> : vector<16xf32>
    %113 = vector.multi_reduction <add>, %112, %cst_60 [1] : vector<16x3xf32> to vector<16xf32>
    %114 = vector.shape_cast %113 : vector<16xf32> to vector<16x1xf32>
    %c1_61 = arith.constant 1 : index
    %c0_62 = arith.constant 0 : index
    %115 = vector.load %arg10[%c1_61, %c0_62] : memref<3x1xf32, #tpu.memory_space<vmem>>, vector<1x1xf32>
    %116 = vector.broadcast %115 : vector<1x1xf32> to vector<16x1xf32>
    %117 = arith.mulf %116, %27 : vector<16x1xf32>
    %118 = arith.addf %117, %91 : vector<16x1xf32>
    %119 = arith.subf %118, %114 : vector<16x1xf32>
    %120 = math.exp %119 : vector<16x1xf32>
    %cst_63 = arith.constant 0.000000e+00 : f32
    %121 = vector.broadcast %cst_63 : f32 to vector<16x1xf32>
    %122 = arith.select %16, %120, %121 : vector<16x1xi1>, vector<16x1xf32>
    %123 = vector.broadcast %122 : vector<16x1xf32> to vector<16x65xf32>
    %124 = arith.mulf %123, %98 : vector<16x65xf32>
    %125 = arith.truncf %124 : vector<16x65xf32> to vector<16x65xbf16>
    %cst_64 = arith.constant dense<0.000000e+00> : vector<65x3xf32>
    %126 = tpu.matmul %125, %23, %cst_64 {dimension_numbers = #tpu.dot_dimension_numbers<[0], [0], [1], [1], [0, 1, 1, 1], [], []>} : vector<16x65xbf16>, vector<16x3xbf16>, vector<65x3xf32> -> vector<65x3xf32>
    %c1_65 = arith.constant 1 : index
    %c0_66 = arith.constant 0 : index
    %c0_67 = arith.constant 0 : index
    %127 = vector.load %arg13[%c1_65, %c0_66, %c0_67] : memref<3x65x3xf32, #tpu.memory_space<vmem>>, vector<1x65x3xf32>
    %128 = vector.shape_cast %127 : vector<1x65x3xf32> to vector<65x3xf32>
    %129 = vector.broadcast %108 : vector<1x3xf32> to vector<65x3xf32>
    %130 = arith.mulf %128, %129 : vector<65x3xf32>
    %131 = arith.addf %130, %126 : vector<65x3xf32>
    %c1_68 = arith.constant 1 : index
    %c0_69 = arith.constant 0 : index
    %c0_70 = arith.constant 0 : index
    %132 = vector.load %arg13[%c1_68, %c0_69, %c0_70] : memref<3x65x3xf32, #tpu.memory_space<vmem>>, vector<1x65x3xf32>
    %133 = vector.shape_cast %132 : vector<1x65x3xf32> to vector<65x3xf32>
    %134 = vector.shape_cast %131 : vector<65x3xf32> to vector<1x65x3xf32>
    tpu.vector_store %arg13[%c1_68, %c0_69, %c0_70], %134 {strides = array<i32>} : memref<3x65x3xf32, #tpu.memory_space<vmem>>, vector<1x65x3xf32>,
    %c1_71 = arith.constant 1 : index
    %c0_72 = arith.constant 0 : index
    %135 = vector.load %arg12[%c1_71, %c0_72] : memref<3x3xf32, #tpu.memory_space<vmem>>, vector<1x3xf32>
    tpu.vector_store %arg12[%c1_71, %c0_72], %106 {strides = array<i32>} : memref<3x3xf32, #tpu.memory_space<vmem>>, vector<1x3xf32>,
    %136 = vector.extract_strided_slice %13 {offsets = [0, 1024], sizes = [16, 256], strides = [1, 1]} : vector<16x1536xf32> to vector<16x256xf32>
    %137 = vector.extract_strided_slice %13 {offsets = [0, 1280], sizes = [16, 256], strides = [1, 1]} : vector<16x1536xf32> to vector<16x256xf32>
    %c2 = arith.constant 2 : index
    %c0_73 = arith.constant 0 : index
    %138 = vector.load %arg6[%c2, %c0_73] : memref<3x256xf32, #tpu.memory_space<vmem>>, vector<1x256xf32>
    %139 = vector.broadcast %138 : vector<1x256xf32> to vector<16x256xf32>
    %140 = arith.mulf %136, %139 : vector<16x256xf32>
    %cst_74 = arith.constant dense<0.000000e+00> : vector<16xf32>
    %141 = vector.multi_reduction <add>, %140, %cst_74 [1] : vector<16x256xf32> to vector<16xf32>
    %142 = vector.shape_cast %141 : vector<16xf32> to vector<16x1xf32>
    %c2_75 = arith.constant 2 : index
    %c0_76 = arith.constant 0 : index
    %143 = vector.load %arg7[%c2_75, %c0_76] : memref<3x1xf32, #tpu.memory_space<vmem>>, vector<1x1xf32>
    %144 = vector.broadcast %143 : vector<1x1xf32> to vector<16x1xf32>
    %145 = arith.addf %142, %144 : vector<16x1xf32>
    %146 = arith.truncf %137 : vector<16x256xf32> to vector<16x256xbf16>
    %c2_77 = arith.constant 2 : index
    %c0_78 = arith.constant 0 : index
    %c0_79 = arith.constant 0 : index
    %147 = vector.load %arg8[%c2_77, %c0_78, %c0_79] : memref<3x256x65xbf16, #tpu.memory_space<vmem>>, vector<1x256x65xbf16>
    %148 = vector.shape_cast %147 : vector<1x256x65xbf16> to vector<256x65xbf16>
    %cst_80 = arith.constant dense<0.000000e+00> : vector<16x65xf32>
    %149 = tpu.matmul %146, %148, %cst_80 {dimension_numbers = #tpu.dot_dimension_numbers<[1], [0], [0], [1], [0, 0, 1, 1], [], []>} : vector<16x256xbf16>, vector<256x65xbf16>, vector<16x65xf32> -> vector<16x65xf32>
    %c2_81 = arith.constant 2 : index
    %c0_82 = arith.constant 0 : index
    %150 = vector.load %arg9[%c2_81, %c0_82] : memref<3x65xf32, #tpu.memory_space<vmem>>, vector<1x65xf32>
    %151 = vector.broadcast %150 : vector<1x65xf32> to vector<16x65xf32>
    %152 = arith.addf %149, %151 : vector<16x65xf32>
    %c2_83 = arith.constant 2 : index
    %c0_84 = arith.constant 0 : index
    %153 = vector.load %arg12[%c2_83, %c0_84] : memref<3x3xf32, #tpu.memory_space<vmem>>, vector<1x3xf32>
    %cst_85 = arith.constant -1.000000e+30 : f32
    %154 = vector.shape_cast %145 : vector<16x1xf32> to vector<16x1xf32>
    %155 = vector.broadcast %154 : vector<16x1xf32> to vector<16x3xf32>
    %156 = vector.broadcast %cst_85 : f32 to vector<16x3xf32>
    %157 = arith.select %19, %155, %156 : vector<16x3xi1>, vector<16x3xf32>
    %cst_86 = arith.constant dense<0xFF800000> : vector<3xf32>
    %158 = vector.multi_reduction <maximumf>, %157, %cst_86 [0] : vector<16x3xf32> to vector<3xf32>
    %159 = vector.shape_cast %158 : vector<3xf32> to vector<1x3xf32>
    %160 = arith.maximumf %153, %159 : vector<1x3xf32>
    %161 = arith.subf %153, %160 : vector<1x3xf32>
    %162 = math.exp %161 : vector<1x3xf32>
    %cst_87 = arith.constant 0.000000e+00 : f32
    %163 = vector.shape_cast %160 : vector<1x3xf32> to vector<1x3xf32>
    %164 = vector.broadcast %163 : vector<1x3xf32> to vector<16x3xf32>
    %165 = vector.broadcast %cst_87 : f32 to vector<16x3xf32>
    %166 = arith.select %19, %164, %165 : vector<16x3xi1>, vector<16x3xf32>
    %cst_88 = arith.constant dense<0.000000e+00> : vector<16xf32>
    %167 = vector.multi_reduction <add>, %166, %cst_88 [1] : vector<16x3xf32> to vector<16xf32>
    %168 = vector.shape_cast %167 : vector<16xf32> to vector<16x1xf32>
    %c2_89 = arith.constant 2 : index
    %c0_90 = arith.constant 0 : index
    %169 = vector.load %arg10[%c2_89, %c0_90] : memref<3x1xf32, #tpu.memory_space<vmem>>, vector<1x1xf32>
    %170 = vector.broadcast %169 : vector<1x1xf32> to vector<16x1xf32>
    %171 = arith.mulf %170, %27 : vector<16x1xf32>
    %172 = arith.addf %171, %145 : vector<16x1xf32>
    %173 = arith.subf %172, %168 : vector<16x1xf32>
    %174 = math.exp %173 : vector<16x1xf32>
    %cst_91 = arith.constant 0.000000e+00 : f32
    %175 = vector.broadcast %cst_91 : f32 to vector<16x1xf32>
    %176 = arith.select %16, %174, %175 : vector<16x1xi1>, vector<16x1xf32>
    %177 = vector.broadcast %176 : vector<16x1xf32> to vector<16x65xf32>
    %178 = arith.mulf %177, %152 : vector<16x65xf32>
    %179 = arith.truncf %178 : vector<16x65xf32> to vector<16x65xbf16>
    %cst_92 = arith.constant dense<0.000000e+00> : vector<65x3xf32>
    %180 = tpu.matmul %179, %23, %cst_92 {dimension_numbers = #tpu.dot_dimension_numbers<[0], [0], [1], [1], [0, 1, 1, 1], [], []>} : vector<16x65xbf16>, vector<16x3xbf16>, vector<65x3xf32> -> vector<65x3xf32>
    %c2_93 = arith.constant 2 : index
    %c0_94 = arith.constant 0 : index
    %c0_95 = arith.constant 0 : index
    %181 = vector.load %arg13[%c2_93, %c0_94, %c0_95] : memref<3x65x3xf32, #tpu.memory_space<vmem>>, vector<1x65x3xf32>
    %182 = vector.shape_cast %181 : vector<1x65x3xf32> to vector<65x3xf32>
    %183 = vector.broadcast %162 : vector<1x3xf32> to vector<65x3xf32>
    %184 = arith.mulf %182, %183 : vector<65x3xf32>
    %185 = arith.addf %184, %180 : vector<65x3xf32>
    %c2_96 = arith.constant 2 : index
    %c0_97 = arith.constant 0 : index
    %c0_98 = arith.constant 0 : index
    %186 = vector.load %arg13[%c2_96, %c0_97, %c0_98] : memref<3x65x3xf32, #tpu.memory_space<vmem>>, vector<1x65x3xf32>
    %187 = vector.shape_cast %186 : vector<1x65x3xf32> to vector<65x3xf32>
    %188 = vector.shape_cast %185 : vector<65x3xf32> to vector<1x65x3xf32>
    tpu.vector_store %arg13[%c2_96, %c0_97, %c0_98], %188 {strides = array<i32>} : memref<3x65x3xf32, #tpu.memory_space<vmem>>, vector<1x65x3xf32>,
    %c2_99 = arith.constant 2 : index
    %c0_100 = arith.constant 0 : index
    %189 = vector.load %arg12[%c2_99, %c0_100] : memref<3x3xf32, #tpu.memory_space<vmem>>, vector<1x3xf32>
    tpu.vector_store %arg12[%c2_99, %c0_100], %160 {strides = array<i32>} : memref<3x3xf32, #tpu.memory_space<vmem>>, vector<1x3xf32>,
    %c0_i32_101 = arith.constant 0 : i32
    %190 = arith.cmpi eq, %arg0, %c0_i32_101 : i32
    %191 = arith.extui %190 : i1 to i32
    %c0_i32_102 = arith.constant 0 : i32
    %192 = arith.cmpi ne, %191, %c0_i32_102 : i32
    scf.if %192 {
      %cst_103 = arith.constant 0.000000e+00 : f32
      %193 = vector.broadcast %cst_103 : f32 to vector<64x3xf32>
      %c0_104 = arith.constant 0 : index
      %c0_105 = arith.constant 0 : index
      %c0_106 = arith.constant 0 : index
      %194 = vector.load %arg13[%c0_104, %c0_105, %c0_106] : memref<3x65x3xf32, #tpu.memory_space<vmem>>, vector<1x65x3xf32>
      %195 = vector.shape_cast %194 : vector<1x65x3xf32> to vector<65x3xf32>
      %196 = vector.extract_strided_slice %195 {offsets = [64, 0], sizes = [1, 3], strides = [1, 1]} : vector<65x3xf32> to vector<1x3xf32>
      %cst_107 = arith.constant 1.000000e-10 : f32
      %197 = vector.broadcast %cst_107 : f32 to vector<1x3xf32>
      %198 = arith.addf %196, %197 : vector<1x3xf32>
      %199 = tpu.reciprocal %198 {approx = true} : vector<1x3xf32> -> vector<1x3xf32>
      %200 = vector.extract_strided_slice %195 {offsets = [0, 0], sizes = [64, 3], strides = [1, 1]} : vector<65x3xf32> to vector<64x3xf32>
      %201 = vector.broadcast %199 : vector<1x3xf32> to vector<64x3xf32>
      %202 = arith.mulf %200, %201 : vector<64x3xf32>
      %203 = arith.addf %193, %202 : vector<64x3xf32>
      %c1_108 = arith.constant 1 : index
      %c0_109 = arith.constant 0 : index
      %c0_110 = arith.constant 0 : index
      %204 = vector.load %arg13[%c1_108, %c0_109, %c0_110] : memref<3x65x3xf32, #tpu.memory_space<vmem>>, vector<1x65x3xf32>
      %205 = vector.shape_cast %204 : vector<1x65x3xf32> to vector<65x3xf32>
      %206 = vector.extract_strided_slice %205 {offsets = [64, 0], sizes = [1, 3], strides = [1, 1]} : vector<65x3xf32> to vector<1x3xf32>
      %cst_111 = arith.constant 1.000000e-10 : f32
      %207 = vector.broadcast %cst_111 : f32 to vector<1x3xf32>
      %208 = arith.addf %206, %207 : vector<1x3xf32>
      %209 = tpu.reciprocal %208 {approx = true} : vector<1x3xf32> -> vector<1x3xf32>
      %210 = vector.extract_strided_slice %205 {offsets = [0, 0], sizes = [64, 3], strides = [1, 1]} : vector<65x3xf32> to vector<64x3xf32>
      %211 = vector.broadcast %209 : vector<1x3xf32> to vector<64x3xf32>
      %212 = arith.mulf %210, %211 : vector<64x3xf32>
      %213 = arith.addf %203, %212 : vector<64x3xf32>
      %c2_112 = arith.constant 2 : index
      %c0_113 = arith.constant 0 : index
      %c0_114 = arith.constant 0 : index
      %214 = vector.load %arg13[%c2_112, %c0_113, %c0_114] : memref<3x65x3xf32, #tpu.memory_space<vmem>>, vector<1x65x3xf32>
      %215 = vector.shape_cast %214 : vector<1x65x3xf32> to vector<65x3xf32>
      %216 = vector.extract_strided_slice %215 {offsets = [64, 0], sizes = [1, 3], strides = [1, 1]} : vector<65x3xf32> to vector<1x3xf32>
      %cst_115 = arith.constant 1.000000e-10 : f32
      %217 = vector.broadcast %cst_115 : f32 to vector<1x3xf32>
      %218 = arith.addf %216, %217 : vector<1x3xf32>
      %219 = tpu.reciprocal %218 {approx = true} : vector<1x3xf32> -> vector<1x3xf32>
      %220 = vector.extract_strided_slice %215 {offsets = [0, 0], sizes = [64, 3], strides = [1, 1]} : vector<65x3xf32> to vector<64x3xf32>
      %221 = vector.broadcast %219 : vector<1x3xf32> to vector<64x3xf32>
      %222 = arith.mulf %220, %221 : vector<64x3xf32>
      %223 = arith.addf %213, %222 : vector<64x3xf32>
      %224 = tpu.iota {dimensions = array<i32: 0>} : vector<64x64xi32>
      %225 = tpu.iota {dimensions = array<i32: 1>} : vector<64x64xi32>
      %226 = arith.cmpi eq, %224, %225 : vector<64x64xi32>
      %227 = arith.extui %226 : vector<64x64xi1> to vector<64x64xi32>
      %228 = arith.sitofp %227 : vector<64x64xi32> to vector<64x64xf32>
      %cst_116 = arith.constant dense<0.000000e+00> : vector<3x64xf32>
      %229 = tpu.matmul %223, %228, %cst_116 {dimension_numbers = #tpu.dot_dimension_numbers<[0], [0], [1], [1], [0, 1, 1, 1], [], []>} : vector<64x3xf32>, vector<64x64xf32>, vector<3x64xf32> -> vector<3x64xf32>
      %cst_117 = arith.constant 0.333333343 : f32
      %230 = vector.broadcast %cst_117 : f32 to vector<3x64xf32>
      %231 = arith.mulf %229, %230 : vector<3x64xf32>
      %c0_118 = arith.constant 0 : index
      %c0_119 = arith.constant 0 : index
      %232 = vector.load %arg11[%c0_118, %c0_119] : memref<3x64xf32, #tpu.memory_space<vmem>>, vector<3x64xf32>
      tpu.vector_store %arg11[%c0_118, %c0_119], %231 {strides = array<i32>} : memref<3x64xf32, #tpu.memory_space<vmem>>, vector<3x64xf32>,
    } else {
    }
    return
  }
  func.func @transform_0(%arg0: i32) -> (i32, i32) {
    %c0_i32 = arith.constant 0 : i32
    %c0_i32_0 = arith.constant 0 : i32
    return %arg0, %c0_i32 : i32, i32
  }
  func.func @transform_1(%arg0: i32) -> (i32, i32) {
    %c0_i32 = arith.constant 0 : i32
    %c0_i32_0 = arith.constant 0 : i32
    return %arg0, %c0_i32 : i32, i32
  }
  func.func @transform_2(%arg0: i32) -> (i32, i32) {
    %c0_i32 = arith.constant 0 : i32
    %c0_i32_0 = arith.constant 0 : i32
    return %arg0, %c0_i32 : i32, i32
  }
  func.func @transform_3(%arg0: i32) -> (i32, i32) {
    %c0_i32 = arith.constant 0 : i32
    %c0_i32_0 = arith.constant 0 : i32
    %c0_i32_1 = arith.constant 0 : i32
    return %c0_i32, %c0_i32_0 : i32, i32
  }
  func.func @transform_4(%arg0: i32) -> (i32, i32) {
    %c0_i32 = arith.constant 0 : i32
    %c0_i32_0 = arith.constant 0 : i32
    %c0_i32_1 = arith.constant 0 : i32
    return %c0_i32, %c0_i32_0 : i32, i32
  }
  func.func @transform_5(%arg0: i32) -> (i32, i32) {
    %c0_i32 = arith.constant 0 : i32
    %c0_i32_0 = arith.constant 0 : i32
    %c0_i32_1 = arith.constant 0 : i32
    return %c0_i32, %c0_i32_0 : i32, i32
  }
  func.func @transform_6(%arg0: i32) -> (i32, i32) {
    %c0_i32 = arith.constant 0 : i32
    %c0_i32_0 = arith.constant 0 : i32
    %c0_i32_1 = arith.constant 0 : i32
    return %c0_i32, %c0_i32_0 : i32, i32
  }
  func.func @transform_7(%arg0: i32) -> (i32, i32, i32) {
    %c0_i32 = arith.constant 0 : i32
    %c0_i32_0 = arith.constant 0 : i32
    %c0_i32_1 = arith.constant 0 : i32
    %c0_i32_2 = arith.constant 0 : i32
    return %c0_i32, %c0_i32_0, %c0_i32_1 : i32, i32, i32
  }
  func.func @transform_8(%arg0: i32) -> (i32, i32) {
    %c0_i32 = arith.constant 0 : i32
    %c0_i32_0 = arith.constant 0 : i32
    %c0_i32_1 = arith.constant 0 : i32
    return %c0_i32, %c0_i32_0 : i32, i32
  }
  func.func @transform_9(%arg0: i32) -> (i32, i32) {
    %c0_i32 = arith.constant 0 : i32
    %c0_i32_0 = arith.constant 0 : i32
    %c0_i32_1 = arith.constant 0 : i32
    return %c0_i32, %c0_i32_0 : i32, i32
  }
  func.func @transform_10(%arg0: i32) -> (i32, i32) {
    %c0_i32 = arith.constant 0 : i32
    %c0_i32_0 = arith.constant 0 : i32
    %c0_i32_1 = arith.constant 0 : i32
    return %c0_i32, %c0_i32_0 : i32, i32
  }
}

</mosaic_0001>

<llo_original>
// kernel: descriptor_network.5
$region0: #{descriptor_network.5}
  #allocation0 [shape = 'u32[]', space=smem, size = 0x4, offset = 0x4, fixed_abs, tag = 'smem constant byte address 0x4 - core index']
  #allocation1 [shape = 'u32[72,128]{1,0:T(1,128)}', space=vmem, size = 0x9000, scoped, tag = 'internal scratch']
  %s0 = inlined_call_operand.vmem [shape: bf16[16,32], index: 0, kind: input, shape index: {}]
  %s1 = inlined_call_operand.vmem [shape: f32[16,1], index: 1, kind: input, shape index: {}]
  %s2 = inlined_call_operand.vmem [shape: bf16[32,64], index: 2, kind: input, shape index: {}]
  %s3 = inlined_call_operand.vmem [shape: f32[1,64], index: 3, kind: input, shape index: {}]
  %s4 = inlined_call_operand.vmem [shape: f32[16,64], index: 4, kind: output, shape index: {}]
  %s5 = sld [smem:[#allocation0]]
  $region26: #{descriptor_network.5} parent=0
    _
  %s7 = ssub.s32 1, %s5
  %s8 = scalar_select 0, %s7, %s5
  // Predicated region
  $region2: #{descriptor_network.5} parent=0 // pred_check
    _
  $region3: #{descriptor_network.5} parent=0 // pred_check_branch
    %10 = sbr.rel (0) target = $region5
  $region4: #{descriptor_network.5} parent=0 // pred_region
    _
  $region5: #{descriptor_network.5} parent=0 // pred_fallthru
    _
  // Predicated region
  $region6: #{descriptor_network.5} parent=0 // pred_check
    _
  $region7: #{descriptor_network.5} parent=0 // pred_check_branch
    %12 = sbr.rel (0) target = $region9
  $region8: #{descriptor_network.5} parent=0 // pred_region
    _
  $region9: #{descriptor_network.5} parent=0 // pred_fallthru
    _
  // Predicated region
  $region10: #{descriptor_network.5} parent=0 // pred_check
    _
  $region11: #{descriptor_network.5} parent=0 // pred_check_branch
    %14 = sbr.rel (0) target = $region13
  $region12: #{descriptor_network.5} parent=0 // pred_region
    _
  $region13: #{descriptor_network.5} parent=0 // pred_fallthru
    _
  // Predicated region
  $region14: #{descriptor_network.5} parent=0 // pred_check
    _
  $region15: #{descriptor_network.5} parent=0 // pred_check_branch
    %16 = sbr.rel (0) target = $region17
  $region16: #{descriptor_network.5} parent=0 // pred_region
    _
  $region17: #{descriptor_network.5} parent=0 // pred_fallthru
    _
  %v18 = vld [vmem:[%s0] sm:$0xf]
  %v19 = vld [vmem:[%s0 + $0x4] sm:$0xf]
  %v20 = vld [vmem:[%s2] sm:$0xf]
  %v21 = vld [vmem:[%s2 + $0x4] sm:$0xf]
  %v22 = vld [vmem:[%s2 + $0x8] sm:$0xf]
  %v23 = vld [vmem:[%s2 + $0xc] sm:$0xf]
  %v24 = vld [vmem:[%s3] sm:$0x1]
  %v26 = vperm.slane %v24, 0
  %v30 = vunpack.c.l.b16 %v18
  %v31 = vunpack.c.l.b16 %v19
  %v32 = vpack.c.b16 %v31, %v30
  %v37 = vunpack.c.l.b16 %v20
  %v38 = vunpack.c.l.b16 %v21
  %v39 = vunpack.c.l.b16 %v22
  %v40 = vunpack.c.l.b16 %v23
  %v41 = vpack.c.b16 %v38, %v37
  %v42 = vpack.c.b16 %v40, %v39
  %vm45 = vcmask 261120
  %v47 = vsel %vm45, %v32, 0
  %49 = vmatpush.bf16.msra.mxu0 0
  %50 = vmatpush.bf16.msra.mxu0 0
  %51 = vmatpush.bf16.msra.mxu0 0
  %52 = vmatpush.bf16.msra.mxu0 0
  %53 = vmatpush.bf16.msra.mxu0 0
  %54 = vmatpush.bf16.msra.mxu0 0
  %55 = vmatpush.bf16.msra.mxu0 %v42
  %56 = vmatpush.bf16.msra.mxu0 %v41
  %57 = vmatmul.bf16.gmra.mxu0 %v47
  %v58 = vpop.f32.mrf.mxu0
  %v59 = vadd.f32 %v26, %v58
  %v60 = vpop.f32.mrf.mxu0
  %v61 = vadd.f32 %v26, %v60
  %62 = vdwg.mxu0
  %v63 = vlaneseq
  %v64 = vand.u32 %v63, 127
  %vm65 = vcmp.eq.s32.totalorder %v64, 63
  %v66 = vld [vmem:[%s1] sm:$0xff]
  %v67 = vld [vmem:[%s1 + $0x8] sm:$0xff]
  %69 = vset.pattern.permute.xlu0 0
  %70 = vperm.xlu0 %69, %v66
  %v71 = vpop.permute.xlu0 %70
  %74 = vset.pattern.permute.xlu0 0
  %75 = vperm.xlu0 %74, %v67
  %v76 = vpop.permute.xlu0 %75
  %v78 = vsel %vm65, %v71, %v59
  %v79 = vsel %vm65, %v76, %v61
  %vm80 = vcmask 523264
  %81 = vst.msk [vmem:[%s4] sm:$0xff] %vm80, %v78
  %82 = vst.msk [vmem:[%s4 + $0x8] sm:$0xff] %vm80, %v79
  // Predicated region
  $region18: #{descriptor_network.5} parent=0 // pred_check
    _
  $region19: #{descriptor_network.5} parent=0 // pred_check_branch
    %84 = sbr.rel (0) target = $region21
  $region20: #{descriptor_network.5} parent=0 // pred_region
    _
  $region21: #{descriptor_network.5} parent=0 // pred_fallthru
    _
  // Predicated region
  $region22: #{descriptor_network.5} parent=0 // pred_check
    _
  $region23: #{descriptor_network.5} parent=0 // pred_check_branch
    %86 = sbr.rel (0) target = $region25
  $region24: #{descriptor_network.5} parent=0 // pred_region
    _
  $region25: #{descriptor_network.5} parent=0 // pred_fallthru
    _

// kernel: descriptor_network.6
$region0: #{descriptor_network.6}
  #allocation0 [shape = 'u32[]', space=smem, size = 0x4, offset = 0x4, fixed_abs, tag = 'smem constant byte address 0x4 - core index']
  #allocation1 [shape = 'u32[72,128]{1,0:T(1,128)}', space=vmem, size = 0x9000, scoped, tag = 'internal scratch']
  #allocation2 [shape = 'f32[3,16]{1,0:T(4,128)}', space=vmem, size = 0x800, scoped, tag = 'scratch operand']
  #allocation3 [shape = 'f32[3,65,16]{2,1,0:T(8,128)}', space=vmem, size = 0x1b000, scoped, tag = 'scratch operand']
  %s0 = inlined_call_operand.vmem [shape: s32[32,1], index: 0, kind: input, shape index: {}]
  %s1 = inlined_call_operand.vmem [shape: f32[32,1], index: 1, kind: input, shape index: {}]
  %s2 = inlined_call_operand.vmem [shape: bf16[32,128], index: 2, kind: input, shape index: {}]
  %s3 = inlined_call_operand.vmem [shape: bf16[128,1536], index: 3, kind: input, shape index: {}]
  %s4 = inlined_call_operand.vmem [shape: f32[1,1536], index: 4, kind: input, shape index: {}]
  %s5 = inlined_call_operand.vmem [shape: f32[3,256], index: 5, kind: input, shape index: {}]
  %s6 = inlined_call_operand.vmem [shape: f32[3,1], index: 6, kind: input, shape index: {}]
  %s7 = inlined_call_operand.vmem [shape: bf16[3,256,65], index: 7, kind: input, shape index: {}]
  %s8 = inlined_call_operand.vmem [shape: f32[3,65], index: 8, kind: input, shape index: {}]
  %s9 = inlined_call_operand.vmem [shape: f32[3,1], index: 9, kind: input, shape index: {}]
  %s10 = inlined_call_operand.vmem [shape: f32[16,64], index: 10, kind: input, shape index: {}]
  %s11 = inlined_call_operand.vmem [shape: f32[16,64], index: 11, kind: output, shape index: {}]
  %s12 = sld [smem:[#allocation0]]
  $region85: #{descriptor_network.6} parent=0
    _
  %s14 = ssub.s32 1, %s12
  %s15 = scalar_select 0, %s14, %s12
  loop: start=0, step=1, limit=4
  $region2: #{descriptor_network.6} parent=0 // loop_pre_header
    _
  $region3: #{descriptor_network.6} parent=0 // loop_header
    %s17 = sphi 0, %s21
    %p18 = scmp.ge.s32.totalorder %s17, 4
    %s27 = sphi 0, %s29
    %s30 = sphi 0, %s27
    %s31 = sphi 0, %s30
    %s47 = sphi 0, %s31
    %s53 = sphi 0, %s55
    %s56 = sphi 0, %s53
    %s57 = sphi 0, %s56
    %s73 = sphi 0, %s57
    %s79 = sphi 0, %s81
    %s82 = sphi 0, %s79
    %s83 = sphi 0, %s82
    %s99 = sphi 0, %s83
    %s103 = sphi 0, %s103
    %s105 = sphi 0, %s103
    %s106 = sphi 0, %s105
    %s120 = sphi 0, %s106
    %s124 = sphi 0, %s124
    %s126 = sphi 0, %s124
    %s127 = sphi 0, %s126
    %s141 = sphi 0, %s127
    %s145 = sphi 0, %s145
    %s147 = sphi 0, %s145
    %s148 = sphi 0, %s147
    %s162 = sphi 0, %s148
    %s166 = sphi 0, %s166
    %s168 = sphi 0, %s166
    %s169 = sphi 0, %s168
    %s183 = sphi 0, %s169
    %s187 = sphi 0, %s187
    %s189 = sphi 0, %s187
    %s190 = sphi 0, %s189
    %s204 = sphi 0, %s190
    %s208 = sphi 0, %s208
    %s210 = sphi 0, %s208
    %s211 = sphi 0, %s210
    %s225 = sphi 0, %s211
    %s229 = sphi 0, %s229
    %s231 = sphi 0, %s229
    %s232 = sphi 0, %s231
    %s246 = sphi 0, %s232
    %s250 = sphi 0, %s250
    %s252 = sphi 0, %s250
    %s253 = sphi 0, %s252
    %s267 = sphi 0, %s253
    %s271 = sphi 0, %s271
    %s273 = sphi 0, %s271
    %s274 = sphi 0, %s273
    %s288 = sphi 0, %s274
  $region4: #{descriptor_network.6} parent=0 // loop_header_branch
    %20 = sbr.rel (%p18) target = $region8
  $region5: #{descriptor_network.6} parent=0 // loop_body
    %s22 = ssub.s32 %s17, 1
    %s23 = ssub.s32 %s17, 2
    %s24 = sadd.s32 %s17, 1
    %s25 = ssub.s32 %s17, %s24
    %p26 = scmp.eq.s32.totalorder %s25, 0
    %s28 = sadd.s32 %s27, 1
    %s29 = scalar_select %p26, %s27, %s28
    %p32 = pneg %p26
    %p33 = scmp.eq.s32.totalorder %s17, 1
    %p34 = por %p32, %p33
    %p35 = scmp.ne.s32.totalorder %s27, %s30
    %p36 = scmp.eq.s32.totalorder %s17, 0
    %p37 = por %p35, %p36
    %p38 = scmp.ne.s32.totalorder %s27, %s30
    %p39 = scmp.eq.s32.totalorder %s22, 1
    %p40 = por %p38, %p39
    %p41 = scmp.ne.s32.totalorder %s30, %s31
    %p42 = scmp.eq.s32.totalorder %s22, 0
    %p43 = por %p41, %p42
    %p44 = scmp.ne.s32.totalorder %s30, %s31
    %p45 = scmp.eq.s32.totalorder %s23, 1
    %p46 = por %p44, %p45
    %p48 = scmp.ne.s32.totalorder %s31, %s47
    %p49 = scmp.eq.s32.totalorder %s23, 0
    %p50 = por %p48, %p49
    %s51 = ssub.s32 %s17, %s24
    %p52 = scmp.eq.s32.totalorder %s51, 0
    %s54 = sadd.s32 %s53, 1
    %s55 = scalar_select %p52, %s53, %s54
    %p58 = pneg %p52
    %p59 = scmp.eq.s32.totalorder %s17, 1
    %p60 = por %p58, %p59
    %p61 = scmp.ne.s32.totalorder %s53, %s56
    %p62 = scmp.eq.s32.totalorder %s17, 0
    %p63 = por %p61, %p62
    %p64 = scmp.ne.s32.totalorder %s53, %s56
    %p65 = scmp.eq.s32.totalorder %s22, 1
    %p66 = por %p64, %p65
    %p67 = scmp.ne.s32.totalorder %s56, %s57
    %p68 = scmp.eq.s32.totalorder %s22, 0
    %p69 = por %p67, %p68
    %p70 = scmp.ne.s32.totalorder %s56, %s57
    %p71 = scmp.eq.s32.totalorder %s23, 1
    %p72 = por %p70, %p71
    %p74 = scmp.ne.s32.totalorder %s57, %s73
    %p75 = scmp.eq.s32.totalorder %s23, 0
    %p76 = por %p74, %p75
    %s77 = ssub.s32 %s17, %s24
    %p78 = scmp.eq.s32.totalorder %s77, 0
    %s80 = sadd.s32 %s79, 1
    %s81 = scalar_select %p78, %s79, %s80
    %p84 = pneg %p78
    %p85 = scmp.eq.s32.totalorder %s17, 1
    %p86 = por %p84, %p85
    %p87 = scmp.ne.s32.totalorder %s79, %s82
    %p88 = scmp.eq.s32.totalorder %s17, 0
    %p89 = por %p87, %p88
    %p90 = scmp.ne.s32.totalorder %s79, %s82
    %p91 = scmp.eq.s32.totalorder %s22, 1
    %p92 = por %p90, %p91
    %p93 = scmp.ne.s32.totalorder %s82, %s83
    %p94 = scmp.eq.s32.totalorder %s22, 0
    %p95 = por %p93, %p94
    %p96 = scmp.ne.s32.totalorder %s82, %s83
    %p97 = scmp.eq.s32.totalorder %s23, 1
    %p98 = por %p96, %p97
    %p100 = scmp.ne.s32.totalorder %s83, %s99
    %p101 = scmp.eq.s32.totalorder %s23, 0
    %p102 = por %p100, %p101
    %s104 = sadd.s32 %s103, 1
    %p107 = scmp.eq.s32.totalorder %s17, 1
    %p108 = scmp.ne.s32.totalorder %s103, %s105
    %p109 = scmp.eq.s32.totalorder %s17, 0
    %p110 = por %p108, %p109
    %p111 = scmp.ne.s32.totalorder %s103, %s105
    %p112 = scmp.eq.s32.totalorder %s22, 1
    %p113 = por %p111, %p112
    %p114 = scmp.ne.s32.totalorder %s105, %s106
    %p115 = scmp.eq.s32.totalorder %s22, 0
    %p116 = por %p114, %p115
    %p117 = scmp.ne.s32.totalorder %s105, %s106
    %p118 = scmp.eq.s32.totalorder %s23, 1
    %p119 = por %p117, %p118
    %p121 = scmp.ne.s32.totalorder %s106, %s120
    %p122 = scmp.eq.s32.totalorder %s23, 0
    %p123 = por %p121, %p122
    %s125 = sadd.s32 %s124, 1
    %p128 = scmp.eq.s32.totalorder %s17, 1
    %p129 = scmp.ne.s32.totalorder %s124, %s126
    %p130 = scmp.eq.s32.totalorder %s17, 0
    %p131 = por %p129, %p130
    %p132 = scmp.ne.s32.totalorder %s124, %s126
    %p133 = scmp.eq.s32.totalorder %s22, 1
    %p134 = por %p132, %p133
    %p135 = scmp.ne.s32.totalorder %s126, %s127
    %p136 = scmp.eq.s32.totalorder %s22, 0
    %p137 = por %p135, %p136
    %p138 = scmp.ne.s32.totalorder %s126, %s127
    %p139 = scmp.eq.s32.totalorder %s23, 1
    %p140 = por %p138, %p139
    %p142 = scmp.ne.s32.totalorder %s127, %s141
    %p143 = scmp.eq.s32.totalorder %s23, 0
    %p144 = por %p142, %p143
    %s146 = sadd.s32 %s145, 1
    %p149 = scmp.eq.s32.totalorder %s17, 1
    %p150 = scmp.ne.s32.totalorder %s145, %s147
    %p151 = scmp.eq.s32.totalorder %s17, 0
    %p152 = por %p150, %p151
    %p153 = scmp.ne.s32.totalorder %s145, %s147
    %p154 = scmp.eq.s32.totalorder %s22, 1
    %p155 = por %p153, %p154
    %p156 = scmp.ne.s32.totalorder %s147, %s148
    %p157 = scmp.eq.s32.totalorder %s22, 0
    %p158 = por %p156, %p157
    %p159 = scmp.ne.s32.totalorder %s147, %s148
    %p160 = scmp.eq.s32.totalorder %s23, 1
    %p161 = por %p159, %p160
    %p163 = scmp.ne.s32.totalorder %s148, %s162
    %p164 = scmp.eq.s32.totalorder %s23, 0
    %p165 = por %p163, %p164
    %s167 = sadd.s32 %s166, 1
    %p170 = scmp.eq.s32.totalorder %s17, 1
    %p171 = scmp.ne.s32.totalorder %s166, %s168
    %p172 = scmp.eq.s32.totalorder %s17, 0
    %p173 = por %p171, %p172
    %p174 = scmp.ne.s32.totalorder %s166, %s168
    %p175 = scmp.eq.s32.totalorder %s22, 1
    %p176 = por %p174, %p175
    %p177 = scmp.ne.s32.totalorder %s168, %s169
    %p178 = scmp.eq.s32.totalorder %s22, 0
    %p179 = por %p177, %p178
    %p180 = scmp.ne.s32.totalorder %s168, %s169
    %p181 = scmp.eq.s32.totalorder %s23, 1
    %p182 = por %p180, %p181
    %p184 = scmp.ne.s32.totalorder %s169, %s183
    %p185 = scmp.eq.s32.totalorder %s23, 0
    %p186 = por %p184, %p185
    %s188 = sadd.s32 %s187, 1
    %p191 = scmp.eq.s32.totalorder %s17, 1
    %p192 = scmp.ne.s32.totalorder %s187, %s189
    %p193 = scmp.eq.s32.totalorder %s17, 0
    %p194 = por %p192, %p193
    %p195 = scmp.ne.s32.totalorder %s187, %s189
    %p196 = scmp.eq.s32.totalorder %s22, 1
    %p197 = por %p195, %p196
    %p198 = scmp.ne.s32.totalorder %s189, %s190
    %p199 = scmp.eq.s32.totalorder %s22, 0
    %p200 = por %p198, %p199
    %p201 = scmp.ne.s32.totalorder %s189, %s190
    %p202 = scmp.eq.s32.totalorder %s23, 1
    %p203 = por %p201, %p202
    %p205 = scmp.ne.s32.totalorder %s190, %s204
    %p206 = scmp.eq.s32.totalorder %s23, 0
    %p207 = por %p205, %p206
    %s209 = sadd.s32 %s208, 1
    %p212 = scmp.eq.s32.totalorder %s17, 1
    %p213 = scmp.ne.s32.totalorder %s208, %s210
    %p214 = scmp.eq.s32.totalorder %s17, 0
    %p215 = por %p213, %p214
    %p216 = scmp.ne.s32.totalorder %s208, %s210
    %p217 = scmp.eq.s32.totalorder %s22, 1
    %p218 = por %p216, %p217
    %p219 = scmp.ne.s32.totalorder %s210, %s211
    %p220 = scmp.eq.s32.totalorder %s22, 0
    %p221 = por %p219, %p220
    %p222 = scmp.ne.s32.totalorder %s210, %s211
    %p223 = scmp.eq.s32.totalorder %s23, 1
    %p224 = por %p222, %p223
    %p226 = scmp.ne.s32.totalorder %s211, %s225
    %p227 = scmp.eq.s32.totalorder %s23, 0
    %p228 = por %p226, %p227
    %s230 = sadd.s32 %s229, 1
    %p233 = scmp.eq.s32.totalorder %s17, 1
    %p234 = scmp.ne.s32.totalorder %s229, %s231
    %p235 = scmp.eq.s32.totalorder %s17, 0
    %p236 = por %p234, %p235
    %p237 = scmp.ne.s32.totalorder %s229, %s231
    %p238 = scmp.eq.s32.totalorder %s22, 1
    %p239 = por %p237, %p238
    %p240 = scmp.ne.s32.totalorder %s231, %s232
    %p241 = scmp.eq.s32.totalorder %s22, 0
    %p242 = por %p240, %p241
    %p243 = scmp.ne.s32.totalorder %s231, %s232
    %p244 = scmp.eq.s32.totalorder %s23, 1
    %p245 = por %p243, %p244
    %p247 = scmp.ne.s32.totalorder %s232, %s246
    %p248 = scmp.eq.s32.totalorder %s23, 0
    %p249 = por %p247, %p248
    %s251 = sadd.s32 %s250, 1
    %p254 = scmp.eq.s32.totalorder %s17, 1
    %p255 = scmp.ne.s32.totalorder %s250, %s252
    %p256 = scmp.eq.s32.totalorder %s17, 0
    %p257 = por %p255, %p256
    %p258 = scmp.ne.s32.totalorder %s250, %s252
    %p259 = scmp.eq.s32.totalorder %s22, 1
    %p260 = por %p258, %p259
    %p261 = scmp.ne.s32.totalorder %s252, %s253
    %p262 = scmp.eq.s32.totalorder %s22, 0
    %p263 = por %p261, %p262
    %p264 = scmp.ne.s32.totalorder %s252, %s253
    %p265 = scmp.eq.s32.totalorder %s23, 1
    %p266 = por %p264, %p265
    %p268 = scmp.ne.s32.totalorder %s253, %s267
    %p269 = scmp.eq.s32.totalorder %s23, 0
    %p270 = por %p268, %p269
    %s272 = sadd.s32 %s271, 1
    %p275 = scmp.eq.s32.totalorder %s17, 1
    %p276 = scmp.ne.s32.totalorder %s271, %s273
    %p277 = scmp.eq.s32.totalorder %s17, 0
    %p278 = por %p276, %p277
    %p279 = scmp.ne.s32.totalorder %s271, %s273
    %p280 = scmp.eq.s32.totalorder %s22, 1
    %p281 = por %p279, %p280
    %p282 = scmp.ne.s32.totalorder %s273, %s274
    %p283 = scmp.eq.s32.totalorder %s22, 0
    %p284 = por %p282, %p283
    %p285 = scmp.ne.s32.totalorder %s273, %s274
    %p286 = scmp.eq.s32.totalorder %s23, 1
    %p287 = por %p285, %p286
    %p289 = scmp.ne.s32.totalorder %s274, %s288
    %p290 = scmp.eq.s32.totalorder %s23, 0
    %p291 = por %p289, %p290
    %p292 = scmp.le.s32.totalorder 1, %s17
    %p293 = scmp.lt.s32.totalorder %s17, 3
    %p294 = pnand %p292, %p293
    %p295 = pneg %p294
    // Predicated region
    $region9: #{descriptor_network.6} parent=5 // pred_check
      _
    $region10: #{descriptor_network.6} parent=5 // pred_check_branch
      %297 = sbr.rel (%p294) target = $region12
    $region11: #{descriptor_network.6} parent=5 // pred_region
      %s298 = ssub.s32 %s17, 1
      // Predicated region
      $region13: #{descriptor_network.6} parent=11 // pred_check
        %p299 = pneg %p116
      $region14: #{descriptor_network.6} parent=11 // pred_check_branch
        %301 = sbr.rel (%p299) target = $region16
      $region15: #{descriptor_network.6} parent=11 // pred_region
        _
      $region16: #{descriptor_network.6} parent=11 // pred_fallthru
        _
      // Predicated region
      $region17: #{descriptor_network.6} parent=11 // pred_check
        %p302 = pneg %p137
      $region18: #{descriptor_network.6} parent=11 // pred_check_branch
        %304 = sbr.rel (%p302) target = $region20
      $region19: #{descriptor_network.6} parent=11 // pred_region
        _
      $region20: #{descriptor_network.6} parent=11 // pred_fallthru
        _
      // Predicated region
      $region21: #{descriptor_network.6} parent=11 // pred_check
        %p305 = pneg %p158
      $region22: #{descriptor_network.6} parent=11 // pred_check_branch
        %307 = sbr.rel (%p305) target = $region24
      $region23: #{descriptor_network.6} parent=11 // pred_region
        _
      $region24: #{descriptor_network.6} parent=11 // pred_fallthru
        _
      // Predicated region
      $region25: #{descriptor_network.6} parent=11 // pred_check
        %p308 = pneg %p179
      $region26: #{descriptor_network.6} parent=11 // pred_check_branch
        %310 = sbr.rel (%p308) target = $region28
      $region27: #{descriptor_network.6} parent=11 // pred_region
        _
      $region28: #{descriptor_network.6} parent=11 // pred_fallthru
        _
      // Predicated region
      $region29: #{descriptor_network.6} parent=11 // pred_check
        %p311 = pneg %p200
      $region30: #{descriptor_network.6} parent=11 // pred_check_branch
        %313 = sbr.rel (%p311) target = $region32
      $region31: #{descriptor_network.6} parent=11 // pred_region
        _
      $region32: #{descriptor_network.6} parent=11 // pred_fallthru
        _
      // Predicated region
      $region33: #{descriptor_network.6} parent=11 // pred_check
        %p314 = pneg %p221
      $region34: #{descriptor_network.6} parent=11 // pred_check_branch
        %316 = sbr.rel (%p314) target = $region36
      $region35: #{descriptor_network.6} parent=11 // pred_region
        _
      $region36: #{descriptor_network.6} parent=11 // pred_fallthru
        _
      // Predicated region
      $region37: #{descriptor_network.6} parent=11 // pred_check
        %p317 = pneg %p242
      $region38: #{descriptor_network.6} parent=11 // pred_check_branch
        %319 = sbr.rel (%p317) target = $region40
      $region39: #{descriptor_network.6} parent=11 // pred_region
        _
      $region40: #{descriptor_network.6} parent=11 // pred_fallthru
        _
      // Predicated region
      $region41: #{descriptor_network.6} parent=11 // pred_check
        %p320 = pneg %p263
      $region42: #{descriptor_network.6} parent=11 // pred_check_branch
        %322 = sbr.rel (%p320) target = $region44
      $region43: #{descriptor_network.6} parent=11 // pred_region
        _
      $region44: #{descriptor_network.6} parent=11 // pred_fallthru
        _
    $region12: #{descriptor_network.6} parent=5 // pred_fallthru
      _
    %p323 = scmp.lt.s32.totalorder %s17, 2
    // Predicated region
    $region45: #{descriptor_network.6} parent=5 // pred_check
      %p324 = pneg %p323
    $region46: #{descriptor_network.6} parent=5 // pred_check_branch
      %326 = sbr.rel (%p324) target = $region48
    $region47: #{descriptor_network.6} parent=5 // pred_region
      // Predicated region
      $region49: #{descriptor_network.6} parent=47 // pred_check
        %p327 = pneg %p37
      $region50: #{descriptor_network.6} parent=47 // pred_check_branch
        %329 = sbr.rel (%p327) target = $region52
      $region51: #{descriptor_network.6} parent=47 // pred_region
        %s330 = smul.u32 2, %s17
        %p331 = scmp.lt.s32.totalorder %s330, 3
        %s332 = scalar_select %p331, %s330, 3
        %s333 = smul.addr %s332, 8
        %s334 = scalar_lea.vmem %s0, %s333
        %s335 = smul.u32 2, %s17
      $region52: #{descriptor_network.6} parent=47 // pred_fallthru
        _
      // Predicated region
      $region53: #{descriptor_network.6} parent=47 // pred_check
        %p336 = pneg %p63
      $region54: #{descriptor_network.6} parent=47 // pred_check_branch
        %338 = sbr.rel (%p336) target = $region56
      $region55: #{descriptor_network.6} parent=47 // pred_region
        %s339 = smul.u32 2, %s17
        %p340 = scmp.lt.s32.totalorder %s339, 3
        %s341 = scalar_select %p340, %s339, 3
        %s342 = smul.addr %s341, 8
        %s343 = scalar_lea.vmem %s1, %s342
        %s344 = smul.u32 2, %s17
      $region56: #{descriptor_network.6} parent=47 // pred_fallthru
        _
      // Predicated region
      $region57: #{descriptor_network.6} parent=47 // pred_check
        %p345 = pneg %p89
      $region58: #{descriptor_network.6} parent=47 // pred_check_branch
        %347 = sbr.rel (%p345) target = $region60
      $region59: #{descriptor_network.6} parent=47 // pred_region
        %s348 = smul.u32 2, %s17
        %p349 = scmp.lt.s32.totalorder %s348, 3
        %s350 = scalar_select %p349, %s348, 3
        %s351 = smul.addr %s350, 4
        %s352 = scalar_lea.vmem %s2, %s351
        %s353 = smul.u32 2, %s17
      $region60: #{descriptor_network.6} parent=47 // pred_fallthru
        _
    $region48: #{descriptor_network.6} parent=5 // pred_fallthru
      _
    %p354 = scmp.le.s32.totalorder 1, %s17
    %p355 = scmp.lt.s32.totalorder %s17, 3
    %p356 = pnand %p354, %p355
    %p357 = pneg %p356
    // Predicated region
    $region61: #{descriptor_network.6} parent=5 // pred_check
      _
    $region62: #{descriptor_network.6} parent=5 // pred_check_branch
      %359 = sbr.rel (%p356) target = $region64
    $region63: #{descriptor_network.6} parent=5 // pred_region
      %s360 = ssub.s32 %s17, 1
      %s361 = smul.u32 2, %s22
      %p362 = scmp.lt.s32.totalorder %s361, 3
      %s363 = scalar_select %p362, %s361, 3
      %s364 = smul.addr %s363, 8
      %s365 = scalar_lea.vmem %s0, %s364
      %p366 = pneg %p43
      %p367 = pneg %p40
      %s368 = smul.u32 2, %s22
      %p369 = scmp.lt.s32.totalorder %s368, 3
      %s370 = scalar_select %p369, %s368, 3
      %s371 = smul.addr %s370, 8
      %s372 = scalar_lea.vmem %s1, %s371
      %p373 = pneg %p69
      %p374 = pneg %p66
      %s375 = smul.u32 2, %s22
      %p376 = scmp.lt.s32.totalorder %s375, 3
      %s377 = scalar_select %p376, %s375, 3
      %s378 = smul.addr %s377, 4
      %s379 = scalar_lea.vmem %s2, %s378
      %p380 = pneg %p95
      %p381 = pneg %p92
      %p382 = pneg %p116
      %p383 = pneg %p113
      %p384 = pneg %p137
      %p385 = pneg %p134
      %p386 = pneg %p158
      %p387 = pneg %p155
      %p388 = pneg %p179
      %p389 = pneg %p176
      %p390 = pneg %p200
      %p391 = pneg %p197
      %p392 = pneg %p221
      %p393 = pneg %p218
      %p394 = pneg %p242
      %p395 = pneg %p239
      %p396 = pneg %p263
      %p397 = pneg %p260
      %p398 = pneg %p284
      %p399 = pneg %p281
      %s400 = smul.u32 2, %s22
      %p401 = scmp.lt.s32.totalorder %s400, 3
      %s402 = scalar_select %p401, %s400, 3
      %s403 = smul.addr %s402, 8
      %s404 = scalar_lea.vmem %s0, %s403
      %s405 = smul.u32 2, %s22
      %s406 = smul.u32 2, %s22
      %p407 = scmp.lt.s32.totalorder %s406, 3
      %s408 = scalar_select %p407, %s406, 3
      %s409 = smul.addr %s408, 8
      %s410 = scalar_lea.vmem %s1, %s409
      %s411 = smul.u32 2, %s22
      %s412 = smul.u32 2, %s22
      %p413 = scmp.lt.s32.totalorder %s412, 3
      %s414 = scalar_select %p413, %s412, 3
      %s415 = smul.addr %s414, 4
      %s416 = scalar_lea.vmem %s2, %s415
      %s417 = smul.u32 2, %s22
      %p419 = scmp.eq.s32.totalorder %s22, 0
      // Predicated region
      $region65: #{descriptor_network.6} parent=63 // pred_check
        %p420 = pneg %p419
      $region66: #{descriptor_network.6} parent=63 // pred_check_branch
        %422 = sbr.rel (%p420) target = $region68
      $region67: #{descriptor_network.6} parent=63 // pred_region
        %vm423 = vcmask 124928
        %424 = vst.msk [vmem:[#allocation2] sm:$0x7] %vm423, -1e+30
        %vm425 = vcmask 130048
        %426 = vst.msk [vmem:[#allocation3] sm:$0xff] %vm425, 0.0
        %427 = vst.msk [vmem:[#allocation3 + $0x8] sm:$0xff] %vm425, 0.0
        %428 = vst.msk [vmem:[#allocation3 + $0x10] sm:$0xff] %vm425, 0.0
        %429 = vst.msk [vmem:[#allocation3 + $0x18] sm:$0xff] %vm425, 0.0
        %430 = vst.msk [vmem:[#allocation3 + $0x20] sm:$0xff] %vm425, 0.0
        %431 = vst.msk [vmem:[#allocation3 + $0x28] sm:$0xff] %vm425, 0.0
        %432 = vst.msk [vmem:[#allocation3 + $0x30] sm:$0xff] %vm425, 0.0
        %433 = vst.msk [vmem:[#allocation3 + $0x38] sm:$0xff] %vm425, 0.0
        %vm434 = vcmask 122880
        %435 = vst.msk [vmem:[#allocation3 + $0x40] sm:$0x1] %vm434, 0.0
        %436 = vst.msk [vmem:[#allocation3 + $0x48] sm:$0xff] %vm425, 0.0
        %437 = vst.msk [vmem:[#allocation3 + $0x50] sm:$0xff] %vm425, 0.0
        %438 = vst.msk [vmem:[#allocation3 + $0x58] sm:$0xff] %vm425, 0.0
        %439 = vst.msk [vmem:[#allocation3 + $0x60] sm:$0xff] %vm425, 0.0
        %440 = vst.msk [vmem:[#allocation3 + $0x68] sm:$0xff] %vm425, 0.0
        %441 = vst.msk [vmem:[#allocation3 + $0x70] sm:$0xff] %vm425, 0.0
        %442 = vst.msk [vmem:[#allocation3 + $0x78] sm:$0xff] %vm425, 0.0
        %443 = vst.msk [vmem:[#allocation3 + $0x80] sm:$0xff] %vm425, 0.0
        %444 = vst.msk [vmem:[#allocation3 + $0x88] sm:$0x1] %vm434, 0.0
        %445 = vst.msk [vmem:[#allocation3 + $0x90] sm:$0xff] %vm425, 0.0
        %446 = vst.msk [vmem:[#allocation3 + $0x98] sm:$0xff] %vm425, 0.0
        %447 = vst.msk [vmem:[#allocation3 + $0xa0] sm:$0xff] %vm425, 0.0
        %448 = vst.msk [vmem:[#allocation3 + $0xa8] sm:$0xff] %vm425, 0.0
        %449 = vst.msk [vmem:[#allocation3 + $0xb0] sm:$0xff] %vm425, 0.0
        %450 = vst.msk [vmem:[#allocation3 + $0xb8] sm:$0xff] %vm425, 0.0
        %451 = vst.msk [vmem:[#allocation3 + $0xc0] sm:$0xff] %vm425, 0.0
        %452 = vst.msk [vmem:[#allocation3 + $0xc8] sm:$0xff] %vm425, 0.0
        %453 = vst.msk [vmem:[#allocation3 + $0xd0] sm:$0x1] %vm434, 0.0
      $region68: #{descriptor_network.6} parent=63 // pred_fallthru
        _
      %v454 = vld [vmem:[%s416] sm:$0xf]
      %v455 = vld [vmem:[%s416 + $0x4] sm:$0xf]
      %v456 = vld [vmem:[%s3] sm:$0xff]
      %v457 = vld [vmem:[%s3 + $0x8] sm:$0xff]
      %v458 = vld [vmem:[%s3 + $0x10] sm:$0xff]
      %v459 = vld [vmem:[%s3 + $0x18] sm:$0xff]
      %v460 = vld [vmem:[%s3 + $0x20] sm:$0xff]
      %v461 = vld [vmem:[%s3 + $0x28] sm:$0xff]
      %v462 = vld [vmem:[%s3 + $0x30] sm:$0xff]
      %v463 = vld [vmem:[%s3 + $0x38] sm:$0xff]
      %v464 = vld [vmem:[%s3 + $0x40] sm:$0xff]
      %v465 = vld [vmem:[%s3 + $0x48] sm:$0xff]
      %v466 = vld [vmem:[%s3 + $0x50] sm:$0xff]
      %v467 = vld [vmem:[%s3 + $0x58] sm:$0xff]
      %v468 = vld [vmem:[%s3 + $0x60] sm:$0xff]
      %v469 = vld [vmem:[%s3 + $0x68] sm:$0xff]
      %v470 = vld [vmem:[%s3 + $0x70] sm:$0xff]
      %v471 = vld [vmem:[%s3 + $0x78] sm:$0xff]
      %v472 = vld [vmem:[%s3 + $0x80] sm:$0xff]
      %v473 = vld [vmem:[%s3 + $0x88] sm:$0xff]
      %v474 = vld [vmem:[%s3 + $0x90] sm:$0xff]
      %v475 = vld [vmem:[%s3 + $0x98] sm:$0xff]
      %v476 = vld [vmem:[%s3 + $0xa0] sm:$0xff]
      %v477 = vld [vmem:[%s3 + $0xa8] sm:$0xff]
      %v478 = vld [vmem:[%s3 + $0xb0] sm:$0xff]
      %v479 = vld [vmem:[%s3 + $0xb8] sm:$0xff]
      %v480 = vld [vmem:[%s3 + $0xc0] sm:$0xff]
      %v481 = vld [vmem:[%s3 + $0xc8] sm:$0xff]
      %v482 = vld [vmem:[%s3 + $0xd0] sm:$0xff]
      %v483 = vld [vmem:[%s3 + $0xd8] sm:$0xff]
      %v484 = vld [vmem:[%s3 + $0xe0] sm:$0xff]
      %v485 = vld [vmem:[%s3 + $0xe8] sm:$0xff]
      %v486 = vld [vmem:[%s3 + $0xf0] sm:$0xff]
      %v487 = vld [vmem:[%s3 + $0xf8] sm:$0xff]
      %v488 = vld [vmem:[%s3 + $0x100] sm:$0xff]
      %v489 = vld [vmem:[%s3 + $0x108] sm:$0xff]
      %v490 = vld [vmem:[%s3 + $0x110] sm:$0xff]
      %v491 = vld [vmem:[%s3 + $0x118] sm:$0xff]
      %v492 = vld [vmem:[%s3 + $0x120] sm:$0xff]
      %v493 = vld [vmem:[%s3 + $0x128] sm:$0xff]
      %v494 = vld [vmem:[%s3 + $0x130] sm:$0xff]
      %v495 = vld [vmem:[%s3 + $0x138] sm:$0xff]
      %v496 = vld [vmem:[%s3 + $0x140] sm:$0xff]
      %v497 = vld [vmem:[%s3 + $0x148] sm:$0xff]
      %v498 = vld [vmem:[%s3 + $0x150] sm:$0xff]
      %v499 = vld [vmem:[%s3 + $0x158] sm:$0xff]
      %v500 = vld [vmem:[%s3 + $0x160] sm:$0xff]
      %v501 = vld [vmem:[%s3 + $0x168] sm:$0xff]
      %v502 = vld [vmem:[%s3 + $0x170] sm:$0xff]
      %v503 = vld [vmem:[%s3 + $0x178] sm:$0xff]
      %v504 = vld [vmem:[%s3 + $0x180] sm:$0xff]
      %v505 = vld [vmem:[%s3 + $0x188] sm:$0xff]
      %v506 = vld [vmem:[%s3 + $0x190] sm:$0xff]
      %v507 = vld [vmem:[%s3 + $0x198] sm:$0xff]
      %v508 = vld [vmem:[%s3 + $0x1a0] sm:$0xff]
      %v509 = vld [vmem:[%s3 + $0x1a8] sm:$0xff]
      %v510 = vld [vmem:[%s3 + $0x1b0] sm:$0xff]
      %v511 = vld [vmem:[%s3 + $0x1b8] sm:$0xff]
      %v512 = vld [vmem:[%s3 + $0x1c0] sm:$0xff]
      %v513 = vld [vmem:[%s3 + $0x1c8] sm:$0xff]
      %v514 = vld [vmem:[%s3 + $0x1d0] sm:$0xff]
      %v515 = vld [vmem:[%s3 + $0x1d8] sm:$0xff]
      %v516 = vld [vmem:[%s3 + $0x1e0] sm:$0xff]
      %v517 = vld [vmem:[%s3 + $0x1e8] sm:$0xff]
      %v518 = vld [vmem:[%s3 + $0x1f0] sm:$0xff]
      %v519 = vld [vmem:[%s3 + $0x1f8] sm:$0xff]
      %v520 = vld [vmem:[%s3 + $0x200] sm:$0xff]
      %v521 = vld [vmem:[%s3 + $0x208] sm:$0xff]
      %v522 = vld [vmem:[%s3 + $0x210] sm:$0xff]
      %v523 = vld [vmem:[%s3 + $0x218] sm:$0xff]
      %v524 = vld [vmem:[%s3 + $0x220] sm:$0xff]
      %v525 = vld [vmem:[%s3 + $0x228] sm:$0xff]
      %v526 = vld [vmem:[%s3 + $0x230] sm:$0xff]
      %v527 = vld [vmem:[%s3 + $0x238] sm:$0xff]
      %v528 = vld [vmem:[%s3 + $0x240] sm:$0xff]
      %v529 = vld [vmem:[%s3 + $0x248] sm:$0xff]
      %v530 = vld [vmem:[%s3 + $0x250] sm:$0xff]
      %v531 = vld [vmem:[%s3 + $0x258] sm:$0xff]
      %v532 = vld [vmem:[%s3 + $0x260] sm:$0xff]
      %v533 = vld [vmem:[%s3 + $0x268] sm:$0xff]
      %v534 = vld [vmem:[%s3 + $0x270] sm:$0xff]
      %v535 = vld [vmem:[%s3 + $0x278] sm:$0xff]
      %v536 = vld [vmem:[%s3 + $0x280] sm:$0xff]
      %v537 = vld [vmem:[%s3 + $0x288] sm:$0xff]
      %v538 = vld [vmem:[%s3 + $0x290] sm:$0xff]
      %v539 = vld [vmem:[%s3 + $0x298] sm:$0xff]
      %v540 = vld [vmem:[%s3 + $0x2a0] sm:$0xff]
      %v541 = vld [vmem:[%s3 + $0x2a8] sm:$0xff]
      %v542 = vld [vmem:[%s3 + $0x2b0] sm:$0xff]
      %v543 = vld [vmem:[%s3 + $0x2b8] sm:$0xff]
      %v544 = vld [vmem:[%s3 + $0x2c0] sm:$0xff]
      %v545 = vld [vmem:[%s3 + $0x2c8] sm:$0xff]
      %v546 = vld [vmem:[%s3 + $0x2d0] sm:$0xff]
      %v547 = vld [vmem:[%s3 + $0x2d8] sm:$0xff]
      %v548 = vld [vmem:[%s3 + $0x2e0] sm:$0xff]
      %v549 = vld [vmem:[%s3 + $0x2e8] sm:$0xff]
      %v550 = vld [vmem:[%s3 + $0x2f0] sm:$0xff]
      %v551 = vld [vmem:[%s3 + $0x2f8] sm:$0xff]
      %v552 = vld [vmem:[%s4] sm:$0xff]
      %v553 = vld [vmem:[%s4 + $0x8] sm:$0xf]
      %v556 = vperm.slane %v552, 0
      %v557 = vperm.slane %v552, 1
      %v558 = vperm.slane %v552, 2
      %v559 = vperm.slane %v552, 3
      %v560 = vperm.slane %v552, 4
      %v561 = vperm.slane %v552, 5
      %v562 = vperm.slane %v552, 6
      %v563 = vperm.slane %v552, 7
      %v564 = vperm.slane %v553, 0
      %v565 = vperm.slane %v553, 1
      %v566 = vperm.slane %v553, 2
      %v567 = vperm.slane %v553, 3
      %v582 = vunpack.c.l.b16 %v454
      %v583 = vunpack.c.l.b16 %v455
      %v584 = vpack.c.b16 %v583, %v582
      %v682 = vunpack.c.l.b16 %v456
      %v683 = vunpack.c.h.b16 %v456
      %v684 = vunpack.c.l.b16 %v457
      %v685 = vunpack.c.h.b16 %v457
      %v686 = vunpack.c.l.b16 %v458
      %v687 = vunpack.c.h.b16 %v458
      %v688 = vunpack.c.l.b16 %v459
      %v689 = vunpack.c.h.b16 %v459
      %v690 = vunpack.c.l.b16 %v460
      %v691 = vunpack.c.h.b16 %v460
      %v692 = vunpack.c.l.b16 %v461
      %v693 = vunpack.c.h.b16 %v461
      %v694 = vunpack.c.l.b16 %v462
      %v695 = vunpack.c.h.b16 %v462
      %v696 = vunpack.c.l.b16 %v463
      %v697 = vunpack.c.h.b16 %v463
      %v698 = vunpack.c.l.b16 %v464
      %v699 = vunpack.c.h.b16 %v464
      %v700 = vunpack.c.l.b16 %v465
      %v701 = vunpack.c.h.b16 %v465
      %v702 = vunpack.c.l.b16 %v466
      %v703 = vunpack.c.h.b16 %v466
      %v704 = vunpack.c.l.b16 %v467
      %v705 = vunpack.c.h.b16 %v467
      %v706 = vunpack.c.l.b16 %v468
      %v707 = vunpack.c.h.b16 %v468
      %v708 = vunpack.c.l.b16 %v469
      %v709 = vunpack.c.h.b16 %v469
      %v710 = vunpack.c.l.b16 %v470
      %v711 = vunpack.c.h.b16 %v470
      %v712 = vunpack.c.l.b16 %v471
      %v713 = vunpack.c.h.b16 %v471
      %v714 = vunpack.c.l.b16 %v472
      %v715 = vunpack.c.h.b16 %v472
      %v716 = vunpack.c.l.b16 %v473
      %v717 = vunpack.c.h.b16 %v473
      %v718 = vunpack.c.l.b16 %v474
      %v719 = vunpack.c.h.b16 %v474
      %v720 = vunpack.c.l.b16 %v475
      %v721 = vunpack.c.h.b16 %v475
      %v722 = vunpack.c.l.b16 %v476
      %v723 = vunpack.c.h.b16 %v476
      %v724 = vunpack.c.l.b16 %v477
      %v725 = vunpack.c.h.b16 %v477
      %v726 = vunpack.c.l.b16 %v478
      %v727 = vunpack.c.h.b16 %v478
      %v728 = vunpack.c.l.b16 %v479
      %v729 = vunpack.c.h.b16 %v479
      %v730 = vunpack.c.l.b16 %v480
      %v731 = vunpack.c.h.b16 %v480
      %v732 = vunpack.c.l.b16 %v481
      %v733 = vunpack.c.h.b16 %v481
      %v734 = vunpack.c.l.b16 %v482
      %v735 = vunpack.c.h.b16 %v482
      %v736 = vunpack.c.l.b16 %v483
      %v737 = vunpack.c.h.b16 %v483
      %v738 = vunpack.c.l.b16 %v484
      %v739 = vunpack.c.h.b16 %v484
      %v740 = vunpack.c.l.b16 %v485
      %v741 = vunpack.c.h.b16 %v485
      %v742 = vunpack.c.l.b16 %v486
      %v743 = vunpack.c.h.b16 %v486
      %v744 = vunpack.c.l.b16 %v487
      %v745 = vunpack.c.h.b16 %v487
      %v746 = vunpack.c.l.b16 %v488
      %v747 = vunpack.c.h.b16 %v488
      %v748 = vunpack.c.l.b16 %v489
      %v749 = vunpack.c.h.b16 %v489
      %v750 = vunpack.c.l.b16 %v490
      %v751 = vunpack.c.h.b16 %v490
      %v752 = vunpack.c.l.b16 %v491
      %v753 = vunpack.c.h.b16 %v491
      %v754 = vunpack.c.l.b16 %v492
      %v755 = vunpack.c.h.b16 %v492
      %v756 = vunpack.c.l.b16 %v493
      %v757 = vunpack.c.h.b16 %v493
      %v758 = vunpack.c.l.b16 %v494
      %v759 = vunpack.c.h.b16 %v494
      %v760 = vunpack.c.l.b16 %v495
      %v761 = vunpack.c.h.b16 %v495
      %v762 = vunpack.c.l.b16 %v496
      %v763 = vunpack.c.h.b16 %v496
      %v764 = vunpack.c.l.b16 %v497
      %v765 = vunpack.c.h.b16 %v497
      %v766 = vunpack.c.l.b16 %v498
      %v767 = vunpack.c.h.b16 %v498
      %v768 = vunpack.c.l.b16 %v499
      %v769 = vunpack.c.h.b16 %v499
      %v770 = vunpack.c.l.b16 %v500
      %v771 = vunpack.c.h.b16 %v500
      %v772 = vunpack.c.l.b16 %v501
      %v773 = vunpack.c.h.b16 %v501
      %v774 = vunpack.c.l.b16 %v502
      %v775 = vunpack.c.h.b16 %v502
      %v776 = vunpack.c.l.b16 %v503
      %v777 = vunpack.c.h.b16 %v503
      %v778 = vunpack.c.l.b16 %v504
      %v779 = vunpack.c.h.b16 %v504
      %v780 = vunpack.c.l.b16 %v505
      %v781 = vunpack.c.h.b16 %v505
      %v782 = vunpack.c.l.b16 %v506
      %v783 = vunpack.c.h.b16 %v506
      %v784 = vunpack.c.l.b16 %v507
      %v785 = vunpack.c.h.b16 %v507
      %v786 = vunpack.c.l.b16 %v508
      %v787 = vunpack.c.h.b16 %v508
      %v788 = vunpack.c.l.b16 %v509
      %v789 = vunpack.c.h.b16 %v509
      %v790 = vunpack.c.l.b16 %v510
      %v791 = vunpack.c.h.b16 %v510
      %v792 = vunpack.c.l.b16 %v511
      %v793 = vunpack.c.h.b16 %v511
      %v794 = vunpack.c.l.b16 %v512
      %v795 = vunpack.c.h.b16 %v512
      %v796 = vunpack.c.l.b16 %v513
      %v797 = vunpack.c.h.b16 %v513
      %v798 = vunpack.c.l.b16 %v514
      %v799 = vunpack.c.h.b16 %v514
      %v800 = vunpack.c.l.b16 %v515
      %v801 = vunpack.c.h.b16 %v515
      %v802 = vunpack.c.l.b16 %v516
      %v803 = vunpack.c.h.b16 %v516
      %v804 = vunpack.c.l.b16 %v517
      %v805 = vunpack.c.h.b16 %v517
      %v806 = vunpack.c.l.b16 %v518
      %v807 = vunpack.c.h.b16 %v518
      %v808 = vunpack.c.l.b16 %v519
      %v809 = vunpack.c.h.b16 %v519
      %v810 = vunpack.c.l.b16 %v520
      %v811 = vunpack.c.h.b16 %v520
      %v812 = vunpack.c.l.b16 %v521
      %v813 = vunpack.c.h.b16 %v521
      %v814 = vunpack.c.l.b16 %v522
      %v815 = vunpack.c.h.b16 %v522
      %v816 = vunpack.c.l.b16 %v523
      %v817 = vunpack.c.h.b16 %v523
      %v818 = vunpack.c.l.b16 %v524
      %v819 = vunpack.c.h.b16 %v524
      %v820 = vunpack.c.l.b16 %v525
      %v821 = vunpack.c.h.b16 %v525
      %v822 = vunpack.c.l.b16 %v526
      %v823 = vunpack.c.h.b16 %v526
      %v824 = vunpack.c.l.b16 %v527
      %v825 = vunpack.c.h.b16 %v527
      %v826 = vunpack.c.l.b16 %v528
      %v827 = vunpack.c.h.b16 %v528
      %v828 = vunpack.c.l.b16 %v529
      %v829 = vunpack.c.h.b16 %v529
      %v830 = vunpack.c.l.b16 %v530
      %v831 = vunpack.c.h.b16 %v530
      %v832 = vunpack.c.l.b16 %v531
      %v833 = vunpack.c.h.b16 %v531
      %v834 = vunpack.c.l.b16 %v532
      %v835 = vunpack.c.h.b16 %v532
      %v836 = vunpack.c.l.b16 %v533
      %v837 = vunpack.c.h.b16 %v533
      %v838 = vunpack.c.l.b16 %v534
      %v839 = vunpack.c.h.b16 %v534
      %v840 = vunpack.c.l.b16 %v535
      %v841 = vunpack.c.h.b16 %v535
      %v842 = vunpack.c.l.b16 %v536
      %v843 = vunpack.c.h.b16 %v536
      %v844 = vunpack.c.l.b16 %v537
      %v845 = vunpack.c.h.b16 %v537
      %v846 = vunpack.c.l.b16 %v538
      %v847 = vunpack.c.h.b16 %v538
      %v848 = vunpack.c.l.b16 %v539
      %v849 = vunpack.c.h.b16 %v539
      %v850 = vunpack.c.l.b16 %v540
      %v851 = vunpack.c.h.b16 %v540
      %v852 = vunpack.c.l.b16 %v541
      %v853 = vunpack.c.h.b16 %v541
      %v854 = vunpack.c.l.b16 %v542
      %v855 = vunpack.c.h.b16 %v542
      %v856 = vunpack.c.l.b16 %v543
      %v857 = vunpack.c.h.b16 %v543
      %v858 = vunpack.c.l.b16 %v544
      %v859 = vunpack.c.h.b16 %v544
      %v860 = vunpack.c.l.b16 %v545
      %v861 = vunpack.c.h.b16 %v545
      %v862 = vunpack.c.l.b16 %v546
      %v863 = vunpack.c.h.b16 %v546
      %v864 = vunpack.c.l.b16 %v547
      %v865 = vunpack.c.h.b16 %v547
      %v866 = vunpack.c.l.b16 %v548
      %v867 = vunpack.c.h.b16 %v548
      %v868 = vunpack.c.l.b16 %v549
      %v869 = vunpack.c.h.b16 %v549
      %v870 = vunpack.c.l.b16 %v550
      %v871 = vunpack.c.h.b16 %v550
      %v872 = vunpack.c.l.b16 %v551
      %v873 = vunpack.c.h.b16 %v551
      %v874 = vpack.c.b16 %v694, %v682
      %v875 = vpack.c.b16 %v695, %v683
      %v876 = vpack.c.b16 %v696, %v684
      %v877 = vpack.c.b16 %v697, %v685
      %v878 = vpack.c.b16 %v698, %v686
      %v879 = vpack.c.b16 %v699, %v687
      %v880 = vpack.c.b16 %v700, %v688
      %v881 = vpack.c.b16 %v701, %v689
      %v882 = vpack.c.b16 %v702, %v690
      %v883 = vpack.c.b16 %v703, %v691
      %v884 = vpack.c.b16 %v704, %v692
      %v885 = vpack.c.b16 %v705, %v693
      %v886 = vpack.c.b16 %v718, %v706
      %v887 = vpack.c.b16 %v719, %v707
      %v888 = vpack.c.b16 %v720, %v708
      %v889 = vpack.c.b16 %v721, %v709
      %v890 = vpack.c.b16 %v722, %v710
      %v891 = vpack.c.b16 %v723, %v711
      %v892 = vpack.c.b16 %v724, %v712
      %v893 = vpack.c.b16 %v725, %v713
      %v894 = vpack.c.b16 %v726, %v714
      %v895 = vpack.c.b16 %v727, %v715
      %v896 = vpack.c.b16 %v728, %v716
      %v897 = vpack.c.b16 %v729, %v717
      %v898 = vpack.c.b16 %v742, %v730
      %v899 = vpack.c.b16 %v743, %v731
      %v900 = vpack.c.b16 %v744, %v732
      %v901 = vpack.c.b16 %v745, %v733
      %v902 = vpack.c.b16 %v746, %v734
      %v903 = vpack.c.b16 %v747, %v735
      %v904 = vpack.c.b16 %v748, %v736
      %v905 = vpack.c.b16 %v749, %v737
      %v906 = vpack.c.b16 %v750, %v738
      %v907 = vpack.c.b16 %v751, %v739
      %v908 = vpack.c.b16 %v752, %v740
      %v909 = vpack.c.b16 %v753, %v741
      %v910 = vpack.c.b16 %v766, %v754
      %v911 = vpack.c.b16 %v767, %v755
      %v912 = vpack.c.b16 %v768, %v756
      %v913 = vpack.c.b16 %v769, %v757
      %v914 = vpack.c.b16 %v770, %v758
      %v915 = vpack.c.b16 %v771, %v759
      %v916 = vpack.c.b16 %v772, %v760
      %v917 = vpack.c.b16 %v773, %v761
      %v918 = vpack.c.b16 %v774, %v762
      %v919 = vpack.c.b16 %v775, %v763
      %v920 = vpack.c.b16 %v776, %v764
      %v921 = vpack.c.b16 %v777, %v765
      %v922 = vpack.c.b16 %v790, %v778
      %v923 = vpack.c.b16 %v791, %v779
      %v924 = vpack.c.b16 %v792, %v780
      %v925 = vpack.c.b16 %v793, %v781
      %v926 = vpack.c.b16 %v794, %v782
      %v927 = vpack.c.b16 %v795, %v783
      %v928 = vpack.c.b16 %v796, %v784
      %v929 = vpack.c.b16 %v797, %v785
      %v930 = vpack.c.b16 %v798, %v786
      %v931 = vpack.c.b16 %v799, %v787
      %v932 = vpack.c.b16 %v800, %v788
      %v933 = vpack.c.b16 %v801, %v789
      %v934 = vpack.c.b16 %v814, %v802
      %v935 = vpack.c.b16 %v815, %v803
      %v936 = vpack.c.b16 %v816, %v804
      %v937 = vpack.c.b16 %v817, %v805
      %v938 = vpack.c.b16 %v818, %v806
      %v939 = vpack.c.b16 %v819, %v807
      %v940 = vpack.c.b16 %v820, %v808
      %v941 = vpack.c.b16 %v821, %v809
      %v942 = vpack.c.b16 %v822, %v810
      %v943 = vpack.c.b16 %v823, %v811
      %v944 = vpack.c.b16 %v824, %v812
      %v945 = vpack.c.b16 %v825, %v813
      %v946 = vpack.c.b16 %v838, %v826
      %v947 = vpack.c.b16 %v839, %v827
      %v948 = vpack.c.b16 %v840, %v828
      %v949 = vpack.c.b16 %v841, %v829
      %v950 = vpack.c.b16 %v842, %v830
      %v951 = vpack.c.b16 %v843, %v831
      %v952 = vpack.c.b16 %v844, %v832
      %v953 = vpack.c.b16 %v845, %v833
      %v954 = vpack.c.b16 %v846, %v834
      %v955 = vpack.c.b16 %v847, %v835
      %v956 = vpack.c.b16 %v848, %v836
      %v957 = vpack.c.b16 %v849, %v837
      %v958 = vpack.c.b16 %v862, %v850
      %v959 = vpack.c.b16 %v863, %v851
      %v960 = vpack.c.b16 %v864, %v852
      %v961 = vpack.c.b16 %v865, %v853
      %v962 = vpack.c.b16 %v866, %v854
      %v963 = vpack.c.b16 %v867, %v855
      %v964 = vpack.c.b16 %v868, %v856
      %v965 = vpack.c.b16 %v869, %v857
      %v966 = vpack.c.b16 %v870, %v858
      %v967 = vpack.c.b16 %v871, %v859
      %v968 = vpack.c.b16 %v872, %v860
      %v969 = vpack.c.b16 %v873, %v861
      %1066 = vmatpush.bf16.msra.mxu0 %v958
      %1067 = vmatpush.bf16.msra.mxu0 %v946
      %1068 = vmatpush.bf16.msra.mxu0 %v934
      %1069 = vmatpush.bf16.msra.mxu0 %v922
      %1070 = vmatpush.bf16.msra.mxu0 %v910
      %1071 = vmatpush.bf16.msra.mxu0 %v898
      %1072 = vmatpush.bf16.msra.mxu0 %v886
      %1073 = vmatpush.bf16.msra.mxu0 %v874
      %1074 = vmatmul.bf16.gmra.mxu0 %v584
      %v1075 = vpop.f32.mrf.mxu0
      %v1076 = vadd.f32 %v556, %v1075
      %v1077 = vpop.f32.mrf.mxu0
      %v1078 = vadd.f32 %v556, %v1077
      %1079 = vdwg.mxu0
      %1080 = vmatpush.bf16.msra.mxu0 %v959
      %1081 = vmatpush.bf16.msra.mxu0 %v947
      %1082 = vmatpush.bf16.msra.mxu0 %v935
      %1083 = vmatpush.bf16.msra.mxu0 %v923
      %1084 = vmatpush.bf16.msra.mxu0 %v911
      %1085 = vmatpush.bf16.msra.mxu0 %v899
      %1086 = vmatpush.bf16.msra.mxu0 %v887
      %1087 = vmatpush.bf16.msra.mxu0 %v875
      %1088 = vmatmul.bf16.gmra.mxu0 %v584
      %v1089 = vpop.f32.mrf.mxu0
      %v1090 = vadd.f32 %v557, %v1089
      %v1091 = vpop.f32.mrf.mxu0
      %v1092 = vadd.f32 %v557, %v1091
      %1093 = vdwg.mxu0
      %1094 = vmatpush.bf16.msra.mxu0 %v960
      %1095 = vmatpush.bf16.msra.mxu0 %v948
      %1096 = vmatpush.bf16.msra.mxu0 %v936
      %1097 = vmatpush.bf16.msra.mxu0 %v924
      %1098 = vmatpush.bf16.msra.mxu0 %v912
      %1099 = vmatpush.bf16.msra.mxu0 %v900
      %1100 = vmatpush.bf16.msra.mxu0 %v888
      %1101 = vmatpush.bf16.msra.mxu0 %v876
      %1102 = vmatmul.bf16.gmra.mxu0 %v584
      %v1103 = vpop.f32.mrf.mxu0
      %v1104 = vadd.f32 %v558, %v1103
      %v1105 = vpop.f32.mrf.mxu0
      %v1106 = vadd.f32 %v558, %v1105
      %1107 = vdwg.mxu0
      %1108 = vmatpush.bf16.msra.mxu0 %v961
      %1109 = vmatpush.bf16.msra.mxu0 %v949
      %1110 = vmatpush.bf16.msra.mxu0 %v937
      %1111 = vmatpush.bf16.msra.mxu0 %v925
      %1112 = vmatpush.bf16.msra.mxu0 %v913
      %1113 = vmatpush.bf16.msra.mxu0 %v901
      %1114 = vmatpush.bf16.msra.mxu0 %v889
      %1115 = vmatpush.bf16.msra.mxu0 %v877
      %1116 = vmatmul.bf16.gmra.mxu0 %v584
      %v1117 = vpop.f32.mrf.mxu0
      %v1118 = vadd.f32 %v559, %v1117
      %v1119 = vpop.f32.mrf.mxu0
      %v1120 = vadd.f32 %v559, %v1119
      %1121 = vdwg.mxu0
      %1122 = vmatpush.bf16.msra.mxu0 %v962
      %1123 = vmatpush.bf16.msra.mxu0 %v950
      %1124 = vmatpush.bf16.msra.mxu0 %v938
      %1125 = vmatpush.bf16.msra.mxu0 %v926
      %1126 = vmatpush.bf16.msra.mxu0 %v914
      %1127 = vmatpush.bf16.msra.mxu0 %v902
      %1128 = vmatpush.bf16.msra.mxu0 %v890
      %1129 = vmatpush.bf16.msra.mxu0 %v878
      %1130 = vmatmul.bf16.gmra.mxu0 %v584
      %v1131 = vpop.f32.mrf.mxu0
      %v1132 = vadd.f32 %v560, %v1131
      %v1133 = vpop.f32.mrf.mxu0
      %v1134 = vadd.f32 %v560, %v1133
      %1135 = vdwg.mxu0
      %1136 = vmatpush.bf16.msra.mxu0 %v963
      %1137 = vmatpush.bf16.msra.mxu0 %v951
      %1138 = vmatpush.bf16.msra.mxu0 %v939
      %1139 = vmatpush.bf16.msra.mxu0 %v927
      %1140 = vmatpush.bf16.msra.mxu0 %v915
      %1141 = vmatpush.bf16.msra.mxu0 %v903
      %1142 = vmatpush.bf16.msra.mxu0 %v891
      %1143 = vmatpush.bf16.msra.mxu0 %v879
      %1144 = vmatmul.bf16.gmra.mxu0 %v584
      %v1145 = vpop.f32.mrf.mxu0
      %v1146 = vadd.f32 %v561, %v1145
      %v1147 = vpop.f32.mrf.mxu0
      %v1148 = vadd.f32 %v561, %v1147
      %1149 = vdwg.mxu0
      %1150 = vmatpush.bf16.msra.mxu0 %v964
      %1151 = vmatpush.bf16.msra.mxu0 %v952
      %1152 = vmatpush.bf16.msra.mxu0 %v940
      %1153 = vmatpush.bf16.msra.mxu0 %v928
      %1154 = vmatpush.bf16.msra.mxu0 %v916
      %1155 = vmatpush.bf16.msra.mxu0 %v904
      %1156 = vmatpush.bf16.msra.mxu0 %v892
      %1157 = vmatpush.bf16.msra.mxu0 %v880
      %1158 = vmatmul.bf16.gmra.mxu0 %v584
      %v1159 = vpop.f32.mrf.mxu0
      %v1160 = vadd.f32 %v562, %v1159
      %v1161 = vpop.f32.mrf.mxu0
      %v1162 = vadd.f32 %v562, %v1161
      %1163 = vdwg.mxu0
      %1164 = vmatpush.bf16.msra.mxu0 %v965
      %1165 = vmatpush.bf16.msra.mxu0 %v953
      %1166 = vmatpush.bf16.msra.mxu0 %v941
      %1167 = vmatpush.bf16.msra.mxu0 %v929
      %1168 = vmatpush.bf16.msra.mxu0 %v917
      %1169 = vmatpush.bf16.msra.mxu0 %v905
      %1170 = vmatpush.bf16.msra.mxu0 %v893
      %1171 = vmatpush.bf16.msra.mxu0 %v881
      %1172 = vmatmul.bf16.gmra.mxu0 %v584
      %v1173 = vpop.f32.mrf.mxu0
      %v1174 = vadd.f32 %v563, %v1173
      %v1175 = vpop.f32.mrf.mxu0
      %v1176 = vadd.f32 %v563, %v1175
      %1177 = vdwg.mxu0
      %1178 = vmatpush.bf16.msra.mxu0 %v966
      %1179 = vmatpush.bf16.msra.mxu0 %v954
      %1180 = vmatpush.bf16.msra.mxu0 %v942
      %1181 = vmatpush.bf16.msra.mxu0 %v930
      %1182 = vmatpush.bf16.msra.mxu0 %v918
      %1183 = vmatpush.bf16.msra.mxu0 %v906
      %1184 = vmatpush.bf16.msra.mxu0 %v894
      %1185 = vmatpush.bf16.msra.mxu0 %v882
      %1186 = vmatmul.bf16.gmra.mxu0 %v584
      %v1187 = vpop.f32.mrf.mxu0
      %v1188 = vadd.f32 %v564, %v1187
      %v1189 = vpop.f32.mrf.mxu0
      %v1190 = vadd.f32 %v564, %v1189
      %1191 = vdwg.mxu0
      %1192 = vmatpush.bf16.msra.mxu0 %v967
      %1193 = vmatpush.bf16.msra.mxu0 %v955
      %1194 = vmatpush.bf16.msra.mxu0 %v943
      %1195 = vmatpush.bf16.msra.mxu0 %v931
      %1196 = vmatpush.bf16.msra.mxu0 %v919
      %1197 = vmatpush.bf16.msra.mxu0 %v907
      %1198 = vmatpush.bf16.msra.mxu0 %v895
      %1199 = vmatpush.bf16.msra.mxu0 %v883
      %1200 = vmatmul.bf16.gmra.mxu0 %v584
      %v1201 = vpop.f32.mrf.mxu0
      %v1202 = vadd.f32 %v565, %v1201
      %v1203 = vpop.f32.mrf.mxu0
      %v1204 = vadd.f32 %v565, %v1203
      %1205 = vdwg.mxu0
      %1206 = vmatpush.bf16.msra.mxu0 %v968
      %1207 = vmatpush.bf16.msra.mxu0 %v956
      %1208 = vmatpush.bf16.msra.mxu0 %v944
      %1209 = vmatpush.bf16.msra.mxu0 %v932
      %1210 = vmatpush.bf16.msra.mxu0 %v920
      %1211 = vmatpush.bf16.msra.mxu0 %v908
      %1212 = vmatpush.bf16.msra.mxu0 %v896
      %1213 = vmatpush.bf16.msra.mxu0 %v884
      %1214 = vmatmul.bf16.gmra.mxu0 %v584
      %v1215 = vpop.f32.mrf.mxu0
      %v1216 = vadd.f32 %v566, %v1215
      %v1217 = vpop.f32.mrf.mxu0
      %v1218 = vadd.f32 %v566, %v1217
      %1219 = vdwg.mxu0
      %1220 = vmatpush.bf16.msra.mxu0 %v969
      %1221 = vmatpush.bf16.msra.mxu0 %v957
      %1222 = vmatpush.bf16.msra.mxu0 %v945
      %1223 = vmatpush.bf16.msra.mxu0 %v933
      %1224 = vmatpush.bf16.msra.mxu0 %v921
      %1225 = vmatpush.bf16.msra.mxu0 %v909
      %1226 = vmatpush.bf16.msra.mxu0 %v897
      %1227 = vmatpush.bf16.msra.mxu0 %v885
      %1228 = vmatmul.bf16.gmra.mxu0 %v584
      %v1229 = vpop.f32.mrf.mxu0
      %v1230 = vadd.f32 %v567, %v1229
      %v1231 = vpop.f32.mrf.mxu0
      %v1232 = vadd.f32 %v567, %v1231
      %1233 = vdwg.mxu0
      %vm1234 = vcmp.ge.f32.partialorder %v1076, 0.0
      %vm1235 = vcmp.ge.f32.partialorder %v1090, 0.0
      %vm1236 = vcmp.ge.f32.partialorder %v1104, 0.0
      %vm1237 = vcmp.ge.f32.partialorder %v1118, 0.0
      %vm1238 = vcmp.ge.f32.partialorder %v1132, 0.0
      %vm1239 = vcmp.ge.f32.partialorder %v1146, 0.0
      %vm1240 = vcmp.ge.f32.partialorder %v1160, 0.0
      %vm1241 = vcmp.ge.f32.partialorder %v1174, 0.0
      %vm1242 = vcmp.ge.f32.partialorder %v1188, 0.0
      %vm1243 = vcmp.ge.f32.partialorder %v1202, 0.0
      %vm1244 = vcmp.ge.f32.partialorder %v1216, 0.0
      %vm1245 = vcmp.ge.f32.partialorder %v1230, 0.0
      %vm1246 = vcmp.ge.f32.partialorder %v1078, 0.0
      %vm1247 = vcmp.ge.f32.partialorder %v1092, 0.0
      %vm1248 = vcmp.ge.f32.partialorder %v1106, 0.0
      %vm1249 = vcmp.ge.f32.partialorder %v1120, 0.0
      %vm1250 = vcmp.ge.f32.partialorder %v1134, 0.0
      %vm1251 = vcmp.ge.f32.partialorder %v1148, 0.0
      %vm1252 = vcmp.ge.f32.partialorder %v1162, 0.0
      %vm1253 = vcmp.ge.f32.partialorder %v1176, 0.0
      %vm1254 = vcmp.ge.f32.partialorder %v1190, 0.0
      %vm1255 = vcmp.ge.f32.partialorder %v1204, 0.0
      %vm1256 = vcmp.ge.f32.partialorder %v1218, 0.0
      %vm1257 = vcmp.ge.f32.partialorder %v1232, 0.0
      %v1258 = vmul.f32 %v1076, 0.01
      %v1259 = vmul.f32 %v1090, 0.01
      %v1260 = vmul.f32 %v1104, 0.01
      %v1261 = vmul.f32 %v1118, 0.01
      %v1262 = vmul.f32 %v1132, 0.01
      %v1263 = vmul.f32 %v1146, 0.01
      %v1264 = vmul.f32 %v1160, 0.01
      %v1265 = vmul.f32 %v1174, 0.01
      %v1266 = vmul.f32 %v1188, 0.01
      %v1267 = vmul.f32 %v1202, 0.01
      %v1268 = vmul.f32 %v1216, 0.01
      %v1269 = vmul.f32 %v1230, 0.01
      %v1270 = vmul.f32 %v1078, 0.01
      %v1271 = vmul.f32 %v1092, 0.01
      %v1272 = vmul.f32 %v1106, 0.01
      %v1273 = vmul.f32 %v1120, 0.01
      %v1274 = vmul.f32 %v1134, 0.01
      %v1275 = vmul.f32 %v1148, 0.01
      %v1276 = vmul.f32 %v1162, 0.01
      %v1277 = vmul.f32 %v1176, 0.01
      %v1278 = vmul.f32 %v1190, 0.01
      %v1279 = vmul.f32 %v1204, 0.01
      %v1280 = vmul.f32 %v1218, 0.01
      %v1281 = vmul.f32 %v1232, 0.01
      %v1282 = vsel %vm1234, %v1076, %v1258
      %v1283 = vsel %vm1235, %v1090, %v1259
      %v1284 = vsel %vm1236, %v1104, %v1260
      %v1285 = vsel %vm1237, %v1118, %v1261
      %v1286 = vsel %vm1238, %v1132, %v1262
      %v1287 = vsel %vm1239, %v1146, %v1263
      %v1288 = vsel %vm1240, %v1160, %v1264
      %v1289 = vsel %vm1241, %v1174, %v1265
      %v1290 = vsel %vm1242, %v1188, %v1266
      %v1291 = vsel %vm1243, %v1202, %v1267
      %v1292 = vsel %vm1244, %v1216, %v1268
      %v1293 = vsel %vm1245, %v1230, %v1269
      %v1294 = vsel %vm1246, %v1078, %v1270
      %v1295 = vsel %vm1247, %v1092, %v1271
      %v1296 = vsel %vm1248, %v1106, %v1272
      %v1297 = vsel %vm1249, %v1120, %v1273
      %v1298 = vsel %vm1250, %v1134, %v1274
      %v1299 = vsel %vm1251, %v1148, %v1275
      %v1300 = vsel %vm1252, %v1162, %v1276
      %v1301 = vsel %vm1253, %v1176, %v1277
      %v1302 = vsel %vm1254, %v1190, %v1278
      %v1303 = vsel %vm1255, %v1204, %v1279
      %v1304 = vsel %vm1256, %v1218, %v1280
      %v1305 = vsel %vm1257, %v1232, %v1281
      %v1306 = vld [vmem:[%s404] sm:$0xff]
      %v1307 = vld [vmem:[%s404 + $0x8] sm:$0xff]
      %vm1308 = vcmp.ge.s32.totalorder %v1306, 0
      %vm1309 = vcmp.ge.s32.totalorder %v1307, 0
      %v1310 = vlaneseq
      %v1311 = vand.u32 %v1310, 127
      %1312 = vset.pattern.permute.xlu0 0
      %1313 = vperm.xlu0 %1312, %v1306
      %v1314 = vpop.permute.xlu0 %1313
      %1315 = vset.pattern.permute.xlu0 0
      %1316 = vperm.xlu0 %1315, %v1307
      %v1317 = vpop.permute.xlu0 %1316
      %vm1318 = vcmp.eq.s32.totalorder %v1311, %v1314
      %vm1319 = vcmp.eq.s32.totalorder %v1311, %v1317
      %v1320 = vsel %vm1318, 1.0, 0.0
      %v1321 = vsel %vm1319, 1.0, 0.0
      %v1322 = vpack.c.bf16 %v1321, %v1320
      %v1323 = vld [vmem:[%s410] sm:$0xff]
      %v1324 = vld [vmem:[%s410 + $0x8] sm:$0xff]
      %v1325 = vmax.f32 %v1323, 1e-30
      %v1326 = vmax.f32 %v1324, 1e-30
      %v1327 = vlog2.pop %v1325
      %v1328 = vmul.f32 %v1327, 0.6931472
      %v1329 = vlog2.pop %v1326
      %v1330 = vmul.f32 %v1329, 0.6931472
      %v1331 = vld [vmem:[%s5] ss:$4 sm:$0x3]
      %v1333 = vperm.slane %v1331, 0
      %v1334 = vperm.slane %v1331, 1
      %v1337 = vmul.f32 %v1282, %v1333
      %v1338 = vmul.f32 %v1283, %v1334
      %v1339 = vmul.f32 %v1294, %v1333
      %v1340 = vmul.f32 %v1295, %v1334
      %v1341 = vadd.f32 %v1337, %v1338
      %1342 = vadd.xlane.f32.xlu0 %v1341
      %v1343 = vpop.xlane.xlu0 %1342
      %v1344 = vadd.f32 %v1339, %v1340
      %1345 = vadd.xlane.f32.xlu0 %v1344
      %v1346 = vpop.xlane.xlu0 %1345
      %v1347 = vld [vmem:[%s6] sm:$0x1]
      %v1348 = vperm.slane %v1347, 0
      %v1349 = vadd.f32 %v1343, %v1348
      %v1350 = vadd.f32 %v1346, %v1348
      %v1351 = vpack.c.bf16 %v1296, %v1284
      %v1352 = vpack.c.bf16 %v1297, %v1285
      %v1353 = vld [vmem:[%s7] sm:$0xf]
      %v1354 = vld [vmem:[%s7 + $0x4] sm:$0xf]
      %v1355 = vld [vmem:[%s7 + $0x8] sm:$0xf]
      %v1356 = vld [vmem:[%s7 + $0xc] sm:$0xf]
      %v1357 = vld [vmem:[%s7 + $0x10] sm:$0xf]
      %v1358 = vld [vmem:[%s7 + $0x14] sm:$0xf]
      %v1359 = vld [vmem:[%s7 + $0x18] sm:$0xf]
      %v1360 = vld [vmem:[%s7 + $0x1c] sm:$0xf]
      %v1361 = vld [vmem:[%s7 + $0x20] sm:$0xf]
      %v1362 = vld [vmem:[%s7 + $0x24] sm:$0xf]
      %v1363 = vld [vmem:[%s7 + $0x28] sm:$0xf]
      %v1364 = vld [vmem:[%s7 + $0x2c] sm:$0xf]
      %v1365 = vld [vmem:[%s7 + $0x30] sm:$0xf]
      %v1366 = vld [vmem:[%s7 + $0x34] sm:$0xf]
      %v1367 = vld [vmem:[%s7 + $0x38] sm:$0xf]
      %v1368 = vld [vmem:[%s7 + $0x3c] sm:$0xf]
      %v1369 = vld [vmem:[%s7 + $0x40] sm:$0xf]
      %v1370 = vld [vmem:[%s7 + $0x44] sm:$0xf]
      %v1371 = vld [vmem:[%s7 + $0x48] sm:$0xf]
      %v1372 = vld [vmem:[%s7 + $0x4c] sm:$0xf]
      %v1373 = vld [vmem:[%s7 + $0x50] sm:$0xf]
      %v1374 = vld [vmem:[%s7 + $0x54] sm:$0xf]
      %v1375 = vld [vmem:[%s7 + $0x58] sm:$0xf]
      %v1376 = vld [vmem:[%s7 + $0x5c] sm:$0xf]
      %v1377 = vld [vmem:[%s7 + $0x60] sm:$0xf]
      %v1378 = vld [vmem:[%s7 + $0x64] sm:$0xf]
      %v1379 = vld [vmem:[%s7 + $0x68] sm:$0xf]
      %v1380 = vld [vmem:[%s7 + $0x6c] sm:$0xf]
      %v1381 = vld [vmem:[%s7 + $0x70] sm:$0xf]
      %v1382 = vld [vmem:[%s7 + $0x74] sm:$0xf]
      %v1383 = vld [vmem:[%s7 + $0x78] sm:$0xf]
      %v1384 = vld [vmem:[%s7 + $0x7c] sm:$0xf]
      %v1385 = vld [vmem:[%s8] sm:$0x1]
      %v1386 = vperm.slane %v1385, 0
      %v1419 = vunpack.c.l.b16 %v1353
      %v1420 = vunpack.c.l.b16 %v1354
      %v1421 = vunpack.c.l.b16 %v1355
      %v1422 = vunpack.c.l.b16 %v1356
      %v1423 = vunpack.c.l.b16 %v1357
      %v1424 = vunpack.c.l.b16 %v1358
      %v1425 = vunpack.c.l.b16 %v1359
      %v1426 = vunpack.c.l.b16 %v1360
      %v1427 = vunpack.c.l.b16 %v1361
      %v1428 = vunpack.c.l.b16 %v1362
      %v1429 = vunpack.c.l.b16 %v1363
      %v1430 = vunpack.c.l.b16 %v1364
      %v1431 = vunpack.c.l.b16 %v1365
      %v1432 = vunpack.c.l.b16 %v1366
      %v1433 = vunpack.c.l.b16 %v1367
      %v1434 = vunpack.c.l.b16 %v1368
      %v1435 = vunpack.c.l.b16 %v1369
      %v1436 = vunpack.c.l.b16 %v1370
      %v1437 = vunpack.c.l.b16 %v1371
      %v1438 = vunpack.c.l.b16 %v1372
      %v1439 = vunpack.c.l.b16 %v1373
      %v1440 = vunpack.c.l.b16 %v1374
      %v1441 = vunpack.c.l.b16 %v1375
      %v1442 = vunpack.c.l.b16 %v1376
      %v1443 = vunpack.c.l.b16 %v1377
      %v1444 = vunpack.c.l.b16 %v1378
      %v1445 = vunpack.c.l.b16 %v1379
      %v1446 = vunpack.c.l.b16 %v1380
      %v1447 = vunpack.c.l.b16 %v1381
      %v1448 = vunpack.c.l.b16 %v1382
      %v1449 = vunpack.c.l.b16 %v1383
      %v1450 = vunpack.c.l.b16 %v1384
      %v1451 = vpack.c.b16 %v1420, %v1419
      %v1452 = vpack.c.b16 %v1422, %v1421
      %v1453 = vpack.c.b16 %v1424, %v1423
      %v1454 = vpack.c.b16 %v1426, %v1425
      %v1455 = vpack.c.b16 %v1428, %v1427
      %v1456 = vpack.c.b16 %v1430, %v1429
      %v1457 = vpack.c.b16 %v1432, %v1431
      %v1458 = vpack.c.b16 %v1434, %v1433
      %v1459 = vpack.c.b16 %v1436, %v1435
      %v1460 = vpack.c.b16 %v1438, %v1437
      %v1461 = vpack.c.b16 %v1440, %v1439
      %v1462 = vpack.c.b16 %v1442, %v1441
      %v1463 = vpack.c.b16 %v1444, %v1443
      %v1464 = vpack.c.b16 %v1446, %v1445
      %v1465 = vpack.c.b16 %v1448, %v1447
      %v1466 = vpack.c.b16 %v1450, %v1449
      %1483 = vmatpush.bf16.msra.mxu0 %v1458
      %1484 = vmatpush.bf16.msra.mxu0 %v1457
      %1485 = vmatpush.bf16.msra.mxu0 %v1456
      %1486 = vmatpush.bf16.msra.mxu0 %v1455
      %1487 = vmatpush.bf16.msra.mxu0 %v1454
      %1488 = vmatpush.bf16.msra.mxu0 %v1453
      %1489 = vmatpush.bf16.msra.mxu0 %v1452
      %1490 = vmatpush.bf16.msra.mxu0 %v1451
      %1491 = vmatmul.bf16.gmra.mxu0 %v1351
      %v1492 = vpop.f32.mrf.mxu0
      %v1493 = vadd.f32 %v1386, %v1492
      %v1494 = vpop.f32.mrf.mxu0
      %v1495 = vadd.f32 %v1386, %v1494
      %1496 = vdwg.mxu0
      %1497 = vmatpush.bf16.msra.mxu0 %v1466
      %1498 = vmatpush.bf16.msra.mxu0 %v1465
      %1499 = vmatpush.bf16.msra.mxu0 %v1464
      %1500 = vmatpush.bf16.msra.mxu0 %v1463
      %1501 = vmatpush.bf16.msra.mxu0 %v1462
      %1502 = vmatpush.bf16.msra.mxu0 %v1461
      %1503 = vmatpush.bf16.msra.mxu0 %v1460
      %1504 = vmatpush.bf16.msra.mxu0 %v1459
      %1505 = vmatmul.bf16.gmra.mxu0 %v1352
      %v1506 = vpop.f32.mrf.mxu0
      %v1507 = vadd.f32 %v1493, %v1506
      %v1508 = vpop.f32.mrf.mxu0
      %v1509 = vadd.f32 %v1495, %v1508
      %1510 = vdwg.mxu0
      %v1511 = vld [vmem:[#allocation2] sm:$0x1]
      %1513 = vset.pattern.permute.xlu0 0
      %1514 = vperm.xlu0 %1513, %v1349
      %v1515 = vpop.permute.xlu0 %1514
      %1518 = vset.pattern.permute.xlu0 0
      %1519 = vperm.xlu0 %1518, %v1350
      %v1520 = vpop.permute.xlu0 %1519
      %v1522 = vsel %vm1318, %v1515, -1e+30
      %v1523 = vsel %vm1319, %v1520, -1e+30
      %vm1524 = vcmask 130048
      %v1525 = vsel %vm1524, %v1522, -inf
      %v1526 = vsel %vm1524, %v1523, -inf
      %v1527 = vmax.f32 %v1525, %v1526
      %v1528 = vrot.slane %v1527, 4
      %v1529 = vmax.f32 %v1527, %v1528
      %v1530 = vrot.slane %v1529, 2
      %v1531 = vmax.f32 %v1529, %v1530
      %v1532 = vrot.slane %v1531, 1
      %v1533 = vmax.f32 %v1531, %v1532
      %v1534 = vmax.f32 %v1511, %v1533
      %v1535 = vsub.f32 %v1511, %v1534
      %v1536 = vmul.f32 %v1535, 1.442695
      %v1537 = vpow.pop %v1536
      %v1538 = vperm.slane %v1534, 0
      %v1539 = vsel %vm1318, %v1538, 0.0
      %v1540 = vsel %vm1319, %v1538, 0.0
      %v1541 = vsel %vm1524, %v1539, 0.0
      %1542 = vadd.xlane.f32.xlu0 %v1541
      %v1543 = vpop.xlane.xlu0 %1542
      %v1544 = vsel %vm1524, %v1540, 0.0
      %1545 = vadd.xlane.f32.xlu0 %v1544
      %v1546 = vpop.xlane.xlu0 %1545
      %v1547 = vld [vmem:[%s9] sm:$0x1]
      %v1548 = vperm.slane %v1547, 0
      %v1549 = vmul.f32 %v1548, %v1328
      %v1550 = vmul.f32 %v1548, %v1330
      %v1551 = vadd.f32 %v1549, %v1349
      %v1552 = vadd.f32 %v1550, %v1350
      %v1553 = vsub.f32 %v1551, %v1543
      %v1554 = vsub.f32 %v1552, %v1546
      %v1555 = vmul.f32 %v1553, 1.442695
      %v1556 = vpow.pop %v1555
      %v1557 = vmul.f32 %v1554, 1.442695
      %v1558 = vpow.pop %v1557
      %v1559 = vsel %vm1308, %v1556, 0.0
      %v1560 = vsel %vm1309, %v1558, 0.0
      %1562 = vset.pattern.permute.xlu0 0
      %1563 = vperm.xlu0 %1562, %v1559
      %v1564 = vpop.permute.xlu0 %1563
      %1567 = vset.pattern.permute.xlu0 0
      %1568 = vperm.xlu0 %1567, %v1560
      %v1569 = vpop.permute.xlu0 %1568
      %v1571 = vmul.f32 %v1564, %v1507
      %v1572 = vmul.f32 %v1569, %v1509
      %v1573 = vpack.c.bf16 %v1572, %v1571
      %1574 = vxpose.xlu0.c.b16.start [1/8] %v1573, 128
      %1575 = vxpose.xlu0.c.b16.cont [2/8] 0, 128
      %1576 = vxpose.xlu0.c.b16.cont [3/8] 0, 128
      %1577 = vxpose.xlu0.c.b16.cont [4/8] 0, 128
      %1578 = vxpose.xlu0.c.b16.cont [5/8] 0, 128
      %1579 = vxpose.xlu0.c.b16.cont [6/8] 0, 128
      %1580 = vxpose.xlu0.c.b16.cont [7/8] 0, 128
      %1581 = vxpose.xlu0.c.b16.end [8/8] 0, 128
      %v1582 = vpop.trf.xlu0
      %v1583 = vpop.trf.xlu0
      %v1584 = vpop.trf.xlu0
      %v1585 = vpop.trf.xlu0
      %v1586 = vpop.trf.xlu0
      %v1587 = vpop.trf.xlu0
      %v1588 = vpop.trf.xlu0
      %v1589 = vpop.trf.xlu0
      %v1591 = vsel %vm1524, %v1582, 0
      %v1594 = vsel %vm1524, %v1583, 0
      %v1597 = vsel %vm1524, %v1584, 0
      %v1600 = vsel %vm1524, %v1585, 0
      %v1603 = vsel %vm1524, %v1586, 0
      %1605 = vmatpush.bf16.msra.mxu0 0
      %1606 = vmatpush.bf16.msra.mxu0 0
      %1607 = vmatpush.bf16.msra.mxu0 0
      %1608 = vmatpush.bf16.msra.mxu0 0
      %1609 = vmatpush.bf16.msra.mxu0 0
      %1610 = vmatpush.bf16.msra.mxu0 0
      %1611 = vmatpush.bf16.msra.mxu0 0
      %1612 = vmatpush.bf16.msra.mxu0 %v1322
      %1613 = vmatmul.bf16.gmra.mxu0 %v1591
      %v1614 = vpop.f32.mrf.mxu0
      %v1615 = vadd.f32 0.0, %v1614
      %v1616 = vpop.f32.mrf.mxu0
      %v1617 = vadd.f32 0.0, %v1616
      %1618 = vmatmul.bf16.gmra.mxu0 %v1594
      %v1619 = vpop.f32.mrf.mxu0
      %v1620 = vadd.f32 0.0, %v1619
      %v1621 = vpop.f32.mrf.mxu0
      %v1622 = vadd.f32 0.0, %v1621
      %1623 = vmatmul.bf16.gmra.mxu0 %v1597
      %v1624 = vpop.f32.mrf.mxu0
      %v1625 = vadd.f32 0.0, %v1624
      %v1626 = vpop.f32.mrf.mxu0
      %v1627 = vadd.f32 0.0, %v1626
      %1628 = vmatmul.bf16.gmra.mxu0 %v1600
      %v1629 = vpop.f32.mrf.mxu0
      %v1630 = vadd.f32 0.0, %v1629
      %v1631 = vpop.f32.mrf.mxu0
      %v1632 = vadd.f32 0.0, %v1631
      %1633 = vmatmul.bf16.gmra.mxu0 %v1603
      %v1634 = vpop.f32.mrf.mxu0
      %v1635 = vadd.f32 0.0, %v1634
      %v1636 = vpop.f32.mrf.mxu0
      %1637 = vdwg.mxu0
      %v1638 = vld [vmem:[#allocation3] sm:$0xff]
      %v1639 = vld [vmem:[#allocation3 + $0x8] sm:$0xff]
      %v1640 = vld [vmem:[#allocation3 + $0x10] sm:$0xff]
      %v1641 = vld [vmem:[#allocation3 + $0x18] sm:$0xff]
      %v1642 = vld [vmem:[#allocation3 + $0x20] sm:$0xff]
      %v1643 = vld [vmem:[#allocation3 + $0x28] sm:$0xff]
      %v1644 = vld [vmem:[#allocation3 + $0x30] sm:$0xff]
      %v1645 = vld [vmem:[#allocation3 + $0x38] sm:$0xff]
      %v1646 = vld [vmem:[#allocation3 + $0x40] sm:$0x1]
      %v1647 = vperm.slane %v1537, 0
      %v1648 = vmul.f32 %v1638, %v1647
      %v1649 = vmul.f32 %v1639, %v1647
      %v1650 = vmul.f32 %v1640, %v1647
      %v1651 = vmul.f32 %v1641, %v1647
      %v1652 = vmul.f32 %v1642, %v1647
      %v1653 = vmul.f32 %v1643, %v1647
      %v1654 = vmul.f32 %v1644, %v1647
      %v1655 = vmul.f32 %v1645, %v1647
      %v1656 = vmul.f32 %v1646, %v1647
      %v1657 = vadd.f32 %v1648, %v1615
      %v1658 = vadd.f32 %v1649, %v1617
      %v1659 = vadd.f32 %v1650, %v1620
      %v1660 = vadd.f32 %v1651, %v1622
      %v1661 = vadd.f32 %v1652, %v1625
      %v1662 = vadd.f32 %v1653, %v1627
      %v1663 = vadd.f32 %v1654, %v1630
      %v1664 = vadd.f32 %v1655, %v1632
      %v1665 = vadd.f32 %v1656, %v1635
      %1666 = vst.msk [vmem:[#allocation3] sm:$0xff] %vm1524, %v1657
      %1667 = vst.msk [vmem:[#allocation3 + $0x8] sm:$0xff] %vm1524, %v1658
      %1668 = vst.msk [vmem:[#allocation3 + $0x10] sm:$0xff] %vm1524, %v1659
      %1669 = vst.msk [vmem:[#allocation3 + $0x18] sm:$0xff] %vm1524, %v1660
      %1670 = vst.msk [vmem:[#allocation3 + $0x20] sm:$0xff] %vm1524, %v1661
      %1671 = vst.msk [vmem:[#allocation3 + $0x28] sm:$0xff] %vm1524, %v1662
      %1672 = vst.msk [vmem:[#allocation3 + $0x30] sm:$0xff] %vm1524, %v1663
      %1673 = vst.msk [vmem:[#allocation3 + $0x38] sm:$0xff] %vm1524, %v1664
      %vm1674 = vcmask 122880
      %1675 = vst.msk [vmem:[#allocation3 + $0x40] sm:$0x1] %vm1674, %v1665
      %1676 = vst.msk [vmem:[#allocation2] sm:$0x1] %vm1674, %v1534
      %s1677 = scalar_lea.vmem %s5, 1
      %v1678 = vld [vmem:[%s1677] ss:$4 sm:$0x3]
      %v1680 = vperm.slane %v1678, 0
      %v1681 = vperm.slane %v1678, 1
      %v1684 = vmul.f32 %v1286, %v1680
      %v1685 = vmul.f32 %v1287, %v1681
      %v1686 = vmul.f32 %v1298, %v1680
      %v1687 = vmul.f32 %v1299, %v1681
      %v1688 = vadd.f32 %v1684, %v1685
      %1689 = vadd.xlane.f32.xlu0 %v1688
      %v1690 = vpop.xlane.xlu0 %1689
      %v1691 = vadd.f32 %v1686, %v1687
      %1692 = vadd.xlane.f32.xlu0 %v1691
      %v1693 = vpop.xlane.xlu0 %1692
      %v1694 = vld [vmem:[%s6 + $0x1] sm:$0x1]
      %v1695 = vperm.slane %v1694, 0
      %v1696 = vadd.f32 %v1690, %v1695
      %v1697 = vadd.f32 %v1693, %v1695
      %v1698 = vpack.c.bf16 %v1300, %v1288
      %v1699 = vpack.c.bf16 %v1301, %v1289
      %s1700 = scalar_lea.vmem %s7, 128
      %v1701 = vld [vmem:[%s1700] sm:$0xf]
      %v1702 = vld [vmem:[%s1700 + $0x4] sm:$0xf]
      %v1703 = vld [vmem:[%s1700 + $0x8] sm:$0xf]
      %v1704 = vld [vmem:[%s1700 + $0xc] sm:$0xf]
      %v1705 = vld [vmem:[%s1700 + $0x10] sm:$0xf]
      %v1706 = vld [vmem:[%s1700 + $0x14] sm:$0xf]
      %v1707 = vld [vmem:[%s1700 + $0x18] sm:$0xf]
      %v1708 = vld [vmem:[%s1700 + $0x1c] sm:$0xf]
      %v1709 = vld [vmem:[%s1700 + $0x20] sm:$0xf]
      %v1710 = vld [vmem:[%s1700 + $0x24] sm:$0xf]
      %v1711 = vld [vmem:[%s1700 + $0x28] sm:$0xf]
      %v1712 = vld [vmem:[%s1700 + $0x2c] sm:$0xf]
      %v1713 = vld [vmem:[%s1700 + $0x30] sm:$0xf]
      %v1714 = vld [vmem:[%s1700 + $0x34] sm:$0xf]
      %v1715 = vld [vmem:[%s1700 + $0x38] sm:$0xf]
      %v1716 = vld [vmem:[%s1700 + $0x3c] sm:$0xf]
      %v1717 = vld [vmem:[%s1700 + $0x40] sm:$0xf]
      %v1718 = vld [vmem:[%s1700 + $0x44] sm:$0xf]
      %v1719 = vld [vmem:[%s1700 + $0x48] sm:$0xf]
      %v1720 = vld [vmem:[%s1700 + $0x4c] sm:$0xf]
      %v1721 = vld [vmem:[%s1700 + $0x50] sm:$0xf]
      %v1722 = vld [vmem:[%s1700 + $0x54] sm:$0xf]
      %v1723 = vld [vmem:[%s1700 + $0x58] sm:$0xf]
      %v1724 = vld [vmem:[%s1700 + $0x5c] sm:$0xf]
      %v1725 = vld [vmem:[%s1700 + $0x60] sm:$0xf]
      %v1726 = vld [vmem:[%s1700 + $0x64] sm:$0xf]
      %v1727 = vld [vmem:[%s1700 + $0x68] sm:$0xf]
      %v1728 = vld [vmem:[%s1700 + $0x6c] sm:$0xf]
      %v1729 = vld [vmem:[%s1700 + $0x70] sm:$0xf]
      %v1730 = vld [vmem:[%s1700 + $0x74] sm:$0xf]
      %v1731 = vld [vmem:[%s1700 + $0x78] sm:$0xf]
      %v1732 = vld [vmem:[%s1700 + $0x7c] sm:$0xf]
      %v1733 = vld [vmem:[%s8 + $0x1] sm:$0x1]
      %v1734 = vperm.slane %v1733, 0
      %v1767 = vunpack.c.l.b16 %v1701
      %v1768 = vunpack.c.l.b16 %v1702
      %v1769 = vunpack.c.l.b16 %v1703
      %v1770 = vunpack.c.l.b16 %v1704
      %v1771 = vunpack.c.l.b16 %v1705
      %v1772 = vunpack.c.l.b16 %v1706
      %v1773 = vunpack.c.l.b16 %v1707
      %v1774 = vunpack.c.l.b16 %v1708
      %v1775 = vunpack.c.l.b16 %v1709
      %v1776 = vunpack.c.l.b16 %v1710
      %v1777 = vunpack.c.l.b16 %v1711
      %v1778 = vunpack.c.l.b16 %v1712
      %v1779 = vunpack.c.l.b16 %v1713
      %v1780 = vunpack.c.l.b16 %v1714
      %v1781 = vunpack.c.l.b16 %v1715
      %v1782 = vunpack.c.l.b16 %v1716
      %v1783 = vunpack.c.l.b16 %v1717
      %v1784 = vunpack.c.l.b16 %v1718
      %v1785 = vunpack.c.l.b16 %v1719
      %v1786 = vunpack.c.l.b16 %v1720
      %v1787 = vunpack.c.l.b16 %v1721
      %v1788 = vunpack.c.l.b16 %v1722
      %v1789 = vunpack.c.l.b16 %v1723
      %v1790 = vunpack.c.l.b16 %v1724
      %v1791 = vunpack.c.l.b16 %v1725
      %v1792 = vunpack.c.l.b16 %v1726
      %v1793 = vunpack.c.l.b16 %v1727
      %v1794 = vunpack.c.l.b16 %v1728
      %v1795 = vunpack.c.l.b16 %v1729
      %v1796 = vunpack.c.l.b16 %v1730
      %v1797 = vunpack.c.l.b16 %v1731
      %v1798 = vunpack.c.l.b16 %v1732
      %v1799 = vpack.c.b16 %v1768, %v1767
      %v1800 = vpack.c.b16 %v1770, %v1769
      %v1801 = vpack.c.b16 %v1772, %v1771
      %v1802 = vpack.c.b16 %v1774, %v1773
      %v1803 = vpack.c.b16 %v1776, %v1775
      %v1804 = vpack.c.b16 %v1778, %v1777
      %v1805 = vpack.c.b16 %v1780, %v1779
      %v1806 = vpack.c.b16 %v1782, %v1781
      %v1807 = vpack.c.b16 %v1784, %v1783
      %v1808 = vpack.c.b16 %v1786, %v1785
      %v1809 = vpack.c.b16 %v1788, %v1787
      %v1810 = vpack.c.b16 %v1790, %v1789
      %v1811 = vpack.c.b16 %v1792, %v1791
      %v1812 = vpack.c.b16 %v1794, %v1793
      %v1813 = vpack.c.b16 %v1796, %v1795
      %v1814 = vpack.c.b16 %v1798, %v1797
      %1831 = vmatpush.bf16.msra.mxu0 %v1806
      %1832 = vmatpush.bf16.msra.mxu0 %v1805
      %1833 = vmatpush.bf16.msra.mxu0 %v1804
      %1834 = vmatpush.bf16.msra.mxu0 %v1803
      %1835 = vmatpush.bf16.msra.mxu0 %v1802
      %1836 = vmatpush.bf16.msra.mxu0 %v1801
      %1837 = vmatpush.bf16.msra.mxu0 %v1800
      %1838 = vmatpush.bf16.msra.mxu0 %v1799
      %1839 = vmatmul.bf16.gmra.mxu0 %v1698
      %v1840 = vpop.f32.mrf.mxu0
      %v1841 = vadd.f32 %v1734, %v1840
      %v1842 = vpop.f32.mrf.mxu0
      %v1843 = vadd.f32 %v1734, %v1842
      %1844 = vdwg.mxu0
      %1845 = vmatpush.bf16.msra.mxu0 %v1814
      %1846 = vmatpush.bf16.msra.mxu0 %v1813
      %1847 = vmatpush.bf16.msra.mxu0 %v1812
      %1848 = vmatpush.bf16.msra.mxu0 %v1811
      %1849 = vmatpush.bf16.msra.mxu0 %v1810
      %1850 = vmatpush.bf16.msra.mxu0 %v1809
      %1851 = vmatpush.bf16.msra.mxu0 %v1808
      %1852 = vmatpush.bf16.msra.mxu0 %v1807
      %1853 = vmatmul.bf16.gmra.mxu0 %v1699
      %v1854 = vpop.f32.mrf.mxu0
      %v1855 = vadd.f32 %v1841, %v1854
      %v1856 = vpop.f32.mrf.mxu0
      %v1857 = vadd.f32 %v1843, %v1856
      %1858 = vdwg.mxu0
      %v1859 = vld [vmem:[#allocation2 + $0x1] sm:$0x1]
      %1861 = vset.pattern.permute.xlu0 0
      %1862 = vperm.xlu0 %1861, %v1696
      %v1863 = vpop.permute.xlu0 %1862
      %1866 = vset.pattern.permute.xlu0 0
      %1867 = vperm.xlu0 %1866, %v1697
      %v1868 = vpop.permute.xlu0 %1867
      %v1870 = vsel %vm1318, %v1863, -1e+30
      %v1871 = vsel %vm1319, %v1868, -1e+30
      %v1872 = vsel %vm1524, %v1870, -inf
      %v1873 = vsel %vm1524, %v1871, -inf
      %v1874 = vmax.f32 %v1872, %v1873
      %v1875 = vrot.slane %v1874, 4
      %v1876 = vmax.f32 %v1874, %v1875
      %v1877 = vrot.slane %v1876, 2
      %v1878 = vmax.f32 %v1876, %v1877
      %v1879 = vrot.slane %v1878, 1
      %v1880 = vmax.f32 %v1878, %v1879
      %v1881 = vmax.f32 %v1859, %v1880
      %v1882 = vsub.f32 %v1859, %v1881
      %v1883 = vmul.f32 %v1882, 1.442695
      %v1884 = vpow.pop %v1883
      %v1885 = vperm.slane %v1881, 0
      %v1886 = vsel %vm1318, %v1885, 0.0
      %v1887 = vsel %vm1319, %v1885, 0.0
      %v1888 = vsel %vm1524, %v1886, 0.0
      %1889 = vadd.xlane.f32.xlu0 %v1888
      %v1890 = vpop.xlane.xlu0 %1889
      %v1891 = vsel %vm1524, %v1887, 0.0
      %1892 = vadd.xlane.f32.xlu0 %v1891
      %v1893 = vpop.xlane.xlu0 %1892
      %v1894 = vld [vmem:[%s9 + $0x1] sm:$0x1]
      %v1895 = vperm.slane %v1894, 0
      %v1896 = vmul.f32 %v1895, %v1328
      %v1897 = vmul.f32 %v1895, %v1330
      %v1898 = vadd.f32 %v1896, %v1696
      %v1899 = vadd.f32 %v1897, %v1697
      %v1900 = vsub.f32 %v1898, %v1890
      %v1901 = vsub.f32 %v1899, %v1893
      %v1902 = vmul.f32 %v1900, 1.442695
      %v1903 = vpow.pop %v1902
      %v1904 = vmul.f32 %v1901, 1.442695
      %v1905 = vpow.pop %v1904
      %v1906 = vsel %vm1308, %v1903, 0.0
      %v1907 = vsel %vm1309, %v1905, 0.0
      %1909 = vset.pattern.permute.xlu0 0
      %1910 = vperm.xlu0 %1909, %v1906
      %v1911 = vpop.permute.xlu0 %1910
      %1914 = vset.pattern.permute.xlu0 0
      %1915 = vperm.xlu0 %1914, %v1907
      %v1916 = vpop.permute.xlu0 %1915
      %v1918 = vmul.f32 %v1911, %v1855
      %v1919 = vmul.f32 %v1916, %v1857
      %v1920 = vpack.c.bf16 %v1919, %v1918
      %1921 = vxpose.xlu0.c.b16.start [1/8] %v1920, 128
      %1922 = vxpose.xlu0.c.b16.cont [2/8] 0, 128
      %1923 = vxpose.xlu0.c.b16.cont [3/8] 0, 128
      %1924 = vxpose.xlu0.c.b16.cont [4/8] 0, 128
      %1925 = vxpose.xlu0.c.b16.cont [5/8] 0, 128
      %1926 = vxpose.xlu0.c.b16.cont [6/8] 0, 128
      %1927 = vxpose.xlu0.c.b16.cont [7/8] 0, 128
      %1928 = vxpose.xlu0.c.b16.end [8/8] 0, 128
      %v1929 = vpop.trf.xlu0
      %v1930 = vpop.trf.xlu0
      %v1931 = vpop.trf.xlu0
      %v1932 = vpop.trf.xlu0
      %v1933 = vpop.trf.xlu0
      %v1934 = vpop.trf.xlu0
      %v1935 = vpop.trf.xlu0
      %v1936 = vpop.trf.xlu0
      %v1938 = vsel %vm1524, %v1929, 0
      %v1941 = vsel %vm1524, %v1930, 0
      %v1944 = vsel %vm1524, %v1931, 0
      %v1947 = vsel %vm1524, %v1932, 0
      %v1950 = vsel %vm1524, %v1933, 0
      %1952 = vmatpush.bf16.msra.mxu0 0
      %1953 = vmatpush.bf16.msra.mxu0 0
      %1954 = vmatpush.bf16.msra.mxu0 0
      %1955 = vmatpush.bf16.msra.mxu0 0
      %1956 = vmatpush.bf16.msra.mxu0 0
      %1957 = vmatpush.bf16.msra.mxu0 0
      %1958 = vmatpush.bf16.msra.mxu0 0
      %1959 = vmatpush.bf16.msra.mxu0 %v1322
      %1960 = vmatmul.bf16.gmra.mxu0 %v1938
      %v1961 = vpop.f32.mrf.mxu0
      %v1962 = vadd.f32 0.0, %v1961
      %v1963 = vpop.f32.mrf.mxu0
      %v1964 = vadd.f32 0.0, %v1963
      %1965 = vmatmul.bf16.gmra.mxu0 %v1941
      %v1966 = vpop.f32.mrf.mxu0
      %v1967 = vadd.f32 0.0, %v1966
      %v1968 = vpop.f32.mrf.mxu0
      %v1969 = vadd.f32 0.0, %v1968
      %1970 = vmatmul.bf16.gmra.mxu0 %v1944
      %v1971 = vpop.f32.mrf.mxu0
      %v1972 = vadd.f32 0.0, %v1971
      %v1973 = vpop.f32.mrf.mxu0
      %v1974 = vadd.f32 0.0, %v1973
      %1975 = vmatmul.bf16.gmra.mxu0 %v1947
      %v1976 = vpop.f32.mrf.mxu0
      %v1977 = vadd.f32 0.0, %v1976
      %v1978 = vpop.f32.mrf.mxu0
      %v1979 = vadd.f32 0.0, %v1978
      %1980 = vmatmul.bf16.gmra.mxu0 %v1950
      %v1981 = vpop.f32.mrf.mxu0
      %v1982 = vadd.f32 0.0, %v1981
      %v1983 = vpop.f32.mrf.mxu0
      %1984 = vdwg.mxu0
      %s1985 = scalar_lea.vmem [#allocation3], 72
      %v1986 = vld [vmem:[%s1985] sm:$0xff]
      %v1987 = vld [vmem:[%s1985 + $0x8] sm:$0xff]
      %v1988 = vld [vmem:[%s1985 + $0x10] sm:$0xff]
      %v1989 = vld [vmem:[%s1985 + $0x18] sm:$0xff]
      %v1990 = vld [vmem:[%s1985 + $0x20] sm:$0xff]
      %v1991 = vld [vmem:[%s1985 + $0x28] sm:$0xff]
      %v1992 = vld [vmem:[%s1985 + $0x30] sm:$0xff]
      %v1993 = vld [vmem:[%s1985 + $0x38] sm:$0xff]
      %v1994 = vld [vmem:[%s1985 + $0x40] sm:$0x1]
      %v1995 = vperm.slane %v1884, 0
      %v1996 = vmul.f32 %v1986, %v1995
      %v1997 = vmul.f32 %v1987, %v1995
      %v1998 = vmul.f32 %v1988, %v1995
      %v1999 = vmul.f32 %v1989, %v1995
      %v2000 = vmul.f32 %v1990, %v1995
      %v2001 = vmul.f32 %v1991, %v1995
      %v2002 = vmul.f32 %v1992, %v1995
      %v2003 = vmul.f32 %v1993, %v1995
      %v2004 = vmul.f32 %v1994, %v1995
      %v2005 = vadd.f32 %v1996, %v1962
      %v2006 = vadd.f32 %v1997, %v1964
      %v2007 = vadd.f32 %v1998, %v1967
      %v2008 = vadd.f32 %v1999, %v1969
      %v2009 = vadd.f32 %v2000, %v1972
      %v2010 = vadd.f32 %v2001, %v1974
      %v2011 = vadd.f32 %v2002, %v1977
      %v2012 = vadd.f32 %v2003, %v1979
      %v2013 = vadd.f32 %v2004, %v1982
      %2014 = vst.msk [vmem:[%s1985] sm:$0xff] %vm1524, %v2005
      %2015 = vst.msk [vmem:[%s1985 + $0x8] sm:$0xff] %vm1524, %v2006
      %2016 = vst.msk [vmem:[%s1985 + $0x10] sm:$0xff] %vm1524, %v2007
      %2017 = vst.msk [vmem:[%s1985 + $0x18] sm:$0xff] %vm1524, %v2008
      %2018 = vst.msk [vmem:[%s1985 + $0x20] sm:$0xff] %vm1524, %v2009
      %2019 = vst.msk [vmem:[%s1985 + $0x28] sm:$0xff] %vm1524, %v2010
      %2020 = vst.msk [vmem:[%s1985 + $0x30] sm:$0xff] %vm1524, %v2011
      %2021 = vst.msk [vmem:[%s1985 + $0x38] sm:$0xff] %vm1524, %v2012
      %2022 = vst.msk [vmem:[%s1985 + $0x40] sm:$0x1] %vm1674, %v2013
      %2023 = vst.msk [vmem:[#allocation2 + $0x1] sm:$0x1] %vm1674, %v1881
      %s2024 = scalar_lea.vmem %s5, 2
      %v2025 = vld [vmem:[%s2024] ss:$4 sm:$0x3]
      %v2027 = vperm.slane %v2025, 0
      %v2028 = vperm.slane %v2025, 1
      %v2031 = vmul.f32 %v1290, %v2027
      %v2032 = vmul.f32 %v1291, %v2028
      %v2033 = vmul.f32 %v1302, %v2027
      %v2034 = vmul.f32 %v1303, %v2028
      %v2035 = vadd.f32 %v2031, %v2032
      %2036 = vadd.xlane.f32.xlu0 %v2035
      %v2037 = vpop.xlane.xlu0 %2036
      %v2038 = vadd.f32 %v2033, %v2034
      %2039 = vadd.xlane.f32.xlu0 %v2038
      %v2040 = vpop.xlane.xlu0 %2039
      %v2041 = vld [vmem:[%s6 + $0x2] sm:$0x1]
      %v2042 = vperm.slane %v2041, 0
      %v2043 = vadd.f32 %v2037, %v2042
      %v2044 = vadd.f32 %v2040, %v2042
      %v2045 = vpack.c.bf16 %v1304, %v1292
      %v2046 = vpack.c.bf16 %v1305, %v1293
      %s2047 = scalar_lea.vmem %s7, 256
      %v2048 = vld [vmem:[%s2047] sm:$0xf]
      %v2049 = vld [vmem:[%s2047 + $0x4] sm:$0xf]
      %v2050 = vld [vmem:[%s2047 + $0x8] sm:$0xf]
      %v2051 = vld [vmem:[%s2047 + $0xc] sm:$0xf]
      %v2052 = vld [vmem:[%s2047 + $0x10] sm:$0xf]
      %v2053 = vld [vmem:[%s2047 + $0x14] sm:$0xf]
      %v2054 = vld [vmem:[%s2047 + $0x18] sm:$0xf]
      %v2055 = vld [vmem:[%s2047 + $0x1c] sm:$0xf]
      %v2056 = vld [vmem:[%s2047 + $0x20] sm:$0xf]
      %v2057 = vld [vmem:[%s2047 + $0x24] sm:$0xf]
      %v2058 = vld [vmem:[%s2047 + $0x28] sm:$0xf]
      %v2059 = vld [vmem:[%s2047 + $0x2c] sm:$0xf]
      %v2060 = vld [vmem:[%s2047 + $0x30] sm:$0xf]
      %v2061 = vld [vmem:[%s2047 + $0x34] sm:$0xf]
      %v2062 = vld [vmem:[%s2047 + $0x38] sm:$0xf]
      %v2063 = vld [vmem:[%s2047 + $0x3c] sm:$0xf]
      %v2064 = vld [vmem:[%s2047 + $0x40] sm:$0xf]
      %v2065 = vld [vmem:[%s2047 + $0x44] sm:$0xf]
      %v2066 = vld [vmem:[%s2047 + $0x48] sm:$0xf]
      %v2067 = vld [vmem:[%s2047 + $0x4c] sm:$0xf]
      %v2068 = vld [vmem:[%s2047 + $0x50] sm:$0xf]
      %v2069 = vld [vmem:[%s2047 + $0x54] sm:$0xf]
      %v2070 = vld [vmem:[%s2047 + $0x58] sm:$0xf]
      %v2071 = vld [vmem:[%s2047 + $0x5c] sm:$0xf]
      %v2072 = vld [vmem:[%s2047 + $0x60] sm:$0xf]
      %v2073 = vld [vmem:[%s2047 + $0x64] sm:$0xf]
      %v2074 = vld [vmem:[%s2047 + $0x68] sm:$0xf]
      %v2075 = vld [vmem:[%s2047 + $0x6c] sm:$0xf]
      %v2076 = vld [vmem:[%s2047 + $0x70] sm:$0xf]
      %v2077 = vld [vmem:[%s2047 + $0x74] sm:$0xf]
      %v2078 = vld [vmem:[%s2047 + $0x78] sm:$0xf]
      %v2079 = vld [vmem:[%s2047 + $0x7c] sm:$0xf]
      %v2080 = vld [vmem:[%s8 + $0x2] sm:$0x1]
      %v2081 = vperm.slane %v2080, 0
      %v2114 = vunpack.c.l.b16 %v2048
      %v2115 = vunpack.c.l.b16 %v2049
      %v2116 = vunpack.c.l.b16 %v2050
      %v2117 = vunpack.c.l.b16 %v2051
      %v2118 = vunpack.c.l.b16 %v2052
      %v2119 = vunpack.c.l.b16 %v2053
      %v2120 = vunpack.c.l.b16 %v2054
      %v2121 = vunpack.c.l.b16 %v2055
      %v2122 = vunpack.c.l.b16 %v2056
      %v2123 = vunpack.c.l.b16 %v2057
      %v2124 = vunpack.c.l.b16 %v2058
      %v2125 = vunpack.c.l.b16 %v2059
      %v2126 = vunpack.c.l.b16 %v2060
      %v2127 = vunpack.c.l.b16 %v2061
      %v2128 = vunpack.c.l.b16 %v2062
      %v2129 = vunpack.c.l.b16 %v2063
      %v2130 = vunpack.c.l.b16 %v2064
      %v2131 = vunpack.c.l.b16 %v2065
      %v2132 = vunpack.c.l.b16 %v2066
      %v2133 = vunpack.c.l.b16 %v2067
      %v2134 = vunpack.c.l.b16 %v2068
      %v2135 = vunpack.c.l.b16 %v2069
      %v2136 = vunpack.c.l.b16 %v2070
      %v2137 = vunpack.c.l.b16 %v2071
      %v2138 = vunpack.c.l.b16 %v2072
      %v2139 = vunpack.c.l.b16 %v2073
      %v2140 = vunpack.c.l.b16 %v2074
      %v2141 = vunpack.c.l.b16 %v2075
      %v2142 = vunpack.c.l.b16 %v2076
      %v2143 = vunpack.c.l.b16 %v2077
      %v2144 = vunpack.c.l.b16 %v2078
      %v2145 = vunpack.c.l.b16 %v2079
      %v2146 = vpack.c.b16 %v2115, %v2114
      %v2147 = vpack.c.b16 %v2117, %v2116
      %v2148 = vpack.c.b16 %v2119, %v2118
      %v2149 = vpack.c.b16 %v2121, %v2120
      %v2150 = vpack.c.b16 %v2123, %v2122
      %v2151 = vpack.c.b16 %v2125, %v2124
      %v2152 = vpack.c.b16 %v2127, %v2126
      %v2153 = vpack.c.b16 %v2129, %v2128
      %v2154 = vpack.c.b16 %v2131, %v2130
      %v2155 = vpack.c.b16 %v2133, %v2132
      %v2156 = vpack.c.b16 %v2135, %v2134
      %v2157 = vpack.c.b16 %v2137, %v2136
      %v2158 = vpack.c.b16 %v2139, %v2138
      %v2159 = vpack.c.b16 %v2141, %v2140
      %v2160 = vpack.c.b16 %v2143, %v2142
      %v2161 = vpack.c.b16 %v2145, %v2144
      %2178 = vmatpush.bf16.msra.mxu0 %v2153
      %2179 = vmatpush.bf16.msra.mxu0 %v2152
      %2180 = vmatpush.bf16.msra.mxu0 %v2151
      %2181 = vmatpush.bf16.msra.mxu0 %v2150
      %2182 = vmatpush.bf16.msra.mxu0 %v2149
      %2183 = vmatpush.bf16.msra.mxu0 %v2148
      %2184 = vmatpush.bf16.msra.mxu0 %v2147
      %2185 = vmatpush.bf16.msra.mxu0 %v2146
      %2186 = vmatmul.bf16.gmra.mxu0 %v2045
      %v2187 = vpop.f32.mrf.mxu0
      %v2188 = vadd.f32 %v2081, %v2187
      %v2189 = vpop.f32.mrf.mxu0
      %v2190 = vadd.f32 %v2081, %v2189
      %2191 = vdwg.mxu0
      %2192 = vmatpush.bf16.msra.mxu0 %v2161
      %2193 = vmatpush.bf16.msra.mxu0 %v2160
      %2194 = vmatpush.bf16.msra.mxu0 %v2159
      %2195 = vmatpush.bf16.msra.mxu0 %v2158
      %2196 = vmatpush.bf16.msra.mxu0 %v2157
      %2197 = vmatpush.bf16.msra.mxu0 %v2156
      %2198 = vmatpush.bf16.msra.mxu0 %v2155
      %2199 = vmatpush.bf16.msra.mxu0 %v2154
      %2200 = vmatmul.bf16.gmra.mxu0 %v2046
      %v2201 = vpop.f32.mrf.mxu0
      %v2202 = vadd.f32 %v2188, %v2201
      %v2203 = vpop.f32.mrf.mxu0
      %v2204 = vadd.f32 %v2190, %v2203
      %2205 = vdwg.mxu0
      %v2206 = vld [vmem:[#allocation2 + $0x2] sm:$0x1]
      %2208 = vset.pattern.permute.xlu0 0
      %2209 = vperm.xlu0 %2208, %v2043
      %v2210 = vpop.permute.xlu0 %2209
      %2213 = vset.pattern.permute.xlu0 0
      %2214 = vperm.xlu0 %2213, %v2044
      %v2215 = vpop.permute.xlu0 %2214
      %v2217 = vsel %vm1318, %v2210, -1e+30
      %v2218 = vsel %vm1319, %v2215, -1e+30
      %v2219 = vsel %vm1524, %v2217, -inf
      %v2220 = vsel %vm1524, %v2218, -inf
      %v2221 = vmax.f32 %v2219, %v2220
      %v2222 = vrot.slane %v2221, 4
      %v2223 = vmax.f32 %v2221, %v2222
      %v2224 = vrot.slane %v2223, 2
      %v2225 = vmax.f32 %v2223, %v2224
      %v2226 = vrot.slane %v2225, 1
      %v2227 = vmax.f32 %v2225, %v2226
      %v2228 = vmax.f32 %v2206, %v2227
      %v2229 = vsub.f32 %v2206, %v2228
      %v2230 = vmul.f32 %v2229, 1.442695
      %v2231 = vpow.pop %v2230
      %v2232 = vperm.slane %v2228, 0
      %v2233 = vsel %vm1318, %v2232, 0.0
      %v2234 = vsel %vm1319, %v2232, 0.0
      %v2235 = vsel %vm1524, %v2233, 0.0
      %2236 = vadd.xlane.f32.xlu0 %v2235
      %v2237 = vpop.xlane.xlu0 %2236
      %v2238 = vsel %vm1524, %v2234, 0.0
      %2239 = vadd.xlane.f32.xlu0 %v2238
      %v2240 = vpop.xlane.xlu0 %2239
      %v2241 = vld [vmem:[%s9 + $0x2] sm:$0x1]
      %v2242 = vperm.slane %v2241, 0
      %v2243 = vmul.f32 %v2242, %v1328
      %v2244 = vmul.f32 %v2242, %v1330
      %v2245 = vadd.f32 %v2243, %v2043
      %v2246 = vadd.f32 %v2244, %v2044
      %v2247 = vsub.f32 %v2245, %v2237
      %v2248 = vsub.f32 %v2246, %v2240
      %v2249 = vmul.f32 %v2247, 1.442695
      %v2250 = vpow.pop %v2249
      %v2251 = vmul.f32 %v2248, 1.442695
      %v2252 = vpow.pop %v2251
      %v2253 = vsel %vm1308, %v2250, 0.0
      %v2254 = vsel %vm1309, %v2252, 0.0
      %2256 = vset.pattern.permute.xlu0 0
      %2257 = vperm.xlu0 %2256, %v2253
      %v2258 = vpop.permute.xlu0 %2257
      %2261 = vset.pattern.permute.xlu0 0
      %2262 = vperm.xlu0 %2261, %v2254
      %v2263 = vpop.permute.xlu0 %2262
      %v2265 = vmul.f32 %v2258, %v2202
      %v2266 = vmul.f32 %v2263, %v2204
      %v2267 = vpack.c.bf16 %v2266, %v2265
      %2268 = vxpose.xlu0.c.b16.start [1/8] %v2267, 128
      %2269 = vxpose.xlu0.c.b16.cont [2/8] 0, 128
      %2270 = vxpose.xlu0.c.b16.cont [3/8] 0, 128
      %2271 = vxpose.xlu0.c.b16.cont [4/8] 0, 128
      %2272 = vxpose.xlu0.c.b16.cont [5/8] 0, 128
      %2273 = vxpose.xlu0.c.b16.cont [6/8] 0, 128
      %2274 = vxpose.xlu0.c.b16.cont [7/8] 0, 128
      %2275 = vxpose.xlu0.c.b16.end [8/8] 0, 128
      %v2276 = vpop.trf.xlu0
      %v2277 = vpop.trf.xlu0
      %v2278 = vpop.trf.xlu0
      %v2279 = vpop.trf.xlu0
      %v2280 = vpop.trf.xlu0
      %v2281 = vpop.trf.xlu0
      %v2282 = vpop.trf.xlu0
      %v2283 = vpop.trf.xlu0
      %v2285 = vsel %vm1524, %v2276, 0
      %v2288 = vsel %vm1524, %v2277, 0
      %v2291 = vsel %vm1524, %v2278, 0
      %v2294 = vsel %vm1524, %v2279, 0
      %v2297 = vsel %vm1524, %v2280, 0
      %2299 = vmatpush.bf16.msra.mxu0 0
      %2300 = vmatpush.bf16.msra.mxu0 0
      %2301 = vmatpush.bf16.msra.mxu0 0
      %2302 = vmatpush.bf16.msra.mxu0 0
      %2303 = vmatpush.bf16.msra.mxu0 0
      %2304 = vmatpush.bf16.msra.mxu0 0
      %2305 = vmatpush.bf16.msra.mxu0 0
      %2306 = vmatpush.bf16.msra.mxu0 %v1322
      %2307 = vmatmul.bf16.gmra.mxu0 %v2285
      %v2308 = vpop.f32.mrf.mxu0
      %v2309 = vadd.f32 0.0, %v2308
      %v2310 = vpop.f32.mrf.mxu0
      %v2311 = vadd.f32 0.0, %v2310
      %2312 = vmatmul.bf16.gmra.mxu0 %v2288
      %v2313 = vpop.f32.mrf.mxu0
      %v2314 = vadd.f32 0.0, %v2313
      %v2315 = vpop.f32.mrf.mxu0
      %v2316 = vadd.f32 0.0, %v2315
      %2317 = vmatmul.bf16.gmra.mxu0 %v2291
      %v2318 = vpop.f32.mrf.mxu0
      %v2319 = vadd.f32 0.0, %v2318
      %v2320 = vpop.f32.mrf.mxu0
      %v2321 = vadd.f32 0.0, %v2320
      %2322 = vmatmul.bf16.gmra.mxu0 %v2294
      %v2323 = vpop.f32.mrf.mxu0
      %v2324 = vadd.f32 0.0, %v2323
      %v2325 = vpop.f32.mrf.mxu0
      %v2326 = vadd.f32 0.0, %v2325
      %2327 = vmatmul.bf16.gmra.mxu0 %v2297
      %v2328 = vpop.f32.mrf.mxu0
      %v2329 = vadd.f32 0.0, %v2328
      %v2330 = vpop.f32.mrf.mxu0
      %2331 = vdwg.mxu0
      %s2332 = scalar_lea.vmem [#allocation3], 144
      %v2333 = vld [vmem:[%s2332] sm:$0xff]
      %v2334 = vld [vmem:[%s2332 + $0x8] sm:$0xff]
      %v2335 = vld [vmem:[%s2332 + $0x10] sm:$0xff]
      %v2336 = vld [vmem:[%s2332 + $0x18] sm:$0xff]
      %v2337 = vld [vmem:[%s2332 + $0x20] sm:$0xff]
      %v2338 = vld [vmem:[%s2332 + $0x28] sm:$0xff]
      %v2339 = vld [vmem:[%s2332 + $0x30] sm:$0xff]
      %v2340 = vld [vmem:[%s2332 + $0x38] sm:$0xff]
      %v2341 = vld [vmem:[%s2332 + $0x40] sm:$0x1]
      %v2342 = vperm.slane %v2231, 0
      %v2343 = vmul.f32 %v2333, %v2342
      %v2344 = vmul.f32 %v2334, %v2342
      %v2345 = vmul.f32 %v2335, %v2342
      %v2346 = vmul.f32 %v2336, %v2342
      %v2347 = vmul.f32 %v2337, %v2342
      %v2348 = vmul.f32 %v2338, %v2342
      %v2349 = vmul.f32 %v2339, %v2342
      %v2350 = vmul.f32 %v2340, %v2342
      %v2351 = vmul.f32 %v2341, %v2342
      %v2352 = vadd.f32 %v2343, %v2309
      %v2353 = vadd.f32 %v2344, %v2311
      %v2354 = vadd.f32 %v2345, %v2314
      %v2355 = vadd.f32 %v2346, %v2316
      %v2356 = vadd.f32 %v2347, %v2319
      %v2357 = vadd.f32 %v2348, %v2321
      %v2358 = vadd.f32 %v2349, %v2324
      %v2359 = vadd.f32 %v2350, %v2326
      %v2360 = vadd.f32 %v2351, %v2329
      %2361 = vst.msk [vmem:[%s2332] sm:$0xff] %vm1524, %v2352
      %2362 = vst.msk [vmem:[%s2332 + $0x8] sm:$0xff] %vm1524, %v2353
      %2363 = vst.msk [vmem:[%s2332 + $0x10] sm:$0xff] %vm1524, %v2354
      %2364 = vst.msk [vmem:[%s2332 + $0x18] sm:$0xff] %vm1524, %v2355
      %2365 = vst.msk [vmem:[%s2332 + $0x20] sm:$0xff] %vm1524, %v2356
      %2366 = vst.msk [vmem:[%s2332 + $0x28] sm:$0xff] %vm1524, %v2357
      %2367 = vst.msk [vmem:[%s2332 + $0x30] sm:$0xff] %vm1524, %v2358
      %2368 = vst.msk [vmem:[%s2332 + $0x38] sm:$0xff] %vm1524, %v2359
      %2369 = vst.msk [vmem:[%s2332 + $0x40] sm:$0x1] %vm1674, %v2360
      %2370 = vst.msk [vmem:[#allocation2 + $0x2] sm:$0x1] %vm1674, %v2228
      %p2371 = scmp.eq.s32.totalorder %s22, 1
      // Predicated region
      $region69: #{descriptor_network.6} parent=63 // pred_check
        %p2372 = pneg %p2371
      $region70: #{descriptor_network.6} parent=63 // pred_check_branch
        %2374 = sbr.rel (%p2372) target = $region72
      $region71: #{descriptor_network.6} parent=63 // pred_region
        %v2375 = vld [vmem:[#allocation3] sm:$0xff]
        %v2376 = vld [vmem:[#allocation3 + $0x8] sm:$0xff]
        %v2377 = vld [vmem:[#allocation3 + $0x10] sm:$0xff]
        %v2378 = vld [vmem:[#allocation3 + $0x18] sm:$0xff]
        %v2379 = vld [vmem:[#allocation3 + $0x20] sm:$0xff]
        %v2380 = vld [vmem:[#allocation3 + $0x28] sm:$0xff]
        %v2381 = vld [vmem:[#allocation3 + $0x30] sm:$0xff]
        %v2382 = vld [vmem:[#allocation3 + $0x38] sm:$0xff]
        %v2383 = vld [vmem:[#allocation3 + $0x40] sm:$0x1]
        %v2384 = vadd.f32 %v2383, 1e-10
        %v2385 = vrcp.pop %v2384
        %v2386 = vperm.slane %v2385, 0
        %v2387 = vmul.f32 %v2375, %v2386
        %v2388 = vmul.f32 %v2376, %v2386
        %v2389 = vmul.f32 %v2377, %v2386
        %v2390 = vmul.f32 %v2378, %v2386
        %v2391 = vmul.f32 %v2379, %v2386
        %v2392 = vmul.f32 %v2380, %v2386
        %v2393 = vmul.f32 %v2381, %v2386
        %v2394 = vmul.f32 %v2382, %v2386
        %v2395 = vadd.f32 %v2387, 0.0
        %v2396 = vadd.f32 %v2388, 0.0
        %v2397 = vadd.f32 %v2389, 0.0
        %v2398 = vadd.f32 %v2390, 0.0
        %v2399 = vadd.f32 %v2391, 0.0
        %v2400 = vadd.f32 %v2392, 0.0
        %v2401 = vadd.f32 %v2393, 0.0
        %v2402 = vadd.f32 %v2394, 0.0
        %v2403 = vld [vmem:[%s1985] sm:$0xff]
        %v2404 = vld [vmem:[%s1985 + $0x8] sm:$0xff]
        %v2405 = vld [vmem:[%s1985 + $0x10] sm:$0xff]
        %v2406 = vld [vmem:[%s1985 + $0x18] sm:$0xff]
        %v2407 = vld [vmem:[%s1985 + $0x20] sm:$0xff]
        %v2408 = vld [vmem:[%s1985 + $0x28] sm:$0xff]
        %v2409 = vld [vmem:[%s1985 + $0x30] sm:$0xff]
        %v2410 = vld [vmem:[%s1985 + $0x38] sm:$0xff]
        %v2411 = vld [vmem:[%s1985 + $0x40] sm:$0x1]
        %v2412 = vadd.f32 %v2411, 1e-10
        %v2413 = vrcp.pop %v2412
        %v2414 = vperm.slane %v2413, 0
        %v2415 = vmul.f32 %v2403, %v2414
        %v2416 = vmul.f32 %v2404, %v2414
        %v2417 = vmul.f32 %v2405, %v2414
        %v2418 = vmul.f32 %v2406, %v2414
        %v2419 = vmul.f32 %v2407, %v2414
        %v2420 = vmul.f32 %v2408, %v2414
        %v2421 = vmul.f32 %v2409, %v2414
        %v2422 = vmul.f32 %v2410, %v2414
        %v2423 = vadd.f32 %v2395, %v2415
        %v2424 = vadd.f32 %v2396, %v2416
        %v2425 = vadd.f32 %v2397, %v2417
        %v2426 = vadd.f32 %v2398, %v2418
        %v2427 = vadd.f32 %v2399, %v2419
        %v2428 = vadd.f32 %v2400, %v2420
        %v2429 = vadd.f32 %v2401, %v2421
        %v2430 = vadd.f32 %v2402, %v2422
        %v2431 = vld [vmem:[%s2332] sm:$0xff]
        %v2432 = vld [vmem:[%s2332 + $0x8] sm:$0xff]
        %v2433 = vld [vmem:[%s2332 + $0x10] sm:$0xff]
        %v2434 = vld [vmem:[%s2332 + $0x18] sm:$0xff]
        %v2435 = vld [vmem:[%s2332 + $0x20] sm:$0xff]
        %v2436 = vld [vmem:[%s2332 + $0x28] sm:$0xff]
        %v2437 = vld [vmem:[%s2332 + $0x30] sm:$0xff]
        %v2438 = vld [vmem:[%s2332 + $0x38] sm:$0xff]
        %v2439 = vld [vmem:[%s2332 + $0x40] sm:$0x1]
        %v2440 = vadd.f32 %v2439, 1e-10
        %v2441 = vrcp.pop %v2440
        %v2442 = vperm.slane %v2441, 0
        %v2443 = vmul.f32 %v2431, %v2442
        %v2444 = vmul.f32 %v2432, %v2442
        %v2445 = vmul.f32 %v2433, %v2442
        %v2446 = vmul.f32 %v2434, %v2442
        %v2447 = vmul.f32 %v2435, %v2442
        %v2448 = vmul.f32 %v2436, %v2442
        %v2449 = vmul.f32 %v2437, %v2442
        %v2450 = vmul.f32 %v2438, %v2442
        %v2451 = vadd.f32 %v2423, %v2443
        %v2452 = vadd.f32 %v2424, %v2444
        %v2453 = vadd.f32 %v2425, %v2445
        %v2454 = vadd.f32 %v2426, %v2446
        %v2455 = vadd.f32 %v2427, %v2447
        %v2456 = vadd.f32 %v2428, %v2448
        %v2457 = vadd.f32 %v2429, %v2449
        %v2458 = vadd.f32 %v2430, %v2450
        %v2459 = vlaneseq
        %v2460 = vshrl.u32 %v2459, 7
        %v2461 = vadd.s32 %v2460, 8
        %v2462 = vadd.s32 %v2460, 16
        %v2463 = vadd.s32 %v2460, 24
        %v2464 = vadd.s32 %v2460, 32
        %v2465 = vadd.s32 %v2460, 40
        %v2466 = vadd.s32 %v2460, 48
        %v2467 = vadd.s32 %v2460, 56
        %vm2468 = vcmp.eq.s32.totalorder %v2460, %v1311
        %vm2469 = vcmp.eq.s32.totalorder %v2461, %v1311
        %vm2470 = vcmp.eq.s32.totalorder %v2462, %v1311
        %vm2471 = vcmp.eq.s32.totalorder %v2463, %v1311
        %vm2472 = vcmp.eq.s32.totalorder %v2464, %v1311
        %vm2473 = vcmp.eq.s32.totalorder %v2465, %v1311
        %vm2474 = vcmp.eq.s32.totalorder %v2466, %v1311
        %vm2475 = vcmp.eq.s32.totalorder %v2467, %v1311
        %v2476 = vsel %vm2468, 1, 0
        %v2477 = vsel %vm2469, 1, 0
        %v2478 = vsel %vm2470, 1, 0
        %v2479 = vsel %vm2471, 1, 0
        %v2480 = vsel %vm2472, 1, 0
        %v2481 = vsel %vm2473, 1, 0
        %v2482 = vsel %vm2474, 1, 0
        %v2483 = vsel %vm2475, 1, 0
        %v2484 = vcvt.s32.f32 %v2476
        %v2485 = vcvt.s32.f32 %v2477
        %v2486 = vcvt.s32.f32 %v2478
        %v2487 = vcvt.s32.f32 %v2479
        %v2488 = vcvt.s32.f32 %v2480
        %v2489 = vcvt.s32.f32 %v2481
        %v2490 = vcvt.s32.f32 %v2482
        %v2491 = vcvt.s32.f32 %v2483
        %2492 = vxpose.xlu0.b32.start [1/16] %v2451, 128
        %2493 = vxpose.xlu0.b32.cont [2/16] %v2452, 128
        %2494 = vxpose.xlu0.b32.cont [3/16] %v2453, 128
        %2495 = vxpose.xlu0.b32.cont [4/16] %v2454, 128
        %2496 = vxpose.xlu0.b32.cont [5/16] %v2455, 128
        %2497 = vxpose.xlu0.b32.cont [6/16] %v2456, 128
        %2498 = vxpose.xlu0.b32.cont [7/16] %v2457, 128
        %2499 = vxpose.xlu0.b32.cont [8/16] %v2458, 128
        %2500 = vxpose.xlu0.b32.cont [9/16] 0.0, 128
        %2501 = vxpose.xlu0.b32.cont [10/16] 0.0, 128
        %2502 = vxpose.xlu0.b32.cont [11/16] 0.0, 128
        %2503 = vxpose.xlu0.b32.cont [12/16] 0.0, 128
        %2504 = vxpose.xlu0.b32.cont [13/16] 0.0, 128
        %2505 = vxpose.xlu0.b32.cont [14/16] 0.0, 128
        %2506 = vxpose.xlu0.b32.cont [15/16] 0.0, 128
        %2507 = vxpose.xlu0.b32.end [16/16] 0.0, 128
        %v2508 = vpop.trf.xlu0
        %v2509 = vpop.trf.xlu0
        %v2510 = vpop.trf.xlu0
        %v2511 = vpop.trf.xlu0
        %v2512 = vpop.trf.xlu0
        %v2513 = vpop.trf.xlu0
        %v2514 = vpop.trf.xlu0
        %v2515 = vpop.trf.xlu0
        %v2516 = vpop.trf.xlu0
        %v2517 = vpop.trf.xlu0
        %v2518 = vpop.trf.xlu0
        %v2519 = vpop.trf.xlu0
        %v2520 = vpop.trf.xlu0
        %v2521 = vpop.trf.xlu0
        %v2522 = vpop.trf.xlu0
        %v2523 = vpop.trf.xlu0
        %vm2524 = vcmask 523264
        %v2526 = vsel %vm2524, %v2508, 0
        %v2529 = vsel %vm2524, %v2509, 0
        %2531 = vmatpush.msra.mxu0 0.0
        %2532 = vmatpush.msra.mxu0 0.0
        %2533 = vmatpush.msra.mxu0 0.0
        %2534 = vmatpush.msra.mxu0 0.0
        %2535 = vmatpush.msra.mxu0 0.0
        %2536 = vmatpush.msra.mxu0 0.0
        %2537 = vmatpush.msra.mxu0 0.0
        %2538 = vmatpush.msra.mxu0 0.0
        %2539 = vmatpush.msra.mxu0 %v2491
        %2540 = vmatpush.msra.mxu0 %v2490
        %2541 = vmatpush.msra.mxu0 %v2489
        %2542 = vmatpush.msra.mxu0 %v2488
        %2543 = vmatpush.msra.mxu0 %v2487
        %2544 = vmatpush.msra.mxu0 %v2486
        %2545 = vmatpush.msra.mxu0 %v2485
        %2546 = vmatpush.msra.mxu0 %v2484
        %2547 = vmatmul.f32.gmra.mxu0 %v2526
        %v2548 = vpop.f32.mrf.mxu0
        %v2549 = vadd.f32 0.0, %v2548
        %2550 = vmatmul.f32.gmra.mxu0 %v2529
        %v2551 = vpop.f32.mrf.mxu0
        %v2552 = vadd.f32 0.0, %v2551
        %2553 = vdwg.mxu0
        %v2554 = vmul.f32 %v2549, 0.33333334
        %v2555 = vmul.f32 %v2552, 0.33333334
        %v2556 = vld [vmem:[%s10] sm:$0xff]
        %v2557 = vld [vmem:[%s10 + $0x8] sm:$0xff]
        %v2558 = vadd.f32 %v2554, %v2556
        %v2559 = vadd.f32 %v2555, %v2557
        %2560 = vst.msk [vmem:[%s11] sm:$0xff] %vm2524, %v2558
        %2561 = vst.msk [vmem:[%s11 + $0x8] sm:$0xff] %vm2524, %v2559
      $region72: #{descriptor_network.6} parent=63 // pred_fallthru
        _
      // Predicated region
      $region73: #{descriptor_network.6} parent=63 // pred_check
        %p2562 = pneg %p281
      $region74: #{descriptor_network.6} parent=63 // pred_check_branch
        %2564 = sbr.rel (%p2562) target = $region76
      $region75: #{descriptor_network.6} parent=63 // pred_region
        _
      $region76: #{descriptor_network.6} parent=63 // pred_fallthru
        _
      // Predicated region
      $region77: #{descriptor_network.6} parent=63 // pred_check
        %p2565 = pneg %p281
      $region78: #{descriptor_network.6} parent=63 // pred_check_branch
        %2567 = sbr.rel (%p2565) target = $region80
      $region79: #{descriptor_network.6} parent=63 // pred_region
        _
      $region80: #{descriptor_network.6} parent=63 // pred_fallthru
        _
    $region64: #{descriptor_network.6} parent=5 // pred_fallthru
      _
    %p2568 = scmp.le.s32.totalorder 2, %s17
    // Predicated region
    $region81: #{descriptor_network.6} parent=5 // pred_check
      %p2569 = pneg %p2568
    $region82: #{descriptor_network.6} parent=5 // pred_check_branch
      %2571 = sbr.rel (%p2569) target = $region84
    $region83: #{descriptor_network.6} parent=5 // pred_region
      %s2572 = ssub.s32 %s17, 2
    $region84: #{descriptor_network.6} parent=5 // pred_fallthru
      _
  $region6: #{descriptor_network.6} parent=0 // loop_footer
    %s21 = sadd.s32 1, %s17
  $region7: #{descriptor_network.6} parent=0 // loop_footer_branch
    %16 = sbr.rel target = $region3
  $region8: #{descriptor_network.6} parent=0 // loop_exit
    _

// kernel: descriptor_network.9
$region0: #{descriptor_network.9}
  #allocation0 [shape = 'u32[]', space=smem, size = 0x4, offset = 0x4, fixed_abs, tag = 'smem constant byte address 0x4 - core index']
  #allocation1 [shape = 'u32[72,128]{1,0:T(1,128)}', space=vmem, size = 0x9000, scoped, tag = 'internal scratch']
  #allocation2 [shape = 'f32[3,3]{1,0:T(4,128)}', space=vmem, size = 0x800, scoped, tag = 'scratch operand']
  #allocation3 [shape = 'f32[3,65,3]{2,1,0:T(8,128)}', space=vmem, size = 0x1b000, scoped, tag = 'scratch operand']
  %s0 = inlined_call_operand.vmem [shape: s32[16,1], index: 0, kind: input, shape index: {}]
  %s1 = inlined_call_operand.vmem [shape: f32[16,1], index: 1, kind: input, shape index: {}]
  %s2 = inlined_call_operand.vmem [shape: bf16[16,64], index: 2, kind: input, shape index: {}]
  %s3 = inlined_call_operand.vmem [shape: bf16[64,1536], index: 3, kind: input, shape index: {}]
  %s4 = inlined_call_operand.vmem [shape: f32[1,1536], index: 4, kind: input, shape index: {}]
  %s5 = inlined_call_operand.vmem [shape: f32[3,256], index: 5, kind: input, shape index: {}]
  %s6 = inlined_call_operand.vmem [shape: f32[3,1], index: 6, kind: input, shape index: {}]
  %s7 = inlined_call_operand.vmem [shape: bf16[3,256,65], index: 7, kind: input, shape index: {}]
  %s8 = inlined_call_operand.vmem [shape: f32[3,65], index: 8, kind: input, shape index: {}]
  %s9 = inlined_call_operand.vmem [shape: f32[3,1], index: 9, kind: input, shape index: {}]
  %s10 = inlined_call_operand.hbm [shape: f32[3,64], index: 10, kind: output, shape index: {}]
  %s11 = sld [smem:[#allocation0]]
  $region58: #{descriptor_network.9} parent=0
    _
  %s13 = ssub.s32 1, %s11
  %s14 = scalar_select 0, %s13, %s11
  $region1: #{descriptor_network.9} parent=0
    #allocation4 [shape = 'u8[2048]{0}', space=vmem, size = 0x800, scoped, tag = 'output window, operand 0, single buffered']
    #allocation5 [shape = 's32[1]{0}', space=sflag, size = 0x4, scoped, tag = 'scoped memory for descriptor_network.9']
    %15 = vsyncpa [#allocation5], 0
    // Predicated region
    $region2: #{descriptor_network.9} parent=1 // pred_check
      _
    $region3: #{descriptor_network.9} parent=1 // pred_check_branch
      %17 = sbr.rel (0) target = $region5
    $region4: #{descriptor_network.9} parent=1 // pred_region
      _
    $region5: #{descriptor_network.9} parent=1 // pred_fallthru
      _
    // Predicated region
    $region6: #{descriptor_network.9} parent=1 // pred_check
      _
    $region7: #{descriptor_network.9} parent=1 // pred_check_branch
      %19 = sbr.rel (0) target = $region9
    $region8: #{descriptor_network.9} parent=1 // pred_region
      _
    $region9: #{descriptor_network.9} parent=1 // pred_fallthru
      _
    // Predicated region
    $region10: #{descriptor_network.9} parent=1 // pred_check
      _
    $region11: #{descriptor_network.9} parent=1 // pred_check_branch
      %21 = sbr.rel (0) target = $region13
    $region12: #{descriptor_network.9} parent=1 // pred_region
      _
    $region13: #{descriptor_network.9} parent=1 // pred_fallthru
      _
    // Predicated region
    $region14: #{descriptor_network.9} parent=1 // pred_check
      _
    $region15: #{descriptor_network.9} parent=1 // pred_check_branch
      %23 = sbr.rel (0) target = $region17
    $region16: #{descriptor_network.9} parent=1 // pred_region
      _
    $region17: #{descriptor_network.9} parent=1 // pred_fallthru
      _
    // Predicated region
    $region18: #{descriptor_network.9} parent=1 // pred_check
      _
    $region19: #{descriptor_network.9} parent=1 // pred_check_branch
      %25 = sbr.rel (0) target = $region21
    $region20: #{descriptor_network.9} parent=1 // pred_region
      _
    $region21: #{descriptor_network.9} parent=1 // pred_fallthru
      _
    // Predicated region
    $region22: #{descriptor_network.9} parent=1 // pred_check
      _
    $region23: #{descriptor_network.9} parent=1 // pred_check_branch
      %27 = sbr.rel (0) target = $region25
    $region24: #{descriptor_network.9} parent=1 // pred_region
      _
    $region25: #{descriptor_network.9} parent=1 // pred_fallthru
      _
    // Predicated region
    $region26: #{descriptor_network.9} parent=1 // pred_check
      _
    $region27: #{descriptor_network.9} parent=1 // pred_check_branch
      %29 = sbr.rel (0) target = $region29
    $region28: #{descriptor_network.9} parent=1 // pred_region
      _
    $region29: #{descriptor_network.9} parent=1 // pred_fallthru
      _
    // Predicated region
    $region30: #{descriptor_network.9} parent=1 // pred_check
      _
    $region31: #{descriptor_network.9} parent=1 // pred_check_branch
      %31 = sbr.rel (0) target = $region33
    $region32: #{descriptor_network.9} parent=1 // pred_region
      _
    $region33: #{descriptor_network.9} parent=1 // pred_fallthru
      _
    // Predicated region
    $region34: #{descriptor_network.9} parent=1 // pred_check
      _
    $region35: #{descriptor_network.9} parent=1 // pred_check_branch
      %33 = sbr.rel (0) target = $region37
    $region36: #{descriptor_network.9} parent=1 // pred_region
      _
    $region37: #{descriptor_network.9} parent=1 // pred_fallthru
      _
    // Predicated region
    $region38: #{descriptor_network.9} parent=1 // pred_check
      _
    $region39: #{descriptor_network.9} parent=1 // pred_check_branch
      %35 = sbr.rel (0) target = $region41
    $region40: #{descriptor_network.9} parent=1 // pred_region
      _
    $region41: #{descriptor_network.9} parent=1 // pred_fallthru
      _
    %p37 = scmp.eq.s32.totalorder 0, 0
    // Predicated region
    $region42: #{descriptor_network.9} parent=1 // pred_check
      %p38 = pneg %p37
    $region43: #{descriptor_network.9} parent=1 // pred_check_branch
      %40 = sbr.rel (%p38) target = $region45
    $region44: #{descriptor_network.9} parent=1 // pred_region
      %vm41 = vcmask 18432
      %42 = vst.msk [vmem:[#allocation2] sm:$0x7] %vm41, -1e+30
      %vm43 = vcmask 23552
      %44 = vst.msk [vmem:[#allocation3] sm:$0xff] %vm43, 0.0
      %45 = vst.msk [vmem:[#allocation3 + $0x8] sm:$0xff] %vm43, 0.0
      %46 = vst.msk [vmem:[#allocation3 + $0x10] sm:$0xff] %vm43, 0.0
      %47 = vst.msk [vmem:[#allocation3 + $0x18] sm:$0xff] %vm43, 0.0
      %48 = vst.msk [vmem:[#allocation3 + $0x20] sm:$0xff] %vm43, 0.0
      %49 = vst.msk [vmem:[#allocation3 + $0x28] sm:$0xff] %vm43, 0.0
      %50 = vst.msk [vmem:[#allocation3 + $0x30] sm:$0xff] %vm43, 0.0
      %51 = vst.msk [vmem:[#allocation3 + $0x38] sm:$0xff] %vm43, 0.0
      %vm52 = vcmask 16384
      %53 = vst.msk [vmem:[#allocation3 + $0x40] sm:$0x1] %vm52, 0.0
      %54 = vst.msk [vmem:[#allocation3 + $0x48] sm:$0xff] %vm43, 0.0
      %55 = vst.msk [vmem:[#allocation3 + $0x50] sm:$0xff] %vm43, 0.0
      %56 = vst.msk [vmem:[#allocation3 + $0x58] sm:$0xff] %vm43, 0.0
      %57 = vst.msk [vmem:[#allocation3 + $0x60] sm:$0xff] %vm43, 0.0
      %58 = vst.msk [vmem:[#allocation3 + $0x68] sm:$0xff] %vm43, 0.0
      %59 = vst.msk [vmem:[#allocation3 + $0x70] sm:$0xff] %vm43, 0.0
      %60 = vst.msk [vmem:[#allocation3 + $0x78] sm:$0xff] %vm43, 0.0
      %61 = vst.msk [vmem:[#allocation3 + $0x80] sm:$0xff] %vm43, 0.0
      %62 = vst.msk [vmem:[#allocation3 + $0x88] sm:$0x1] %vm52, 0.0
      %63 = vst.msk [vmem:[#allocation3 + $0x90] sm:$0xff] %vm43, 0.0
      %64 = vst.msk [vmem:[#allocation3 + $0x98] sm:$0xff] %vm43, 0.0
      %65 = vst.msk [vmem:[#allocation3 + $0xa0] sm:$0xff] %vm43, 0.0
      %66 = vst.msk [vmem:[#allocation3 + $0xa8] sm:$0xff] %vm43, 0.0
      %67 = vst.msk [vmem:[#allocation3 + $0xb0] sm:$0xff] %vm43, 0.0
      %68 = vst.msk [vmem:[#allocation3 + $0xb8] sm:$0xff] %vm43, 0.0
      %69 = vst.msk [vmem:[#allocation3 + $0xc0] sm:$0xff] %vm43, 0.0
      %70 = vst.msk [vmem:[#allocation3 + $0xc8] sm:$0xff] %vm43, 0.0
      %71 = vst.msk [vmem:[#allocation3 + $0xd0] sm:$0x1] %vm52, 0.0
    $region45: #{descriptor_network.9} parent=1 // pred_fallthru
      _
    %v72 = vld [vmem:[%s2] sm:$0xf]
    %v73 = vld [vmem:[%s2 + $0x4] sm:$0xf]
    %v74 = vld [vmem:[%s3] sm:$0xff]
    %v75 = vld [vmem:[%s3 + $0x8] sm:$0xff]
    %v76 = vld [vmem:[%s3 + $0x10] sm:$0xff]
    %v77 = vld [vmem:[%s3 + $0x18] sm:$0xff]
    %v78 = vld [vmem:[%s3 + $0x20] sm:$0xff]
    %v79 = vld [vmem:[%s3 + $0x28] sm:$0xff]
    %v80 = vld [vmem:[%s3 + $0x30] sm:$0xff]
    %v81 = vld [vmem:[%s3 + $0x38] sm:$0xff]
    %v82 = vld [vmem:[%s3 + $0x40] sm:$0xff]
    %v83 = vld [vmem:[%s3 + $0x48] sm:$0xff]
    %v84 = vld [vmem:[%s3 + $0x50] sm:$0xff]
    %v85 = vld [vmem:[%s3 + $0x58] sm:$0xff]
    %v86 = vld [vmem:[%s3 + $0x60] sm:$0xff]
    %v87 = vld [vmem:[%s3 + $0x68] sm:$0xff]
    %v88 = vld [vmem:[%s3 + $0x70] sm:$0xff]
    %v89 = vld [vmem:[%s3 + $0x78] sm:$0xff]
    %v90 = vld [vmem:[%s3 + $0x80] sm:$0xff]
    %v91 = vld [vmem:[%s3 + $0x88] sm:$0xff]
    %v92 = vld [vmem:[%s3 + $0x90] sm:$0xff]
    %v93 = vld [vmem:[%s3 + $0x98] sm:$0xff]
    %v94 = vld [vmem:[%s3 + $0xa0] sm:$0xff]
    %v95 = vld [vmem:[%s3 + $0xa8] sm:$0xff]
    %v96 = vld [vmem:[%s3 + $0xb0] sm:$0xff]
    %v97 = vld [vmem:[%s3 + $0xb8] sm:$0xff]
    %v98 = vld [vmem:[%s3 + $0xc0] sm:$0xff]
    %v99 = vld [vmem:[%s3 + $0xc8] sm:$0xff]
    %v100 = vld [vmem:[%s3 + $0xd0] sm:$0xff]
    %v101 = vld [vmem:[%s3 + $0xd8] sm:$0xff]
    %v102 = vld [vmem:[%s3 + $0xe0] sm:$0xff]
    %v103 = vld [vmem:[%s3 + $0xe8] sm:$0xff]
    %v104 = vld [vmem:[%s3 + $0xf0] sm:$0xff]
    %v105 = vld [vmem:[%s3 + $0xf8] sm:$0xff]
    %v106 = vld [vmem:[%s3 + $0x100] sm:$0xff]
    %v107 = vld [vmem:[%s3 + $0x108] sm:$0xff]
    %v108 = vld [vmem:[%s3 + $0x110] sm:$0xff]
    %v109 = vld [vmem:[%s3 + $0x118] sm:$0xff]
    %v110 = vld [vmem:[%s3 + $0x120] sm:$0xff]
    %v111 = vld [vmem:[%s3 + $0x128] sm:$0xff]
    %v112 = vld [vmem:[%s3 + $0x130] sm:$0xff]
    %v113 = vld [vmem:[%s3 + $0x138] sm:$0xff]
    %v114 = vld [vmem:[%s3 + $0x140] sm:$0xff]
    %v115 = vld [vmem:[%s3 + $0x148] sm:$0xff]
    %v116 = vld [vmem:[%s3 + $0x150] sm:$0xff]
    %v117 = vld [vmem:[%s3 + $0x158] sm:$0xff]
    %v118 = vld [vmem:[%s3 + $0x160] sm:$0xff]
    %v119 = vld [vmem:[%s3 + $0x168] sm:$0xff]
    %v120 = vld [vmem:[%s3 + $0x170] sm:$0xff]
    %v121 = vld [vmem:[%s3 + $0x178] sm:$0xff]
    %v122 = vld [vmem:[%s4] sm:$0xff]
    %v123 = vld [vmem:[%s4 + $0x8] sm:$0xf]
    %v126 = vperm.slane %v122, 0
    %v127 = vperm.slane %v122, 1
    %v128 = vperm.slane %v122, 2
    %v129 = vperm.slane %v122, 3
    %v130 = vperm.slane %v122, 4
    %v131 = vperm.slane %v122, 5
    %v132 = vperm.slane %v122, 6
    %v133 = vperm.slane %v122, 7
    %v134 = vperm.slane %v123, 0
    %v135 = vperm.slane %v123, 1
    %v136 = vperm.slane %v123, 2
    %v137 = vperm.slane %v123, 3
    %v152 = vunpack.c.l.b16 %v72
    %v153 = vunpack.c.l.b16 %v73
    %v154 = vpack.c.b16 %v153, %v152
    %v203 = vunpack.c.l.b16 %v74
    %v204 = vunpack.c.h.b16 %v74
    %v205 = vunpack.c.l.b16 %v75
    %v206 = vunpack.c.h.b16 %v75
    %v207 = vunpack.c.l.b16 %v76
    %v208 = vunpack.c.h.b16 %v76
    %v209 = vunpack.c.l.b16 %v77
    %v210 = vunpack.c.h.b16 %v77
    %v211 = vunpack.c.l.b16 %v78
    %v212 = vunpack.c.h.b16 %v78
    %v213 = vunpack.c.l.b16 %v79
    %v214 = vunpack.c.h.b16 %v79
    %v215 = vunpack.c.l.b16 %v80
    %v216 = vunpack.c.h.b16 %v80
    %v217 = vunpack.c.l.b16 %v81
    %v218 = vunpack.c.h.b16 %v81
    %v219 = vunpack.c.l.b16 %v82
    %v220 = vunpack.c.h.b16 %v82
    %v221 = vunpack.c.l.b16 %v83
    %v222 = vunpack.c.h.b16 %v83
    %v223 = vunpack.c.l.b16 %v84
    %v224 = vunpack.c.h.b16 %v84
    %v225 = vunpack.c.l.b16 %v85
    %v226 = vunpack.c.h.b16 %v85
    %v227 = vunpack.c.l.b16 %v86
    %v228 = vunpack.c.h.b16 %v86
    %v229 = vunpack.c.l.b16 %v87
    %v230 = vunpack.c.h.b16 %v87
    %v231 = vunpack.c.l.b16 %v88
    %v232 = vunpack.c.h.b16 %v88
    %v233 = vunpack.c.l.b16 %v89
    %v234 = vunpack.c.h.b16 %v89
    %v235 = vunpack.c.l.b16 %v90
    %v236 = vunpack.c.h.b16 %v90
    %v237 = vunpack.c.l.b16 %v91
    %v238 = vunpack.c.h.b16 %v91
    %v239 = vunpack.c.l.b16 %v92
    %v240 = vunpack.c.h.b16 %v92
    %v241 = vunpack.c.l.b16 %v93
    %v242 = vunpack.c.h.b16 %v93
    %v243 = vunpack.c.l.b16 %v94
    %v244 = vunpack.c.h.b16 %v94
    %v245 = vunpack.c.l.b16 %v95
    %v246 = vunpack.c.h.b16 %v95
    %v247 = vunpack.c.l.b16 %v96
    %v248 = vunpack.c.h.b16 %v96
    %v249 = vunpack.c.l.b16 %v97
    %v250 = vunpack.c.h.b16 %v97
    %v251 = vunpack.c.l.b16 %v98
    %v252 = vunpack.c.h.b16 %v98
    %v253 = vunpack.c.l.b16 %v99
    %v254 = vunpack.c.h.b16 %v99
    %v255 = vunpack.c.l.b16 %v100
    %v256 = vunpack.c.h.b16 %v100
    %v257 = vunpack.c.l.b16 %v101
    %v258 = vunpack.c.h.b16 %v101
    %v259 = vunpack.c.l.b16 %v102
    %v260 = vunpack.c.h.b16 %v102
    %v261 = vunpack.c.l.b16 %v103
    %v262 = vunpack.c.h.b16 %v103
    %v263 = vunpack.c.l.b16 %v104
    %v264 = vunpack.c.h.b16 %v104
    %v265 = vunpack.c.l.b16 %v105
    %v266 = vunpack.c.h.b16 %v105
    %v267 = vunpack.c.l.b16 %v106
    %v268 = vunpack.c.h.b16 %v106
    %v269 = vunpack.c.l.b16 %v107
    %v270 = vunpack.c.h.b16 %v107
    %v271 = vunpack.c.l.b16 %v108
    %v272 = vunpack.c.h.b16 %v108
    %v273 = vunpack.c.l.b16 %v109
    %v274 = vunpack.c.h.b16 %v109
    %v275 = vunpack.c.l.b16 %v110
    %v276 = vunpack.c.h.b16 %v110
    %v277 = vunpack.c.l.b16 %v111
    %v278 = vunpack.c.h.b16 %v111
    %v279 = vunpack.c.l.b16 %v112
    %v280 = vunpack.c.h.b16 %v112
    %v281 = vunpack.c.l.b16 %v113
    %v282 = vunpack.c.h.b16 %v113
    %v283 = vunpack.c.l.b16 %v114
    %v284 = vunpack.c.h.b16 %v114
    %v285 = vunpack.c.l.b16 %v115
    %v286 = vunpack.c.h.b16 %v115
    %v287 = vunpack.c.l.b16 %v116
    %v288 = vunpack.c.h.b16 %v116
    %v289 = vunpack.c.l.b16 %v117
    %v290 = vunpack.c.h.b16 %v117
    %v291 = vunpack.c.l.b16 %v118
    %v292 = vunpack.c.h.b16 %v118
    %v293 = vunpack.c.l.b16 %v119
    %v294 = vunpack.c.h.b16 %v119
    %v295 = vunpack.c.l.b16 %v120
    %v296 = vunpack.c.h.b16 %v120
    %v297 = vunpack.c.l.b16 %v121
    %v298 = vunpack.c.h.b16 %v121
    %v299 = vpack.c.b16 %v215, %v203
    %v300 = vpack.c.b16 %v216, %v204
    %v301 = vpack.c.b16 %v217, %v205
    %v302 = vpack.c.b16 %v218, %v206
    %v303 = vpack.c.b16 %v219, %v207
    %v304 = vpack.c.b16 %v220, %v208
    %v305 = vpack.c.b16 %v221, %v209
    %v306 = vpack.c.b16 %v222, %v210
    %v307 = vpack.c.b16 %v223, %v211
    %v308 = vpack.c.b16 %v224, %v212
    %v309 = vpack.c.b16 %v225, %v213
    %v310 = vpack.c.b16 %v226, %v214
    %v311 = vpack.c.b16 %v239, %v227
    %v312 = vpack.c.b16 %v240, %v228
    %v313 = vpack.c.b16 %v241, %v229
    %v314 = vpack.c.b16 %v242, %v230
    %v315 = vpack.c.b16 %v243, %v231
    %v316 = vpack.c.b16 %v244, %v232
    %v317 = vpack.c.b16 %v245, %v233
    %v318 = vpack.c.b16 %v246, %v234
    %v319 = vpack.c.b16 %v247, %v235
    %v320 = vpack.c.b16 %v248, %v236
    %v321 = vpack.c.b16 %v249, %v237
    %v322 = vpack.c.b16 %v250, %v238
    %v323 = vpack.c.b16 %v263, %v251
    %v324 = vpack.c.b16 %v264, %v252
    %v325 = vpack.c.b16 %v265, %v253
    %v326 = vpack.c.b16 %v266, %v254
    %v327 = vpack.c.b16 %v267, %v255
    %v328 = vpack.c.b16 %v268, %v256
    %v329 = vpack.c.b16 %v269, %v257
    %v330 = vpack.c.b16 %v270, %v258
    %v331 = vpack.c.b16 %v271, %v259
    %v332 = vpack.c.b16 %v272, %v260
    %v333 = vpack.c.b16 %v273, %v261
    %v334 = vpack.c.b16 %v274, %v262
    %v335 = vpack.c.b16 %v287, %v275
    %v336 = vpack.c.b16 %v288, %v276
    %v337 = vpack.c.b16 %v289, %v277
    %v338 = vpack.c.b16 %v290, %v278
    %v339 = vpack.c.b16 %v291, %v279
    %v340 = vpack.c.b16 %v292, %v280
    %v341 = vpack.c.b16 %v293, %v281
    %v342 = vpack.c.b16 %v294, %v282
    %v343 = vpack.c.b16 %v295, %v283
    %v344 = vpack.c.b16 %v296, %v284
    %v345 = vpack.c.b16 %v297, %v285
    %v346 = vpack.c.b16 %v298, %v286
    %vm395 = vcmask 523264
    %v397 = vsel %vm395, %v154, 0
    %399 = vmatpush.bf16.msra.mxu0 0
    %400 = vmatpush.bf16.msra.mxu0 0
    %401 = vmatpush.bf16.msra.mxu0 0
    %402 = vmatpush.bf16.msra.mxu0 0
    %403 = vmatpush.bf16.msra.mxu0 %v335
    %404 = vmatpush.bf16.msra.mxu0 %v323
    %405 = vmatpush.bf16.msra.mxu0 %v311
    %406 = vmatpush.bf16.msra.mxu0 %v299
    %407 = vmatmul.bf16.gmra.mxu0 %v397
    %v408 = vpop.f32.mrf.mxu0
    %v409 = vadd.f32 %v126, %v408
    %v410 = vpop.f32.mrf.mxu0
    %v411 = vadd.f32 %v126, %v410
    %412 = vdwg.mxu0
    %413 = vmatpush.bf16.msra.mxu0 0
    %414 = vmatpush.bf16.msra.mxu0 0
    %415 = vmatpush.bf16.msra.mxu0 0
    %416 = vmatpush.bf16.msra.mxu0 0
    %417 = vmatpush.bf16.msra.mxu0 %v336
    %418 = vmatpush.bf16.msra.mxu0 %v324
    %419 = vmatpush.bf16.msra.mxu0 %v312
    %420 = vmatpush.bf16.msra.mxu0 %v300
    %421 = vmatmul.bf16.gmra.mxu0 %v397
    %v422 = vpop.f32.mrf.mxu0
    %v423 = vadd.f32 %v127, %v422
    %v424 = vpop.f32.mrf.mxu0
    %v425 = vadd.f32 %v127, %v424
    %426 = vdwg.mxu0
    %427 = vmatpush.bf16.msra.mxu0 0
    %428 = vmatpush.bf16.msra.mxu0 0
    %429 = vmatpush.bf16.msra.mxu0 0
    %430 = vmatpush.bf16.msra.mxu0 0
    %431 = vmatpush.bf16.msra.mxu0 %v337
    %432 = vmatpush.bf16.msra.mxu0 %v325
    %433 = vmatpush.bf16.msra.mxu0 %v313
    %434 = vmatpush.bf16.msra.mxu0 %v301
    %435 = vmatmul.bf16.gmra.mxu0 %v397
    %v436 = vpop.f32.mrf.mxu0
    %v437 = vadd.f32 %v128, %v436
    %v438 = vpop.f32.mrf.mxu0
    %v439 = vadd.f32 %v128, %v438
    %440 = vdwg.mxu0
    %441 = vmatpush.bf16.msra.mxu0 0
    %442 = vmatpush.bf16.msra.mxu0 0
    %443 = vmatpush.bf16.msra.mxu0 0
    %444 = vmatpush.bf16.msra.mxu0 0
    %445 = vmatpush.bf16.msra.mxu0 %v338
    %446 = vmatpush.bf16.msra.mxu0 %v326
    %447 = vmatpush.bf16.msra.mxu0 %v314
    %448 = vmatpush.bf16.msra.mxu0 %v302
    %449 = vmatmul.bf16.gmra.mxu0 %v397
    %v450 = vpop.f32.mrf.mxu0
    %v451 = vadd.f32 %v129, %v450
    %v452 = vpop.f32.mrf.mxu0
    %v453 = vadd.f32 %v129, %v452
    %454 = vdwg.mxu0
    %455 = vmatpush.bf16.msra.mxu0 0
    %456 = vmatpush.bf16.msra.mxu0 0
    %457 = vmatpush.bf16.msra.mxu0 0
    %458 = vmatpush.bf16.msra.mxu0 0
    %459 = vmatpush.bf16.msra.mxu0 %v339
    %460 = vmatpush.bf16.msra.mxu0 %v327
    %461 = vmatpush.bf16.msra.mxu0 %v315
    %462 = vmatpush.bf16.msra.mxu0 %v303
    %463 = vmatmul.bf16.gmra.mxu0 %v397
    %v464 = vpop.f32.mrf.mxu0
    %v465 = vadd.f32 %v130, %v464
    %v466 = vpop.f32.mrf.mxu0
    %v467 = vadd.f32 %v130, %v466
    %468 = vdwg.mxu0
    %469 = vmatpush.bf16.msra.mxu0 0
    %470 = vmatpush.bf16.msra.mxu0 0
    %471 = vmatpush.bf16.msra.mxu0 0
    %472 = vmatpush.bf16.msra.mxu0 0
    %473 = vmatpush.bf16.msra.mxu0 %v340
    %474 = vmatpush.bf16.msra.mxu0 %v328
    %475 = vmatpush.bf16.msra.mxu0 %v316
    %476 = vmatpush.bf16.msra.mxu0 %v304
    %477 = vmatmul.bf16.gmra.mxu0 %v397
    %v478 = vpop.f32.mrf.mxu0
    %v479 = vadd.f32 %v131, %v478
    %v480 = vpop.f32.mrf.mxu0
    %v481 = vadd.f32 %v131, %v480
    %482 = vdwg.mxu0
    %483 = vmatpush.bf16.msra.mxu0 0
    %484 = vmatpush.bf16.msra.mxu0 0
    %485 = vmatpush.bf16.msra.mxu0 0
    %486 = vmatpush.bf16.msra.mxu0 0
    %487 = vmatpush.bf16.msra.mxu0 %v341
    %488 = vmatpush.bf16.msra.mxu0 %v329
    %489 = vmatpush.bf16.msra.mxu0 %v317
    %490 = vmatpush.bf16.msra.mxu0 %v305
    %491 = vmatmul.bf16.gmra.mxu0 %v397
    %v492 = vpop.f32.mrf.mxu0
    %v493 = vadd.f32 %v132, %v492
    %v494 = vpop.f32.mrf.mxu0
    %v495 = vadd.f32 %v132, %v494
    %496 = vdwg.mxu0
    %497 = vmatpush.bf16.msra.mxu0 0
    %498 = vmatpush.bf16.msra.mxu0 0
    %499 = vmatpush.bf16.msra.mxu0 0
    %500 = vmatpush.bf16.msra.mxu0 0
    %501 = vmatpush.bf16.msra.mxu0 %v342
    %502 = vmatpush.bf16.msra.mxu0 %v330
    %503 = vmatpush.bf16.msra.mxu0 %v318
    %504 = vmatpush.bf16.msra.mxu0 %v306
    %505 = vmatmul.bf16.gmra.mxu0 %v397
    %v506 = vpop.f32.mrf.mxu0
    %v507 = vadd.f32 %v133, %v506
    %v508 = vpop.f32.mrf.mxu0
    %v509 = vadd.f32 %v133, %v508
    %510 = vdwg.mxu0
    %511 = vmatpush.bf16.msra.mxu0 0
    %512 = vmatpush.bf16.msra.mxu0 0
    %513 = vmatpush.bf16.msra.mxu0 0
    %514 = vmatpush.bf16.msra.mxu0 0
    %515 = vmatpush.bf16.msra.mxu0 %v343
    %516 = vmatpush.bf16.msra.mxu0 %v331
    %517 = vmatpush.bf16.msra.mxu0 %v319
    %518 = vmatpush.bf16.msra.mxu0 %v307
    %519 = vmatmul.bf16.gmra.mxu0 %v397
    %v520 = vpop.f32.mrf.mxu0
    %v521 = vadd.f32 %v134, %v520
    %v522 = vpop.f32.mrf.mxu0
    %v523 = vadd.f32 %v134, %v522
    %524 = vdwg.mxu0
    %525 = vmatpush.bf16.msra.mxu0 0
    %526 = vmatpush.bf16.msra.mxu0 0
    %527 = vmatpush.bf16.msra.mxu0 0
    %528 = vmatpush.bf16.msra.mxu0 0
    %529 = vmatpush.bf16.msra.mxu0 %v344
    %530 = vmatpush.bf16.msra.mxu0 %v332
    %531 = vmatpush.bf16.msra.mxu0 %v320
    %532 = vmatpush.bf16.msra.mxu0 %v308
    %533 = vmatmul.bf16.gmra.mxu0 %v397
    %v534 = vpop.f32.mrf.mxu0
    %v535 = vadd.f32 %v135, %v534
    %v536 = vpop.f32.mrf.mxu0
    %v537 = vadd.f32 %v135, %v536
    %538 = vdwg.mxu0
    %539 = vmatpush.bf16.msra.mxu0 0
    %540 = vmatpush.bf16.msra.mxu0 0
    %541 = vmatpush.bf16.msra.mxu0 0
    %542 = vmatpush.bf16.msra.mxu0 0
    %543 = vmatpush.bf16.msra.mxu0 %v345
    %544 = vmatpush.bf16.msra.mxu0 %v333
    %545 = vmatpush.bf16.msra.mxu0 %v321
    %546 = vmatpush.bf16.msra.mxu0 %v309
    %547 = vmatmul.bf16.gmra.mxu0 %v397
    %v548 = vpop.f32.mrf.mxu0
    %v549 = vadd.f32 %v136, %v548
    %v550 = vpop.f32.mrf.mxu0
    %v551 = vadd.f32 %v136, %v550
    %552 = vdwg.mxu0
    %553 = vmatpush.bf16.msra.mxu0 0
    %554 = vmatpush.bf16.msra.mxu0 0
    %555 = vmatpush.bf16.msra.mxu0 0
    %556 = vmatpush.bf16.msra.mxu0 0
    %557 = vmatpush.bf16.msra.mxu0 %v346
    %558 = vmatpush.bf16.msra.mxu0 %v334
    %559 = vmatpush.bf16.msra.mxu0 %v322
    %560 = vmatpush.bf16.msra.mxu0 %v310
    %561 = vmatmul.bf16.gmra.mxu0 %v397
    %v562 = vpop.f32.mrf.mxu0
    %v563 = vadd.f32 %v137, %v562
    %v564 = vpop.f32.mrf.mxu0
    %v565 = vadd.f32 %v137, %v564
    %566 = vdwg.mxu0
    %vm567 = vcmp.ge.f32.partialorder %v409, 0.0
    %vm568 = vcmp.ge.f32.partialorder %v423, 0.0
    %vm569 = vcmp.ge.f32.partialorder %v437, 0.0
    %vm570 = vcmp.ge.f32.partialorder %v451, 0.0
    %vm571 = vcmp.ge.f32.partialorder %v465, 0.0
    %vm572 = vcmp.ge.f32.partialorder %v479, 0.0
    %vm573 = vcmp.ge.f32.partialorder %v493, 0.0
    %vm574 = vcmp.ge.f32.partialorder %v507, 0.0
    %vm575 = vcmp.ge.f32.partialorder %v521, 0.0
    %vm576 = vcmp.ge.f32.partialorder %v535, 0.0
    %vm577 = vcmp.ge.f32.partialorder %v549, 0.0
    %vm578 = vcmp.ge.f32.partialorder %v563, 0.0
    %vm579 = vcmp.ge.f32.partialorder %v411, 0.0
    %vm580 = vcmp.ge.f32.partialorder %v425, 0.0
    %vm581 = vcmp.ge.f32.partialorder %v439, 0.0
    %vm582 = vcmp.ge.f32.partialorder %v453, 0.0
    %vm583 = vcmp.ge.f32.partialorder %v467, 0.0
    %vm584 = vcmp.ge.f32.partialorder %v481, 0.0
    %vm585 = vcmp.ge.f32.partialorder %v495, 0.0
    %vm586 = vcmp.ge.f32.partialorder %v509, 0.0
    %vm587 = vcmp.ge.f32.partialorder %v523, 0.0
    %vm588 = vcmp.ge.f32.partialorder %v537, 0.0
    %vm589 = vcmp.ge.f32.partialorder %v551, 0.0
    %vm590 = vcmp.ge.f32.partialorder %v565, 0.0
    %v591 = vmul.f32 %v409, 0.01
    %v592 = vmul.f32 %v423, 0.01
    %v593 = vmul.f32 %v437, 0.01
    %v594 = vmul.f32 %v451, 0.01
    %v595 = vmul.f32 %v465, 0.01
    %v596 = vmul.f32 %v479, 0.01
    %v597 = vmul.f32 %v493, 0.01
    %v598 = vmul.f32 %v507, 0.01
    %v599 = vmul.f32 %v521, 0.01
    %v600 = vmul.f32 %v535, 0.01
    %v601 = vmul.f32 %v549, 0.01
    %v602 = vmul.f32 %v563, 0.01
    %v603 = vmul.f32 %v411, 0.01
    %v604 = vmul.f32 %v425, 0.01
    %v605 = vmul.f32 %v439, 0.01
    %v606 = vmul.f32 %v453, 0.01
    %v607 = vmul.f32 %v467, 0.01
    %v608 = vmul.f32 %v481, 0.01
    %v609 = vmul.f32 %v495, 0.01
    %v610 = vmul.f32 %v509, 0.01
    %v611 = vmul.f32 %v523, 0.01
    %v612 = vmul.f32 %v537, 0.01
    %v613 = vmul.f32 %v551, 0.01
    %v614 = vmul.f32 %v565, 0.01
    %v615 = vsel %vm567, %v409, %v591
    %v616 = vsel %vm568, %v423, %v592
    %v617 = vsel %vm569, %v437, %v593
    %v618 = vsel %vm570, %v451, %v594
    %v619 = vsel %vm571, %v465, %v595
    %v620 = vsel %vm572, %v479, %v596
    %v621 = vsel %vm573, %v493, %v597
    %v622 = vsel %vm574, %v507, %v598
    %v623 = vsel %vm575, %v521, %v599
    %v624 = vsel %vm576, %v535, %v600
    %v625 = vsel %vm577, %v549, %v601
    %v626 = vsel %vm578, %v563, %v602
    %v627 = vsel %vm579, %v411, %v603
    %v628 = vsel %vm580, %v425, %v604
    %v629 = vsel %vm581, %v439, %v605
    %v630 = vsel %vm582, %v453, %v606
    %v631 = vsel %vm583, %v467, %v607
    %v632 = vsel %vm584, %v481, %v608
    %v633 = vsel %vm585, %v495, %v609
    %v634 = vsel %vm586, %v509, %v610
    %v635 = vsel %vm587, %v523, %v611
    %v636 = vsel %vm588, %v537, %v612
    %v637 = vsel %vm589, %v551, %v613
    %v638 = vsel %vm590, %v565, %v614
    %v639 = vld [vmem:[%s0] sm:$0xff]
    %v640 = vld [vmem:[%s0 + $0x8] sm:$0xff]
    %vm641 = vcmp.ge.s32.totalorder %v639, 0
    %vm642 = vcmp.ge.s32.totalorder %v640, 0
    %v643 = vlaneseq
    %v644 = vand.u32 %v643, 127
    %645 = vset.pattern.permute.xlu0 0
    %646 = vperm.xlu0 %645, %v639
    %v647 = vpop.permute.xlu0 %646
    %648 = vset.pattern.permute.xlu0 0
    %649 = vperm.xlu0 %648, %v640
    %v650 = vpop.permute.xlu0 %649
    %vm651 = vcmp.eq.s32.totalorder %v644, %v647
    %vm652 = vcmp.eq.s32.totalorder %v644, %v650
    %v653 = vsel %vm651, 1.0, 0.0
    %v654 = vsel %vm652, 1.0, 0.0
    %v655 = vpack.c.bf16 %v654, %v653
    %v656 = vld [vmem:[%s1] sm:$0xff]
    %v657 = vld [vmem:[%s1 + $0x8] sm:$0xff]
    %v658 = vmax.f32 %v656, 1e-30
    %v659 = vmax.f32 %v657, 1e-30
    %v660 = vlog2.pop %v658
    %v661 = vmul.f32 %v660, 0.6931472
    %v662 = vlog2.pop %v659
    %v663 = vmul.f32 %v662, 0.6931472
    %v664 = vld [vmem:[%s5] ss:$4 sm:$0x3]
    %v666 = vperm.slane %v664, 0
    %v667 = vperm.slane %v664, 1
    %v670 = vmul.f32 %v615, %v666
    %v671 = vmul.f32 %v616, %v667
    %v672 = vmul.f32 %v627, %v666
    %v673 = vmul.f32 %v628, %v667
    %v674 = vadd.f32 %v670, %v671
    %675 = vadd.xlane.f32.xlu0 %v674
    %v676 = vpop.xlane.xlu0 %675
    %v677 = vadd.f32 %v672, %v673
    %678 = vadd.xlane.f32.xlu0 %v677
    %v679 = vpop.xlane.xlu0 %678
    %v680 = vld [vmem:[%s6] sm:$0x1]
    %v681 = vperm.slane %v680, 0
    %v682 = vadd.f32 %v676, %v681
    %v683 = vadd.f32 %v679, %v681
    %v684 = vpack.c.bf16 %v629, %v617
    %v685 = vpack.c.bf16 %v630, %v618
    %v686 = vld [vmem:[%s7] sm:$0xf]
    %v687 = vld [vmem:[%s7 + $0x4] sm:$0xf]
    %v688 = vld [vmem:[%s7 + $0x8] sm:$0xf]
    %v689 = vld [vmem:[%s7 + $0xc] sm:$0xf]
    %v690 = vld [vmem:[%s7 + $0x10] sm:$0xf]
    %v691 = vld [vmem:[%s7 + $0x14] sm:$0xf]
    %v692 = vld [vmem:[%s7 + $0x18] sm:$0xf]
    %v693 = vld [vmem:[%s7 + $0x1c] sm:$0xf]
    %v694 = vld [vmem:[%s7 + $0x20] sm:$0xf]
    %v695 = vld [vmem:[%s7 + $0x24] sm:$0xf]
    %v696 = vld [vmem:[%s7 + $0x28] sm:$0xf]
    %v697 = vld [vmem:[%s7 + $0x2c] sm:$0xf]
    %v698 = vld [vmem:[%s7 + $0x30] sm:$0xf]
    %v699 = vld [vmem:[%s7 + $0x34] sm:$0xf]
    %v700 = vld [vmem:[%s7 + $0x38] sm:$0xf]
    %v701 = vld [vmem:[%s7 + $0x3c] sm:$0xf]
    %v702 = vld [vmem:[%s7 + $0x40] sm:$0xf]
    %v703 = vld [vmem:[%s7 + $0x44] sm:$0xf]
    %v704 = vld [vmem:[%s7 + $0x48] sm:$0xf]
    %v705 = vld [vmem:[%s7 + $0x4c] sm:$0xf]
    %v706 = vld [vmem:[%s7 + $0x50] sm:$0xf]
    %v707 = vld [vmem:[%s7 + $0x54] sm:$0xf]
    %v708 = vld [vmem:[%s7 + $0x58] sm:$0xf]
    %v709 = vld [vmem:[%s7 + $0x5c] sm:$0xf]
    %v710 = vld [vmem:[%s7 + $0x60] sm:$0xf]
    %v711 = vld [vmem:[%s7 + $0x64] sm:$0xf]
    %v712 = vld [vmem:[%s7 + $0x68] sm:$0xf]
    %v713 = vld [vmem:[%s7 + $0x6c] sm:$0xf]
    %v714 = vld [vmem:[%s7 + $0x70] sm:$0xf]
    %v715 = vld [vmem:[%s7 + $0x74] sm:$0xf]
    %v716 = vld [vmem:[%s7 + $0x78] sm:$0xf]
    %v717 = vld [vmem:[%s7 + $0x7c] sm:$0xf]
    %v718 = vld [vmem:[%s8] sm:$0x1]
    %v719 = vperm.slane %v718, 0
    %v752 = vunpack.c.l.b16 %v686
    %v753 = vunpack.c.l.b16 %v687
    %v754 = vunpack.c.l.b16 %v688
    %v755 = vunpack.c.l.b16 %v689
    %v756 = vunpack.c.l.b16 %v690
    %v757 = vunpack.c.l.b16 %v691
    %v758 = vunpack.c.l.b16 %v692
    %v759 = vunpack.c.l.b16 %v693
    %v760 = vunpack.c.l.b16 %v694
    %v761 = vunpack.c.l.b16 %v695
    %v762 = vunpack.c.l.b16 %v696
    %v763 = vunpack.c.l.b16 %v697
    %v764 = vunpack.c.l.b16 %v698
    %v765 = vunpack.c.l.b16 %v699
    %v766 = vunpack.c.l.b16 %v700
    %v767 = vunpack.c.l.b16 %v701
    %v768 = vunpack.c.l.b16 %v702
    %v769 = vunpack.c.l.b16 %v703
    %v770 = vunpack.c.l.b16 %v704
    %v771 = vunpack.c.l.b16 %v705
    %v772 = vunpack.c.l.b16 %v706
    %v773 = vunpack.c.l.b16 %v707
    %v774 = vunpack.c.l.b16 %v708
    %v775 = vunpack.c.l.b16 %v709
    %v776 = vunpack.c.l.b16 %v710
    %v777 = vunpack.c.l.b16 %v711
    %v778 = vunpack.c.l.b16 %v712
    %v779 = vunpack.c.l.b16 %v713
    %v780 = vunpack.c.l.b16 %v714
    %v781 = vunpack.c.l.b16 %v715
    %v782 = vunpack.c.l.b16 %v716
    %v783 = vunpack.c.l.b16 %v717
    %v784 = vpack.c.b16 %v753, %v752
    %v785 = vpack.c.b16 %v755, %v754
    %v786 = vpack.c.b16 %v757, %v756
    %v787 = vpack.c.b16 %v759, %v758
    %v788 = vpack.c.b16 %v761, %v760
    %v789 = vpack.c.b16 %v763, %v762
    %v790 = vpack.c.b16 %v765, %v764
    %v791 = vpack.c.b16 %v767, %v766
    %v792 = vpack.c.b16 %v769, %v768
    %v793 = vpack.c.b16 %v771, %v770
    %v794 = vpack.c.b16 %v773, %v772
    %v795 = vpack.c.b16 %v775, %v774
    %v796 = vpack.c.b16 %v777, %v776
    %v797 = vpack.c.b16 %v779, %v778
    %v798 = vpack.c.b16 %v781, %v780
    %v799 = vpack.c.b16 %v783, %v782
    %816 = vmatpush.bf16.msra.mxu0 %v791
    %817 = vmatpush.bf16.msra.mxu0 %v790
    %818 = vmatpush.bf16.msra.mxu0 %v789
    %819 = vmatpush.bf16.msra.mxu0 %v788
    %820 = vmatpush.bf16.msra.mxu0 %v787
    %821 = vmatpush.bf16.msra.mxu0 %v786
    %822 = vmatpush.bf16.msra.mxu0 %v785
    %823 = vmatpush.bf16.msra.mxu0 %v784
    %824 = vmatmul.bf16.gmra.mxu0 %v684
    %v825 = vpop.f32.mrf.mxu0
    %v826 = vadd.f32 %v719, %v825
    %v827 = vpop.f32.mrf.mxu0
    %v828 = vadd.f32 %v719, %v827
    %829 = vdwg.mxu0
    %830 = vmatpush.bf16.msra.mxu0 %v799
    %831 = vmatpush.bf16.msra.mxu0 %v798
    %832 = vmatpush.bf16.msra.mxu0 %v797
    %833 = vmatpush.bf16.msra.mxu0 %v796
    %834 = vmatpush.bf16.msra.mxu0 %v795
    %835 = vmatpush.bf16.msra.mxu0 %v794
    %836 = vmatpush.bf16.msra.mxu0 %v793
    %837 = vmatpush.bf16.msra.mxu0 %v792
    %838 = vmatmul.bf16.gmra.mxu0 %v685
    %v839 = vpop.f32.mrf.mxu0
    %v840 = vadd.f32 %v826, %v839
    %v841 = vpop.f32.mrf.mxu0
    %v842 = vadd.f32 %v828, %v841
    %843 = vdwg.mxu0
    %v844 = vld [vmem:[#allocation2] sm:$0x1]
    %846 = vset.pattern.permute.xlu0 0
    %847 = vperm.xlu0 %846, %v682
    %v848 = vpop.permute.xlu0 %847
    %851 = vset.pattern.permute.xlu0 0
    %852 = vperm.xlu0 %851, %v683
    %v853 = vpop.permute.xlu0 %852
    %v855 = vsel %vm651, %v848, -1e+30
    %v856 = vsel %vm652, %v853, -1e+30
    %vm857 = vcmask 23552
    %v858 = vsel %vm857, %v855, -inf
    %v859 = vsel %vm857, %v856, -inf
    %v860 = vmax.f32 %v858, %v859
    %v861 = vrot.slane %v860, 4
    %v862 = vmax.f32 %v860, %v861
    %v863 = vrot.slane %v862, 2
    %v864 = vmax.f32 %v862, %v863
    %v865 = vrot.slane %v864, 1
    %v866 = vmax.f32 %v864, %v865
    %v867 = vmax.f32 %v844, %v866
    %v868 = vsub.f32 %v844, %v867
    %v869 = vmul.f32 %v868, 1.442695
    %v870 = vpow.pop %v869
    %v871 = vperm.slane %v867, 0
    %v872 = vsel %vm651, %v871, 0.0
    %v873 = vsel %vm652, %v871, 0.0
    %v874 = vsel %vm857, %v872, 0.0
    %875 = vadd.xlane.f32.xlu0 %v874
    %v876 = vpop.xlane.xlu0 %875
    %v877 = vsel %vm857, %v873, 0.0
    %878 = vadd.xlane.f32.xlu0 %v877
    %v879 = vpop.xlane.xlu0 %878
    %v880 = vld [vmem:[%s9] sm:$0x1]
    %v881 = vperm.slane %v880, 0
    %v882 = vmul.f32 %v881, %v661
    %v883 = vmul.f32 %v881, %v663
    %v884 = vadd.f32 %v882, %v682
    %v885 = vadd.f32 %v883, %v683
    %v886 = vsub.f32 %v884, %v876
    %v887 = vsub.f32 %v885, %v879
    %v888 = vmul.f32 %v886, 1.442695
    %v889 = vpow.pop %v888
    %v890 = vmul.f32 %v887, 1.442695
    %v891 = vpow.pop %v890
    %v892 = vsel %vm641, %v889, 0.0
    %v893 = vsel %vm642, %v891, 0.0
    %895 = vset.pattern.permute.xlu0 0
    %896 = vperm.xlu0 %895, %v892
    %v897 = vpop.permute.xlu0 %896
    %900 = vset.pattern.permute.xlu0 0
    %901 = vperm.xlu0 %900, %v893
    %v902 = vpop.permute.xlu0 %901
    %v904 = vmul.f32 %v897, %v840
    %v905 = vmul.f32 %v902, %v842
    %v906 = vpack.c.bf16 %v905, %v904
    %907 = vxpose.xlu0.c.b16.start [1/8] %v906, 128
    %908 = vxpose.xlu0.c.b16.cont [2/8] 0, 128
    %909 = vxpose.xlu0.c.b16.cont [3/8] 0, 128
    %910 = vxpose.xlu0.c.b16.cont [4/8] 0, 128
    %911 = vxpose.xlu0.c.b16.cont [5/8] 0, 128
    %912 = vxpose.xlu0.c.b16.cont [6/8] 0, 128
    %913 = vxpose.xlu0.c.b16.cont [7/8] 0, 128
    %914 = vxpose.xlu0.c.b16.end [8/8] 0, 128
    %v915 = vpop.trf.xlu0
    %v916 = vpop.trf.xlu0
    %v917 = vpop.trf.xlu0
    %v918 = vpop.trf.xlu0
    %v919 = vpop.trf.xlu0
    %v920 = vpop.trf.xlu0
    %v921 = vpop.trf.xlu0
    %v922 = vpop.trf.xlu0
    %vm923 = vcmask 130048
    %v925 = vsel %vm923, %v915, 0
    %v928 = vsel %vm923, %v916, 0
    %v931 = vsel %vm923, %v917, 0
    %v934 = vsel %vm923, %v918, 0
    %v937 = vsel %vm923, %v919, 0
    %939 = vmatpush.bf16.msra.mxu0 0
    %940 = vmatpush.bf16.msra.mxu0 0
    %941 = vmatpush.bf16.msra.mxu0 0
    %942 = vmatpush.bf16.msra.mxu0 0
    %943 = vmatpush.bf16.msra.mxu0 0
    %944 = vmatpush.bf16.msra.mxu0 0
    %945 = vmatpush.bf16.msra.mxu0 0
    %946 = vmatpush.bf16.msra.mxu0 %v655
    %947 = vmatmul.bf16.gmra.mxu0 %v925
    %v948 = vpop.f32.mrf.mxu0
    %v949 = vadd.f32 0.0, %v948
    %v950 = vpop.f32.mrf.mxu0
    %v951 = vadd.f32 0.0, %v950
    %952 = vmatmul.bf16.gmra.mxu0 %v928
    %v953 = vpop.f32.mrf.mxu0
    %v954 = vadd.f32 0.0, %v953
    %v955 = vpop.f32.mrf.mxu0
    %v956 = vadd.f32 0.0, %v955
    %957 = vmatmul.bf16.gmra.mxu0 %v931
    %v958 = vpop.f32.mrf.mxu0
    %v959 = vadd.f32 0.0, %v958
    %v960 = vpop.f32.mrf.mxu0
    %v961 = vadd.f32 0.0, %v960
    %962 = vmatmul.bf16.gmra.mxu0 %v934
    %v963 = vpop.f32.mrf.mxu0
    %v964 = vadd.f32 0.0, %v963
    %v965 = vpop.f32.mrf.mxu0
    %v966 = vadd.f32 0.0, %v965
    %967 = vmatmul.bf16.gmra.mxu0 %v937
    %v968 = vpop.f32.mrf.mxu0
    %v969 = vadd.f32 0.0, %v968
    %v970 = vpop.f32.mrf.mxu0
    %971 = vdwg.mxu0
    %v972 = vld [vmem:[#allocation3] sm:$0xff]
    %v973 = vld [vmem:[#allocation3 + $0x8] sm:$0xff]
    %v974 = vld [vmem:[#allocation3 + $0x10] sm:$0xff]
    %v975 = vld [vmem:[#allocation3 + $0x18] sm:$0xff]
    %v976 = vld [vmem:[#allocation3 + $0x20] sm:$0xff]
    %v977 = vld [vmem:[#allocation3 + $0x28] sm:$0xff]
    %v978 = vld [vmem:[#allocation3 + $0x30] sm:$0xff]
    %v979 = vld [vmem:[#allocation3 + $0x38] sm:$0xff]
    %v980 = vld [vmem:[#allocation3 + $0x40] sm:$0x1]
    %v981 = vperm.slane %v870, 0
    %v982 = vmul.f32 %v972, %v981
    %v983 = vmul.f32 %v973, %v981
    %v984 = vmul.f32 %v974, %v981
    %v985 = vmul.f32 %v975, %v981
    %v986 = vmul.f32 %v976, %v981
    %v987 = vmul.f32 %v977, %v981
    %v988 = vmul.f32 %v978, %v981
    %v989 = vmul.f32 %v979, %v981
    %v990 = vmul.f32 %v980, %v981
    %v991 = vadd.f32 %v982, %v949
    %v992 = vadd.f32 %v983, %v951
    %v993 = vadd.f32 %v984, %v954
    %v994 = vadd.f32 %v985, %v956
    %v995 = vadd.f32 %v986, %v959
    %v996 = vadd.f32 %v987, %v961
    %v997 = vadd.f32 %v988, %v964
    %v998 = vadd.f32 %v989, %v966
    %v999 = vadd.f32 %v990, %v969
    %1000 = vst.msk [vmem:[#allocation3] sm:$0xff] %vm857, %v991
    %1001 = vst.msk [vmem:[#allocation3 + $0x8] sm:$0xff] %vm857, %v992
    %1002 = vst.msk [vmem:[#allocation3 + $0x10] sm:$0xff] %vm857, %v993
    %1003 = vst.msk [vmem:[#allocation3 + $0x18] sm:$0xff] %vm857, %v994
    %1004 = vst.msk [vmem:[#allocation3 + $0x20] sm:$0xff] %vm857, %v995
    %1005 = vst.msk [vmem:[#allocation3 + $0x28] sm:$0xff] %vm857, %v996
    %1006 = vst.msk [vmem:[#allocation3 + $0x30] sm:$0xff] %vm857, %v997
    %1007 = vst.msk [vmem:[#allocation3 + $0x38] sm:$0xff] %vm857, %v998
    %vm1008 = vcmask 16384
    %1009 = vst.msk [vmem:[#allocation3 + $0x40] sm:$0x1] %vm1008, %v999
    %1010 = vst.msk [vmem:[#allocation2] sm:$0x1] %vm1008, %v867
    %s1011 = scalar_lea.vmem %s5, 1
    %v1012 = vld [vmem:[%s1011] ss:$4 sm:$0x3]
    %v1014 = vperm.slane %v1012, 0
    %v1015 = vperm.slane %v1012, 1
    %v1018 = vmul.f32 %v619, %v1014
    %v1019 = vmul.f32 %v620, %v1015
    %v1020 = vmul.f32 %v631, %v1014
    %v1021 = vmul.f32 %v632, %v1015
    %v1022 = vadd.f32 %v1018, %v1019
    %1023 = vadd.xlane.f32.xlu0 %v1022
    %v1024 = vpop.xlane.xlu0 %1023
    %v1025 = vadd.f32 %v1020, %v1021
    %1026 = vadd.xlane.f32.xlu0 %v1025
    %v1027 = vpop.xlane.xlu0 %1026
    %v1028 = vld [vmem:[%s6 + $0x1] sm:$0x1]
    %v1029 = vperm.slane %v1028, 0
    %v1030 = vadd.f32 %v1024, %v1029
    %v1031 = vadd.f32 %v1027, %v1029
    %v1032 = vpack.c.bf16 %v633, %v621
    %v1033 = vpack.c.bf16 %v634, %v622
    %s1034 = scalar_lea.vmem %s7, 128
    %v1035 = vld [vmem:[%s1034] sm:$0xf]
    %v1036 = vld [vmem:[%s1034 + $0x4] sm:$0xf]
    %v1037 = vld [vmem:[%s1034 + $0x8] sm:$0xf]
    %v1038 = vld [vmem:[%s1034 + $0xc] sm:$0xf]
    %v1039 = vld [vmem:[%s1034 + $0x10] sm:$0xf]
    %v1040 = vld [vmem:[%s1034 + $0x14] sm:$0xf]
    %v1041 = vld [vmem:[%s1034 + $0x18] sm:$0xf]
    %v1042 = vld [vmem:[%s1034 + $0x1c] sm:$0xf]
    %v1043 = vld [vmem:[%s1034 + $0x20] sm:$0xf]
    %v1044 = vld [vmem:[%s1034 + $0x24] sm:$0xf]
    %v1045 = vld [vmem:[%s1034 + $0x28] sm:$0xf]
    %v1046 = vld [vmem:[%s1034 + $0x2c] sm:$0xf]
    %v1047 = vld [vmem:[%s1034 + $0x30] sm:$0xf]
    %v1048 = vld [vmem:[%s1034 + $0x34] sm:$0xf]
    %v1049 = vld [vmem:[%s1034 + $0x38] sm:$0xf]
    %v1050 = vld [vmem:[%s1034 + $0x3c] sm:$0xf]
    %v1051 = vld [vmem:[%s1034 + $0x40] sm:$0xf]
    %v1052 = vld [vmem:[%s1034 + $0x44] sm:$0xf]
    %v1053 = vld [vmem:[%s1034 + $0x48] sm:$0xf]
    %v1054 = vld [vmem:[%s1034 + $0x4c] sm:$0xf]
    %v1055 = vld [vmem:[%s1034 + $0x50] sm:$0xf]
    %v1056 = vld [vmem:[%s1034 + $0x54] sm:$0xf]
    %v1057 = vld [vmem:[%s1034 + $0x58] sm:$0xf]
    %v1058 = vld [vmem:[%s1034 + $0x5c] sm:$0xf]
    %v1059 = vld [vmem:[%s1034 + $0x60] sm:$0xf]
    %v1060 = vld [vmem:[%s1034 + $0x64] sm:$0xf]
    %v1061 = vld [vmem:[%s1034 + $0x68] sm:$0xf]
    %v1062 = vld [vmem:[%s1034 + $0x6c] sm:$0xf]
    %v1063 = vld [vmem:[%s1034 + $0x70] sm:$0xf]
    %v1064 = vld [vmem:[%s1034 + $0x74] sm:$0xf]
    %v1065 = vld [vmem:[%s1034 + $0x78] sm:$0xf]
    %v1066 = vld [vmem:[%s1034 + $0x7c] sm:$0xf]
    %v1067 = vld [vmem:[%s8 + $0x1] sm:$0x1]
    %v1068 = vperm.slane %v1067, 0
    %v1101 = vunpack.c.l.b16 %v1035
    %v1102 = vunpack.c.l.b16 %v1036
    %v1103 = vunpack.c.l.b16 %v1037
    %v1104 = vunpack.c.l.b16 %v1038
    %v1105 = vunpack.c.l.b16 %v1039
    %v1106 = vunpack.c.l.b16 %v1040
    %v1107 = vunpack.c.l.b16 %v1041
    %v1108 = vunpack.c.l.b16 %v1042
    %v1109 = vunpack.c.l.b16 %v1043
    %v1110 = vunpack.c.l.b16 %v1044
    %v1111 = vunpack.c.l.b16 %v1045
    %v1112 = vunpack.c.l.b16 %v1046
    %v1113 = vunpack.c.l.b16 %v1047
    %v1114 = vunpack.c.l.b16 %v1048
    %v1115 = vunpack.c.l.b16 %v1049
    %v1116 = vunpack.c.l.b16 %v1050
    %v1117 = vunpack.c.l.b16 %v1051
    %v1118 = vunpack.c.l.b16 %v1052
    %v1119 = vunpack.c.l.b16 %v1053
    %v1120 = vunpack.c.l.b16 %v1054
    %v1121 = vunpack.c.l.b16 %v1055
    %v1122 = vunpack.c.l.b16 %v1056
    %v1123 = vunpack.c.l.b16 %v1057
    %v1124 = vunpack.c.l.b16 %v1058
    %v1125 = vunpack.c.l.b16 %v1059
    %v1126 = vunpack.c.l.b16 %v1060
    %v1127 = vunpack.c.l.b16 %v1061
    %v1128 = vunpack.c.l.b16 %v1062
    %v1129 = vunpack.c.l.b16 %v1063
    %v1130 = vunpack.c.l.b16 %v1064
    %v1131 = vunpack.c.l.b16 %v1065
    %v1132 = vunpack.c.l.b16 %v1066
    %v1133 = vpack.c.b16 %v1102, %v1101
    %v1134 = vpack.c.b16 %v1104, %v1103
    %v1135 = vpack.c.b16 %v1106, %v1105
    %v1136 = vpack.c.b16 %v1108, %v1107
    %v1137 = vpack.c.b16 %v1110, %v1109
    %v1138 = vpack.c.b16 %v1112, %v1111
    %v1139 = vpack.c.b16 %v1114, %v1113
    %v1140 = vpack.c.b16 %v1116, %v1115
    %v1141 = vpack.c.b16 %v1118, %v1117
    %v1142 = vpack.c.b16 %v1120, %v1119
    %v1143 = vpack.c.b16 %v1122, %v1121
    %v1144 = vpack.c.b16 %v1124, %v1123
    %v1145 = vpack.c.b16 %v1126, %v1125
    %v1146 = vpack.c.b16 %v1128, %v1127
    %v1147 = vpack.c.b16 %v1130, %v1129
    %v1148 = vpack.c.b16 %v1132, %v1131
    %1165 = vmatpush.bf16.msra.mxu0 %v1140
    %1166 = vmatpush.bf16.msra.mxu0 %v1139
    %1167 = vmatpush.bf16.msra.mxu0 %v1138
    %1168 = vmatpush.bf16.msra.mxu0 %v1137
    %1169 = vmatpush.bf16.msra.mxu0 %v1136
    %1170 = vmatpush.bf16.msra.mxu0 %v1135
    %1171 = vmatpush.bf16.msra.mxu0 %v1134
    %1172 = vmatpush.bf16.msra.mxu0 %v1133
    %1173 = vmatmul.bf16.gmra.mxu0 %v1032
    %v1174 = vpop.f32.mrf.mxu0
    %v1175 = vadd.f32 %v1068, %v1174
    %v1176 = vpop.f32.mrf.mxu0
    %v1177 = vadd.f32 %v1068, %v1176
    %1178 = vdwg.mxu0
    %1179 = vmatpush.bf16.msra.mxu0 %v1148
    %1180 = vmatpush.bf16.msra.mxu0 %v1147
    %1181 = vmatpush.bf16.msra.mxu0 %v1146
    %1182 = vmatpush.bf16.msra.mxu0 %v1145
    %1183 = vmatpush.bf16.msra.mxu0 %v1144
    %1184 = vmatpush.bf16.msra.mxu0 %v1143
    %1185 = vmatpush.bf16.msra.mxu0 %v1142
    %1186 = vmatpush.bf16.msra.mxu0 %v1141
    %1187 = vmatmul.bf16.gmra.mxu0 %v1033
    %v1188 = vpop.f32.mrf.mxu0
    %v1189 = vadd.f32 %v1175, %v1188
    %v1190 = vpop.f32.mrf.mxu0
    %v1191 = vadd.f32 %v1177, %v1190
    %1192 = vdwg.mxu0
    %v1193 = vld [vmem:[#allocation2 + $0x1] sm:$0x1]
    %1195 = vset.pattern.permute.xlu0 0
    %1196 = vperm.xlu0 %1195, %v1030
    %v1197 = vpop.permute.xlu0 %1196
    %1200 = vset.pattern.permute.xlu0 0
    %1201 = vperm.xlu0 %1200, %v1031
    %v1202 = vpop.permute.xlu0 %1201
    %v1204 = vsel %vm651, %v1197, -1e+30
    %v1205 = vsel %vm652, %v1202, -1e+30
    %v1206 = vsel %vm857, %v1204, -inf
    %v1207 = vsel %vm857, %v1205, -inf
    %v1208 = vmax.f32 %v1206, %v1207
    %v1209 = vrot.slane %v1208, 4
    %v1210 = vmax.f32 %v1208, %v1209
    %v1211 = vrot.slane %v1210, 2
    %v1212 = vmax.f32 %v1210, %v1211
    %v1213 = vrot.slane %v1212, 1
    %v1214 = vmax.f32 %v1212, %v1213
    %v1215 = vmax.f32 %v1193, %v1214
    %v1216 = vsub.f32 %v1193, %v1215
    %v1217 = vmul.f32 %v1216, 1.442695
    %v1218 = vpow.pop %v1217
    %v1219 = vperm.slane %v1215, 0
    %v1220 = vsel %vm651, %v1219, 0.0
    %v1221 = vsel %vm652, %v1219, 0.0
    %v1222 = vsel %vm857, %v1220, 0.0
    %1223 = vadd.xlane.f32.xlu0 %v1222
    %v1224 = vpop.xlane.xlu0 %1223
    %v1225 = vsel %vm857, %v1221, 0.0
    %1226 = vadd.xlane.f32.xlu0 %v1225
    %v1227 = vpop.xlane.xlu0 %1226
    %v1228 = vld [vmem:[%s9 + $0x1] sm:$0x1]
    %v1229 = vperm.slane %v1228, 0
    %v1230 = vmul.f32 %v1229, %v661
    %v1231 = vmul.f32 %v1229, %v663
    %v1232 = vadd.f32 %v1230, %v1030
    %v1233 = vadd.f32 %v1231, %v1031
    %v1234 = vsub.f32 %v1232, %v1224
    %v1235 = vsub.f32 %v1233, %v1227
    %v1236 = vmul.f32 %v1234, 1.442695
    %v1237 = vpow.pop %v1236
    %v1238 = vmul.f32 %v1235, 1.442695
    %v1239 = vpow.pop %v1238
    %v1240 = vsel %vm641, %v1237, 0.0
    %v1241 = vsel %vm642, %v1239, 0.0
    %1243 = vset.pattern.permute.xlu0 0
    %1244 = vperm.xlu0 %1243, %v1240
    %v1245 = vpop.permute.xlu0 %1244
    %1248 = vset.pattern.permute.xlu0 0
    %1249 = vperm.xlu0 %1248, %v1241
    %v1250 = vpop.permute.xlu0 %1249
    %v1252 = vmul.f32 %v1245, %v1189
    %v1253 = vmul.f32 %v1250, %v1191
    %v1254 = vpack.c.bf16 %v1253, %v1252
    %1255 = vxpose.xlu0.c.b16.start [1/8] %v1254, 128
    %1256 = vxpose.xlu0.c.b16.cont [2/8] 0, 128
    %1257 = vxpose.xlu0.c.b16.cont [3/8] 0, 128
    %1258 = vxpose.xlu0.c.b16.cont [4/8] 0, 128
    %1259 = vxpose.xlu0.c.b16.cont [5/8] 0, 128
    %1260 = vxpose.xlu0.c.b16.cont [6/8] 0, 128
    %1261 = vxpose.xlu0.c.b16.cont [7/8] 0, 128
    %1262 = vxpose.xlu0.c.b16.end [8/8] 0, 128
    %v1263 = vpop.trf.xlu0
    %v1264 = vpop.trf.xlu0
    %v1265 = vpop.trf.xlu0
    %v1266 = vpop.trf.xlu0
    %v1267 = vpop.trf.xlu0
    %v1268 = vpop.trf.xlu0
    %v1269 = vpop.trf.xlu0
    %v1270 = vpop.trf.xlu0
    %v1272 = vsel %vm923, %v1263, 0
    %v1275 = vsel %vm923, %v1264, 0
    %v1278 = vsel %vm923, %v1265, 0
    %v1281 = vsel %vm923, %v1266, 0
    %v1284 = vsel %vm923, %v1267, 0
    %1286 = vmatpush.bf16.msra.mxu0 0
    %1287 = vmatpush.bf16.msra.mxu0 0
    %1288 = vmatpush.bf16.msra.mxu0 0
    %1289 = vmatpush.bf16.msra.mxu0 0
    %1290 = vmatpush.bf16.msra.mxu0 0
    %1291 = vmatpush.bf16.msra.mxu0 0
    %1292 = vmatpush.bf16.msra.mxu0 0
    %1293 = vmatpush.bf16.msra.mxu0 %v655
    %1294 = vmatmul.bf16.gmra.mxu0 %v1272
    %v1295 = vpop.f32.mrf.mxu0
    %v1296 = vadd.f32 0.0, %v1295
    %v1297 = vpop.f32.mrf.mxu0
    %v1298 = vadd.f32 0.0, %v1297
    %1299 = vmatmul.bf16.gmra.mxu0 %v1275
    %v1300 = vpop.f32.mrf.mxu0
    %v1301 = vadd.f32 0.0, %v1300
    %v1302 = vpop.f32.mrf.mxu0
    %v1303 = vadd.f32 0.0, %v1302
    %1304 = vmatmul.bf16.gmra.mxu0 %v1278
    %v1305 = vpop.f32.mrf.mxu0
    %v1306 = vadd.f32 0.0, %v1305
    %v1307 = vpop.f32.mrf.mxu0
    %v1308 = vadd.f32 0.0, %v1307
    %1309 = vmatmul.bf16.gmra.mxu0 %v1281
    %v1310 = vpop.f32.mrf.mxu0
    %v1311 = vadd.f32 0.0, %v1310
    %v1312 = vpop.f32.mrf.mxu0
    %v1313 = vadd.f32 0.0, %v1312
    %1314 = vmatmul.bf16.gmra.mxu0 %v1284
    %v1315 = vpop.f32.mrf.mxu0
    %v1316 = vadd.f32 0.0, %v1315
    %v1317 = vpop.f32.mrf.mxu0
    %1318 = vdwg.mxu0
    %s1319 = scalar_lea.vmem [#allocation3], 72
    %v1320 = vld [vmem:[%s1319] sm:$0xff]
    %v1321 = vld [vmem:[%s1319 + $0x8] sm:$0xff]
    %v1322 = vld [vmem:[%s1319 + $0x10] sm:$0xff]
    %v1323 = vld [vmem:[%s1319 + $0x18] sm:$0xff]
    %v1324 = vld [vmem:[%s1319 + $0x20] sm:$0xff]
    %v1325 = vld [vmem:[%s1319 + $0x28] sm:$0xff]
    %v1326 = vld [vmem:[%s1319 + $0x30] sm:$0xff]
    %v1327 = vld [vmem:[%s1319 + $0x38] sm:$0xff]
    %v1328 = vld [vmem:[%s1319 + $0x40] sm:$0x1]
    %v1329 = vperm.slane %v1218, 0
    %v1330 = vmul.f32 %v1320, %v1329
    %v1331 = vmul.f32 %v1321, %v1329
    %v1332 = vmul.f32 %v1322, %v1329
    %v1333 = vmul.f32 %v1323, %v1329
    %v1334 = vmul.f32 %v1324, %v1329
    %v1335 = vmul.f32 %v1325, %v1329
    %v1336 = vmul.f32 %v1326, %v1329
    %v1337 = vmul.f32 %v1327, %v1329
    %v1338 = vmul.f32 %v1328, %v1329
    %v1339 = vadd.f32 %v1330, %v1296
    %v1340 = vadd.f32 %v1331, %v1298
    %v1341 = vadd.f32 %v1332, %v1301
    %v1342 = vadd.f32 %v1333, %v1303
    %v1343 = vadd.f32 %v1334, %v1306
    %v1344 = vadd.f32 %v1335, %v1308
    %v1345 = vadd.f32 %v1336, %v1311
    %v1346 = vadd.f32 %v1337, %v1313
    %v1347 = vadd.f32 %v1338, %v1316
    %1348 = vst.msk [vmem:[%s1319] sm:$0xff] %vm857, %v1339
    %1349 = vst.msk [vmem:[%s1319 + $0x8] sm:$0xff] %vm857, %v1340
    %1350 = vst.msk [vmem:[%s1319 + $0x10] sm:$0xff] %vm857, %v1341
    %1351 = vst.msk [vmem:[%s1319 + $0x18] sm:$0xff] %vm857, %v1342
    %1352 = vst.msk [vmem:[%s1319 + $0x20] sm:$0xff] %vm857, %v1343
    %1353 = vst.msk [vmem:[%s1319 + $0x28] sm:$0xff] %vm857, %v1344
    %1354 = vst.msk [vmem:[%s1319 + $0x30] sm:$0xff] %vm857, %v1345
    %1355 = vst.msk [vmem:[%s1319 + $0x38] sm:$0xff] %vm857, %v1346
    %1356 = vst.msk [vmem:[%s1319 + $0x40] sm:$0x1] %vm1008, %v1347
    %1357 = vst.msk [vmem:[#allocation2 + $0x1] sm:$0x1] %vm1008, %v1215
    %s1358 = scalar_lea.vmem %s5, 2
    %v1359 = vld [vmem:[%s1358] ss:$4 sm:$0x3]
    %v1361 = vperm.slane %v1359, 0
    %v1362 = vperm.slane %v1359, 1
    %v1365 = vmul.f32 %v623, %v1361
    %v1366 = vmul.f32 %v624, %v1362
    %v1367 = vmul.f32 %v635, %v1361
    %v1368 = vmul.f32 %v636, %v1362
    %v1369 = vadd.f32 %v1365, %v1366
    %1370 = vadd.xlane.f32.xlu0 %v1369
    %v1371 = vpop.xlane.xlu0 %1370
    %v1372 = vadd.f32 %v1367, %v1368
    %1373 = vadd.xlane.f32.xlu0 %v1372
    %v1374 = vpop.xlane.xlu0 %1373
    %v1375 = vld [vmem:[%s6 + $0x2] sm:$0x1]
    %v1376 = vperm.slane %v1375, 0
    %v1377 = vadd.f32 %v1371, %v1376
    %v1378 = vadd.f32 %v1374, %v1376
    %v1379 = vpack.c.bf16 %v637, %v625
    %v1380 = vpack.c.bf16 %v638, %v626
    %s1381 = scalar_lea.vmem %s7, 256
    %v1382 = vld [vmem:[%s1381] sm:$0xf]
    %v1383 = vld [vmem:[%s1381 + $0x4] sm:$0xf]
    %v1384 = vld [vmem:[%s1381 + $0x8] sm:$0xf]
    %v1385 = vld [vmem:[%s1381 + $0xc] sm:$0xf]
    %v1386 = vld [vmem:[%s1381 + $0x10] sm:$0xf]
    %v1387 = vld [vmem:[%s1381 + $0x14] sm:$0xf]
    %v1388 = vld [vmem:[%s1381 + $0x18] sm:$0xf]
    %v1389 = vld [vmem:[%s1381 + $0x1c] sm:$0xf]
    %v1390 = vld [vmem:[%s1381 + $0x20] sm:$0xf]
    %v1391 = vld [vmem:[%s1381 + $0x24] sm:$0xf]
    %v1392 = vld [vmem:[%s1381 + $0x28] sm:$0xf]
    %v1393 = vld [vmem:[%s1381 + $0x2c] sm:$0xf]
    %v1394 = vld [vmem:[%s1381 + $0x30] sm:$0xf]
    %v1395 = vld [vmem:[%s1381 + $0x34] sm:$0xf]
    %v1396 = vld [vmem:[%s1381 + $0x38] sm:$0xf]
    %v1397 = vld [vmem:[%s1381 + $0x3c] sm:$0xf]
    %v1398 = vld [vmem:[%s1381 + $0x40] sm:$0xf]
    %v1399 = vld [vmem:[%s1381 + $0x44] sm:$0xf]
    %v1400 = vld [vmem:[%s1381 + $0x48] sm:$0xf]
    %v1401 = vld [vmem:[%s1381 + $0x4c] sm:$0xf]
    %v1402 = vld [vmem:[%s1381 + $0x50] sm:$0xf]
    %v1403 = vld [vmem:[%s1381 + $0x54] sm:$0xf]
    %v1404 = vld [vmem:[%s1381 + $0x58] sm:$0xf]
    %v1405 = vld [vmem:[%s1381 + $0x5c] sm:$0xf]
    %v1406 = vld [vmem:[%s1381 + $0x60] sm:$0xf]
    %v1407 = vld [vmem:[%s1381 + $0x64] sm:$0xf]
    %v1408 = vld [vmem:[%s1381 + $0x68] sm:$0xf]
    %v1409 = vld [vmem:[%s1381 + $0x6c] sm:$0xf]
    %v1410 = vld [vmem:[%s1381 + $0x70] sm:$0xf]
    %v1411 = vld [vmem:[%s1381 + $0x74] sm:$0xf]
    %v1412 = vld [vmem:[%s1381 + $0x78] sm:$0xf]
    %v1413 = vld [vmem:[%s1381 + $0x7c] sm:$0xf]
    %v1414 = vld [vmem:[%s8 + $0x2] sm:$0x1]
    %v1415 = vperm.slane %v1414, 0
    %v1448 = vunpack.c.l.b16 %v1382
    %v1449 = vunpack.c.l.b16 %v1383
    %v1450 = vunpack.c.l.b16 %v1384
    %v1451 = vunpack.c.l.b16 %v1385
    %v1452 = vunpack.c.l.b16 %v1386
    %v1453 = vunpack.c.l.b16 %v1387
    %v1454 = vunpack.c.l.b16 %v1388
    %v1455 = vunpack.c.l.b16 %v1389
    %v1456 = vunpack.c.l.b16 %v1390
    %v1457 = vunpack.c.l.b16 %v1391
    %v1458 = vunpack.c.l.b16 %v1392
    %v1459 = vunpack.c.l.b16 %v1393
    %v1460 = vunpack.c.l.b16 %v1394
    %v1461 = vunpack.c.l.b16 %v1395
    %v1462 = vunpack.c.l.b16 %v1396
    %v1463 = vunpack.c.l.b16 %v1397
    %v1464 = vunpack.c.l.b16 %v1398
    %v1465 = vunpack.c.l.b16 %v1399
    %v1466 = vunpack.c.l.b16 %v1400
    %v1467 = vunpack.c.l.b16 %v1401
    %v1468 = vunpack.c.l.b16 %v1402
    %v1469 = vunpack.c.l.b16 %v1403
    %v1470 = vunpack.c.l.b16 %v1404
    %v1471 = vunpack.c.l.b16 %v1405
    %v1472 = vunpack.c.l.b16 %v1406
    %v1473 = vunpack.c.l.b16 %v1407
    %v1474 = vunpack.c.l.b16 %v1408
    %v1475 = vunpack.c.l.b16 %v1409
    %v1476 = vunpack.c.l.b16 %v1410
    %v1477 = vunpack.c.l.b16 %v1411
    %v1478 = vunpack.c.l.b16 %v1412
    %v1479 = vunpack.c.l.b16 %v1413
    %v1480 = vpack.c.b16 %v1449, %v1448
    %v1481 = vpack.c.b16 %v1451, %v1450
    %v1482 = vpack.c.b16 %v1453, %v1452
    %v1483 = vpack.c.b16 %v1455, %v1454
    %v1484 = vpack.c.b16 %v1457, %v1456
    %v1485 = vpack.c.b16 %v1459, %v1458
    %v1486 = vpack.c.b16 %v1461, %v1460
    %v1487 = vpack.c.b16 %v1463, %v1462
    %v1488 = vpack.c.b16 %v1465, %v1464
    %v1489 = vpack.c.b16 %v1467, %v1466
    %v1490 = vpack.c.b16 %v1469, %v1468
    %v1491 = vpack.c.b16 %v1471, %v1470
    %v1492 = vpack.c.b16 %v1473, %v1472
    %v1493 = vpack.c.b16 %v1475, %v1474
    %v1494 = vpack.c.b16 %v1477, %v1476
    %v1495 = vpack.c.b16 %v1479, %v1478
    %1512 = vmatpush.bf16.msra.mxu0 %v1487
    %1513 = vmatpush.bf16.msra.mxu0 %v1486
    %1514 = vmatpush.bf16.msra.mxu0 %v1485
    %1515 = vmatpush.bf16.msra.mxu0 %v1484
    %1516 = vmatpush.bf16.msra.mxu0 %v1483
    %1517 = vmatpush.bf16.msra.mxu0 %v1482
    %1518 = vmatpush.bf16.msra.mxu0 %v1481
    %1519 = vmatpush.bf16.msra.mxu0 %v1480
    %1520 = vmatmul.bf16.gmra.mxu0 %v1379
    %v1521 = vpop.f32.mrf.mxu0
    %v1522 = vadd.f32 %v1415, %v1521
    %v1523 = vpop.f32.mrf.mxu0
    %v1524 = vadd.f32 %v1415, %v1523
    %1525 = vdwg.mxu0
    %1526 = vmatpush.bf16.msra.mxu0 %v1495
    %1527 = vmatpush.bf16.msra.mxu0 %v1494
    %1528 = vmatpush.bf16.msra.mxu0 %v1493
    %1529 = vmatpush.bf16.msra.mxu0 %v1492
    %1530 = vmatpush.bf16.msra.mxu0 %v1491
    %1531 = vmatpush.bf16.msra.mxu0 %v1490
    %1532 = vmatpush.bf16.msra.mxu0 %v1489
    %1533 = vmatpush.bf16.msra.mxu0 %v1488
    %1534 = vmatmul.bf16.gmra.mxu0 %v1380
    %v1535 = vpop.f32.mrf.mxu0
    %v1536 = vadd.f32 %v1522, %v1535
    %v1537 = vpop.f32.mrf.mxu0
    %v1538 = vadd.f32 %v1524, %v1537
    %1539 = vdwg.mxu0
    %v1540 = vld [vmem:[#allocation2 + $0x2] sm:$0x1]
    %1542 = vset.pattern.permute.xlu0 0
    %1543 = vperm.xlu0 %1542, %v1377
    %v1544 = vpop.permute.xlu0 %1543
    %1547 = vset.pattern.permute.xlu0 0
    %1548 = vperm.xlu0 %1547, %v1378
    %v1549 = vpop.permute.xlu0 %1548
    %v1551 = vsel %vm651, %v1544, -1e+30
    %v1552 = vsel %vm652, %v1549, -1e+30
    %v1553 = vsel %vm857, %v1551, -inf
    %v1554 = vsel %vm857, %v1552, -inf
    %v1555 = vmax.f32 %v1553, %v1554
    %v1556 = vrot.slane %v1555, 4
    %v1557 = vmax.f32 %v1555, %v1556
    %v1558 = vrot.slane %v1557, 2
    %v1559 = vmax.f32 %v1557, %v1558
    %v1560 = vrot.slane %v1559, 1
    %v1561 = vmax.f32 %v1559, %v1560
    %v1562 = vmax.f32 %v1540, %v1561
    %v1563 = vsub.f32 %v1540, %v1562
    %v1564 = vmul.f32 %v1563, 1.442695
    %v1565 = vpow.pop %v1564
    %v1566 = vperm.slane %v1562, 0
    %v1567 = vsel %vm651, %v1566, 0.0
    %v1568 = vsel %vm652, %v1566, 0.0
    %v1569 = vsel %vm857, %v1567, 0.0
    %1570 = vadd.xlane.f32.xlu0 %v1569
    %v1571 = vpop.xlane.xlu0 %1570
    %v1572 = vsel %vm857, %v1568, 0.0
    %1573 = vadd.xlane.f32.xlu0 %v1572
    %v1574 = vpop.xlane.xlu0 %1573
    %v1575 = vld [vmem:[%s9 + $0x2] sm:$0x1]
    %v1576 = vperm.slane %v1575, 0
    %v1577 = vmul.f32 %v1576, %v661
    %v1578 = vmul.f32 %v1576, %v663
    %v1579 = vadd.f32 %v1577, %v1377
    %v1580 = vadd.f32 %v1578, %v1378
    %v1581 = vsub.f32 %v1579, %v1571
    %v1582 = vsub.f32 %v1580, %v1574
    %v1583 = vmul.f32 %v1581, 1.442695
    %v1584 = vpow.pop %v1583
    %v1585 = vmul.f32 %v1582, 1.442695
    %v1586 = vpow.pop %v1585
    %v1587 = vsel %vm641, %v1584, 0.0
    %v1588 = vsel %vm642, %v1586, 0.0
    %1590 = vset.pattern.permute.xlu0 0
    %1591 = vperm.xlu0 %1590, %v1587
    %v1592 = vpop.permute.xlu0 %1591
    %1595 = vset.pattern.permute.xlu0 0
    %1596 = vperm.xlu0 %1595, %v1588
    %v1597 = vpop.permute.xlu0 %1596
    %v1599 = vmul.f32 %v1592, %v1536
    %v1600 = vmul.f32 %v1597, %v1538
    %v1601 = vpack.c.bf16 %v1600, %v1599
    %1602 = vxpose.xlu0.c.b16.start [1/8] %v1601, 128
    %1603 = vxpose.xlu0.c.b16.cont [2/8] 0, 128
    %1604 = vxpose.xlu0.c.b16.cont [3/8] 0, 128
    %1605 = vxpose.xlu0.c.b16.cont [4/8] 0, 128
    %1606 = vxpose.xlu0.c.b16.cont [5/8] 0, 128
    %1607 = vxpose.xlu0.c.b16.cont [6/8] 0, 128
    %1608 = vxpose.xlu0.c.b16.cont [7/8] 0, 128
    %1609 = vxpose.xlu0.c.b16.end [8/8] 0, 128
    %v1610 = vpop.trf.xlu0
    %v1611 = vpop.trf.xlu0
    %v1612 = vpop.trf.xlu0
    %v1613 = vpop.trf.xlu0
    %v1614 = vpop.trf.xlu0
    %v1615 = vpop.trf.xlu0
    %v1616 = vpop.trf.xlu0
    %v1617 = vpop.trf.xlu0
    %v1619 = vsel %vm923, %v1610, 0
    %v1622 = vsel %vm923, %v1611, 0
    %v1625 = vsel %vm923, %v1612, 0
    %v1628 = vsel %vm923, %v1613, 0
    %v1631 = vsel %vm923, %v1614, 0
    %1633 = vmatpush.bf16.msra.mxu0 0
    %1634 = vmatpush.bf16.msra.mxu0 0
    %1635 = vmatpush.bf16.msra.mxu0 0
    %1636 = vmatpush.bf16.msra.mxu0 0
    %1637 = vmatpush.bf16.msra.mxu0 0
    %1638 = vmatpush.bf16.msra.mxu0 0
    %1639 = vmatpush.bf16.msra.mxu0 0
    %1640 = vmatpush.bf16.msra.mxu0 %v655
    %1641 = vmatmul.bf16.gmra.mxu0 %v1619
    %v1642 = vpop.f32.mrf.mxu0
    %v1643 = vadd.f32 0.0, %v1642
    %v1644 = vpop.f32.mrf.mxu0
    %v1645 = vadd.f32 0.0, %v1644
    %1646 = vmatmul.bf16.gmra.mxu0 %v1622
    %v1647 = vpop.f32.mrf.mxu0
    %v1648 = vadd.f32 0.0, %v1647
    %v1649 = vpop.f32.mrf.mxu0
    %v1650 = vadd.f32 0.0, %v1649
    %1651 = vmatmul.bf16.gmra.mxu0 %v1625
    %v1652 = vpop.f32.mrf.mxu0
    %v1653 = vadd.f32 0.0, %v1652
    %v1654 = vpop.f32.mrf.mxu0
    %v1655 = vadd.f32 0.0, %v1654
    %1656 = vmatmul.bf16.gmra.mxu0 %v1628
    %v1657 = vpop.f32.mrf.mxu0
    %v1658 = vadd.f32 0.0, %v1657
    %v1659 = vpop.f32.mrf.mxu0
    %v1660 = vadd.f32 0.0, %v1659
    %1661 = vmatmul.bf16.gmra.mxu0 %v1631
    %v1662 = vpop.f32.mrf.mxu0
    %v1663 = vadd.f32 0.0, %v1662
    %v1664 = vpop.f32.mrf.mxu0
    %1665 = vdwg.mxu0
    %s1666 = scalar_lea.vmem [#allocation3], 144
    %v1667 = vld [vmem:[%s1666] sm:$0xff]
    %v1668 = vld [vmem:[%s1666 + $0x8] sm:$0xff]
    %v1669 = vld [vmem:[%s1666 + $0x10] sm:$0xff]
    %v1670 = vld [vmem:[%s1666 + $0x18] sm:$0xff]
    %v1671 = vld [vmem:[%s1666 + $0x20] sm:$0xff]
    %v1672 = vld [vmem:[%s1666 + $0x28] sm:$0xff]
    %v1673 = vld [vmem:[%s1666 + $0x30] sm:$0xff]
    %v1674 = vld [vmem:[%s1666 + $0x38] sm:$0xff]
    %v1675 = vld [vmem:[%s1666 + $0x40] sm:$0x1]
    %v1676 = vperm.slane %v1565, 0
    %v1677 = vmul.f32 %v1667, %v1676
    %v1678 = vmul.f32 %v1668, %v1676
    %v1679 = vmul.f32 %v1669, %v1676
    %v1680 = vmul.f32 %v1670, %v1676
    %v1681 = vmul.f32 %v1671, %v1676
    %v1682 = vmul.f32 %v1672, %v1676
    %v1683 = vmul.f32 %v1673, %v1676
    %v1684 = vmul.f32 %v1674, %v1676
    %v1685 = vmul.f32 %v1675, %v1676
    %v1686 = vadd.f32 %v1677, %v1643
    %v1687 = vadd.f32 %v1678, %v1645
    %v1688 = vadd.f32 %v1679, %v1648
    %v1689 = vadd.f32 %v1680, %v1650
    %v1690 = vadd.f32 %v1681, %v1653
    %v1691 = vadd.f32 %v1682, %v1655
    %v1692 = vadd.f32 %v1683, %v1658
    %v1693 = vadd.f32 %v1684, %v1660
    %v1694 = vadd.f32 %v1685, %v1663
    %1695 = vst.msk [vmem:[%s1666] sm:$0xff] %vm857, %v1686
    %1696 = vst.msk [vmem:[%s1666 + $0x8] sm:$0xff] %vm857, %v1687
    %1697 = vst.msk [vmem:[%s1666 + $0x10] sm:$0xff] %vm857, %v1688
    %1698 = vst.msk [vmem:[%s1666 + $0x18] sm:$0xff] %vm857, %v1689
    %1699 = vst.msk [vmem:[%s1666 + $0x20] sm:$0xff] %vm857, %v1690
    %1700 = vst.msk [vmem:[%s1666 + $0x28] sm:$0xff] %vm857, %v1691
    %1701 = vst.msk [vmem:[%s1666 + $0x30] sm:$0xff] %vm857, %v1692
    %1702 = vst.msk [vmem:[%s1666 + $0x38] sm:$0xff] %vm857, %v1693
    %1703 = vst.msk [vmem:[%s1666 + $0x40] sm:$0x1] %vm1008, %v1694
    %1704 = vst.msk [vmem:[#allocation2 + $0x2] sm:$0x1] %vm1008, %v1562
    // Predicated region
    $region46: #{descriptor_network.9} parent=1 // pred_check
      %p1705 = pneg %p37
    $region47: #{descriptor_network.9} parent=1 // pred_check_branch
      %1707 = sbr.rel (%p1705) target = $region49
    $region48: #{descriptor_network.9} parent=1 // pred_region
      %v1708 = vld [vmem:[#allocation3] sm:$0xff]
      %v1709 = vld [vmem:[#allocation3 + $0x8] sm:$0xff]
      %v1710 = vld [vmem:[#allocation3 + $0x10] sm:$0xff]
      %v1711 = vld [vmem:[#allocation3 + $0x18] sm:$0xff]
      %v1712 = vld [vmem:[#allocation3 + $0x20] sm:$0xff]
      %v1713 = vld [vmem:[#allocation3 + $0x28] sm:$0xff]
      %v1714 = vld [vmem:[#allocation3 + $0x30] sm:$0xff]
      %v1715 = vld [vmem:[#allocation3 + $0x38] sm:$0xff]
      %v1716 = vld [vmem:[#allocation3 + $0x40] sm:$0x1]
      %v1717 = vadd.f32 %v1716, 1e-10
      %v1718 = vrcp.pop %v1717
      %v1719 = vperm.slane %v1718, 0
      %v1720 = vmul.f32 %v1708, %v1719
      %v1721 = vmul.f32 %v1709, %v1719
      %v1722 = vmul.f32 %v1710, %v1719
      %v1723 = vmul.f32 %v1711, %v1719
      %v1724 = vmul.f32 %v1712, %v1719
      %v1725 = vmul.f32 %v1713, %v1719
      %v1726 = vmul.f32 %v1714, %v1719
      %v1727 = vmul.f32 %v1715, %v1719
      %v1728 = vadd.f32 %v1720, 0.0
      %v1729 = vadd.f32 %v1721, 0.0
      %v1730 = vadd.f32 %v1722, 0.0
      %v1731 = vadd.f32 %v1723, 0.0
      %v1732 = vadd.f32 %v1724, 0.0
      %v1733 = vadd.f32 %v1725, 0.0
      %v1734 = vadd.f32 %v1726, 0.0
      %v1735 = vadd.f32 %v1727, 0.0
      %v1736 = vld [vmem:[%s1319] sm:$0xff]
      %v1737 = vld [vmem:[%s1319 + $0x8] sm:$0xff]
      %v1738 = vld [vmem:[%s1319 + $0x10] sm:$0xff]
      %v1739 = vld [vmem:[%s1319 + $0x18] sm:$0xff]
      %v1740 = vld [vmem:[%s1319 + $0x20] sm:$0xff]
      %v1741 = vld [vmem:[%s1319 + $0x28] sm:$0xff]
      %v1742 = vld [vmem:[%s1319 + $0x30] sm:$0xff]
      %v1743 = vld [vmem:[%s1319 + $0x38] sm:$0xff]
      %v1744 = vld [vmem:[%s1319 + $0x40] sm:$0x1]
      %v1745 = vadd.f32 %v1744, 1e-10
      %v1746 = vrcp.pop %v1745
      %v1747 = vperm.slane %v1746, 0
      %v1748 = vmul.f32 %v1736, %v1747
      %v1749 = vmul.f32 %v1737, %v1747
      %v1750 = vmul.f32 %v1738, %v1747
      %v1751 = vmul.f32 %v1739, %v1747
      %v1752 = vmul.f32 %v1740, %v1747
      %v1753 = vmul.f32 %v1741, %v1747
      %v1754 = vmul.f32 %v1742, %v1747
      %v1755 = vmul.f32 %v1743, %v1747
      %v1756 = vadd.f32 %v1728, %v1748
      %v1757 = vadd.f32 %v1729, %v1749
      %v1758 = vadd.f32 %v1730, %v1750
      %v1759 = vadd.f32 %v1731, %v1751
      %v1760 = vadd.f32 %v1732, %v1752
      %v1761 = vadd.f32 %v1733, %v1753
      %v1762 = vadd.f32 %v1734, %v1754
      %v1763 = vadd.f32 %v1735, %v1755
      %v1764 = vld [vmem:[%s1666] sm:$0xff]
      %v1765 = vld [vmem:[%s1666 + $0x8] sm:$0xff]
      %v1766 = vld [vmem:[%s1666 + $0x10] sm:$0xff]
      %v1767 = vld [vmem:[%s1666 + $0x18] sm:$0xff]
      %v1768 = vld [vmem:[%s1666 + $0x20] sm:$0xff]
      %v1769 = vld [vmem:[%s1666 + $0x28] sm:$0xff]
      %v1770 = vld [vmem:[%s1666 + $0x30] sm:$0xff]
      %v1771 = vld [vmem:[%s1666 + $0x38] sm:$0xff]
      %v1772 = vld [vmem:[%s1666 + $0x40] sm:$0x1]
      %v1773 = vadd.f32 %v1772, 1e-10
      %v1774 = vrcp.pop %v1773
      %v1775 = vperm.slane %v1774, 0
      %v1776 = vmul.f32 %v1764, %v1775
      %v1777 = vmul.f32 %v1765, %v1775
      %v1778 = vmul.f32 %v1766, %v1775
      %v1779 = vmul.f32 %v1767, %v1775
      %v1780 = vmul.f32 %v1768, %v1775
      %v1781 = vmul.f32 %v1769, %v1775
      %v1782 = vmul.f32 %v1770, %v1775
      %v1783 = vmul.f32 %v1771, %v1775
      %v1784 = vadd.f32 %v1756, %v1776
      %v1785 = vadd.f32 %v1757, %v1777
      %v1786 = vadd.f32 %v1758, %v1778
      %v1787 = vadd.f32 %v1759, %v1779
      %v1788 = vadd.f32 %v1760, %v1780
      %v1789 = vadd.f32 %v1761, %v1781
      %v1790 = vadd.f32 %v1762, %v1782
      %v1791 = vadd.f32 %v1763, %v1783
      %v1792 = vlaneseq
      %v1793 = vshrl.u32 %v1792, 7
      %v1794 = vadd.s32 %v1793, 8
      %v1795 = vadd.s32 %v1793, 16
      %v1796 = vadd.s32 %v1793, 24
      %v1797 = vadd.s32 %v1793, 32
      %v1798 = vadd.s32 %v1793, 40
      %v1799 = vadd.s32 %v1793, 48
      %v1800 = vadd.s32 %v1793, 56
      %vm1801 = vcmp.eq.s32.totalorder %v1793, %v644
      %vm1802 = vcmp.eq.s32.totalorder %v1794, %v644
      %vm1803 = vcmp.eq.s32.totalorder %v1795, %v644
      %vm1804 = vcmp.eq.s32.totalorder %v1796, %v644
      %vm1805 = vcmp.eq.s32.totalorder %v1797, %v644
      %vm1806 = vcmp.eq.s32.totalorder %v1798, %v644
      %vm1807 = vcmp.eq.s32.totalorder %v1799, %v644
      %vm1808 = vcmp.eq.s32.totalorder %v1800, %v644
      %v1809 = vsel %vm1801, 1, 0
      %v1810 = vsel %vm1802, 1, 0
      %v1811 = vsel %vm1803, 1, 0
      %v1812 = vsel %vm1804, 1, 0
      %v1813 = vsel %vm1805, 1, 0
      %v1814 = vsel %vm1806, 1, 0
      %v1815 = vsel %vm1807, 1, 0
      %v1816 = vsel %vm1808, 1, 0
      %v1817 = vcvt.s32.f32 %v1809
      %v1818 = vcvt.s32.f32 %v1810
      %v1819 = vcvt.s32.f32 %v1811
      %v1820 = vcvt.s32.f32 %v1812
      %v1821 = vcvt.s32.f32 %v1813
      %v1822 = vcvt.s32.f32 %v1814
      %v1823 = vcvt.s32.f32 %v1815
      %v1824 = vcvt.s32.f32 %v1816
      %1825 = vxpose.xlu0.b32.start [1/16] %v1784, 128
      %1826 = vxpose.xlu0.b32.cont [2/16] %v1785, 128
      %1827 = vxpose.xlu0.b32.cont [3/16] %v1786, 128
      %1828 = vxpose.xlu0.b32.cont [4/16] %v1787, 128
      %1829 = vxpose.xlu0.b32.cont [5/16] %v1788, 128
      %1830 = vxpose.xlu0.b32.cont [6/16] %v1789, 128
      %1831 = vxpose.xlu0.b32.cont [7/16] %v1790, 128
      %1832 = vxpose.xlu0.b32.cont [8/16] %v1791, 128
      %1833 = vxpose.xlu0.b32.cont [9/16] 0.0, 128
      %1834 = vxpose.xlu0.b32.cont [10/16] 0.0, 128
      %1835 = vxpose.xlu0.b32.cont [11/16] 0.0, 128
      %1836 = vxpose.xlu0.b32.cont [12/16] 0.0, 128
      %1837 = vxpose.xlu0.b32.cont [13/16] 0.0, 128
      %1838 = vxpose.xlu0.b32.cont [14/16] 0.0, 128
      %1839 = vxpose.xlu0.b32.cont [15/16] 0.0, 128
      %1840 = vxpose.xlu0.b32.end [16/16] 0.0, 128
      %v1841 = vpop.trf.xlu0
      %v1842 = vpop.trf.xlu0
      %v1843 = vpop.trf.xlu0
      %v1844 = vpop.trf.xlu0
      %v1845 = vpop.trf.xlu0
      %v1846 = vpop.trf.xlu0
      %v1847 = vpop.trf.xlu0
      %v1848 = vpop.trf.xlu0
      %v1849 = vpop.trf.xlu0
      %v1850 = vpop.trf.xlu0
      %v1851 = vpop.trf.xlu0
      %v1852 = vpop.trf.xlu0
      %v1853 = vpop.trf.xlu0
      %v1854 = vpop.trf.xlu0
      %v1855 = vpop.trf.xlu0
      %v1856 = vpop.trf.xlu0
      %v1858 = vsel %vm395, %v1841, 0
      %1860 = vmatpush.msra.mxu0 0.0
      %1861 = vmatpush.msra.mxu0 0.0
      %1862 = vmatpush.msra.mxu0 0.0
      %1863 = vmatpush.msra.mxu0 0.0
      %1864 = vmatpush.msra.mxu0 0.0
      %1865 = vmatpush.msra.mxu0 0.0
      %1866 = vmatpush.msra.mxu0 0.0
      %1867 = vmatpush.msra.mxu0 0.0
      %1868 = vmatpush.msra.mxu0 %v1824
      %1869 = vmatpush.msra.mxu0 %v1823
      %1870 = vmatpush.msra.mxu0 %v1822
      %1871 = vmatpush.msra.mxu0 %v1821
      %1872 = vmatpush.msra.mxu0 %v1820
      %1873 = vmatpush.msra.mxu0 %v1819
      %1874 = vmatpush.msra.mxu0 %v1818
      %1875 = vmatpush.msra.mxu0 %v1817
      %1876 = vmatmul.f32.gmra.mxu0 %v1858
      %v1877 = vpop.f32.mrf.mxu0
      %v1878 = vadd.f32 0.0, %v1877
      %1879 = vdwg.mxu0
      %v1880 = vmul.f32 %v1878, 0.33333334
      %vm1881 = vcmask 518144
      %1882 = vst.msk [vmem:[#allocation4] sm:$0x7] %vm1881, %v1880
    $region49: #{descriptor_network.9} parent=1 // pred_fallthru
      _
    // Predicated region
    $region50: #{descriptor_network.9} parent=1 // pred_check
      _
    $region51: #{descriptor_network.9} parent=1 // pred_check_branch
      %1884 = sbr.rel (0) target = $region53
    $region52: #{descriptor_network.9} parent=1 // pred_region
      %1886 = vsyncadd [#allocation5], 0
      %s1888 = sshll.u32 [#allocation4], 4
      %s1889 = int_to_ptr.vmem [resolvable:$true] %s1888
      %s1890 = sshll.u32 %s10, 4
      %s1891 = int_to_ptr.hbm [resolvable:$true] %s1890
      %1893 = dma.vmem_to_hbm [thread:$0]  %s1889, 64, %s1891, [#allocation5]
    $region53: #{descriptor_network.9} parent=1 // pred_fallthru
      _
    // Predicated region
    $region54: #{descriptor_network.9} parent=1 // pred_check
      _
    $region55: #{descriptor_network.9} parent=1 // pred_check_branch
      %1895 = sbr.rel (0) target = $region57
    $region56: #{descriptor_network.9} parent=1 // pred_region
      %1897 = dma.done [#allocation5], 64
    $region57: #{descriptor_network.9} parent=1 // pred_fallthru
      _
    %1898 = vsyncpa [#allocation5], 1

</llo_original>
